<compile_context>
chip_gen: v6e
topology: v6e:2x2x1
jax: 0.10.0
libtpu: 0.0.40
codegen_flags: <defaults>
</compile_context>

<pallas_src>
import numpy as np
import jax
import jax.numpy as jnp
from jax import lax
from jax.experimental import pallas as pl
from jax.experimental.pallas import tpu as pltpu

HIDDEN = 128  # lstm hidden size (lane-width friendly)


def _wgan_disc_kernel(x_ref, wih0_ref, whh0_ref, b0_ref,
                      w1cat_ref, b1_ref, wfc_ref, bfc_ref,
                      d_ref, lo_ref, xw0_ref):
    """Full LSTM recurrence (2 layers) + fused per-step FC head."""
    T, B, _ = x_ref.shape
    H = HIDDEN

    # ---- hoisted, non-recurrent work -------------------------------------
    # layer-0 input-gate contribution for every timestep (input_size == 1 ->
    # outer product) plus the combined bias, done once before the loop.
    xw0_ref[...] = x_ref[...] * wih0_ref[...] + b0_ref[...]          # (T, B, 4H)

    whh0 = whh0_ref[...]                                             # (H, 4H)
    w1cat = w1cat_ref[...]                                           # (2H, 4H)
    b1 = jnp.broadcast_to(b1_ref[...], (B, 4 * H))                   # hoisted broadcast

    def step(t, carry):
        h0, c0, h1, c1 = carry

        # ---- layer 0 -------------------------------------------------------
        g0 = xw0_ref[t] + jnp.dot(h0, whh0, preferred_element_type=jnp.float32)
        i0 = jax.nn.sigmoid(g0[:, 0 * H:1 * H])
        f0 = jax.nn.sigmoid(g0[:, 1 * H:2 * H])
        z0 = jnp.tanh(g0[:, 2 * H:3 * H])
        o0 = jax.nn.sigmoid(g0[:, 3 * H:4 * H])
        c0n = f0 * c0 + i0 * z0
        h0n = o0 * jnp.tanh(c0n)

        # ---- layer 1 (merged K = 2H matmul) ----------------------------------
        cat = jnp.concatenate([h0n, h1], axis=-1)                    # (B, 2H)
        g1 = jnp.dot(cat, w1cat, preferred_element_type=jnp.float32) + b1
        i1 = jax.nn.sigmoid(g1[:, 0 * H:1 * H])
        f1 = jax.nn.sigmoid(g1[:, 1 * H:2 * H])
        z1 = jnp.tanh(g1[:, 2 * H:3 * H])
        o1 = jax.nn.sigmoid(g1[:, 3 * H:4 * H])
        c1n = f1 * c1 + i1 * z1
        h1n = o1 * jnp.tanh(c1n)

        lo_ref[t] = h1n                                              # (B, H)

        # ---- fused per-timestep FC head: Linear(H, 1) ------------------------
        wfc_t = wfc_ref[pl.ds(t, 1), :]                              # (1, H)
        bfc_t = bfc_ref[pl.ds(t, 1), :]                              # (1, 1)
        d_ref[t] = jnp.sum(h1n * wfc_t, axis=-1, keepdims=True) + bfc_t   # (B, 1)

        return h0n, c0n, h1n, c1n

    z = jnp.zeros((B, H), jnp.float32)   # PyTorch default zero h0/c0
    unroll = True if T <= 32 else 4      # full unroll for small static T
    lax.fori_loop(0, T, step, (z, z, z, z), unroll=unroll)


def wgan_discriminator_forward(x, params):
    """x: (B, T, 1) float32.  Returns (d, lstm_output) like the PyTorch module."""
    B, T, one = x.shape
    assert one == 1
    H = HIDDEN

    x_tb = jnp.transpose(x, (1, 0, 2)).astype(jnp.float32)           # (T, B, 1)

    b0 = (params['b_ih_l0'] + params['b_hh_l0']).reshape(1, 4 * H)
    b1 = (params['b_ih_l1'] + params['b_hh_l1']).reshape(1, 4 * H)
    # merged layer-1 weight so that g1 = [h0, h1] @ [W_ih_l1^T ; W_hh_l1^T]
    w1cat = jnp.concatenate([params['w_ih_l1'].T, params['w_hh_l1'].T], axis=0)  # (2H, 4H)

    ins = (x_tb,
           params['w_ih_l0'].T,               # (1, 4H)
           params['w_hh_l0'].T,               # (H, 4H)
           b0,                                # (1, 4H)
           w1cat,                             # (2H, 4H)
           b1,                                # (1, 4H)
           params['w_fc'],                    # (T, H)  stacked Linear(128,1) weights
           params['b_fc'].reshape(T, 1))      # (T, 1)

    d_tb1, lo_tbh = pl.pallas_call(
        _wgan_disc_kernel,
        out_shape=(jax.ShapeDtypeStruct((T, B, 1), jnp.float32),
                   jax.ShapeDtypeStruct((T, B, H), jnp.float32)),
        in_specs=[pl.BlockSpec(memory_space=pltpu.MemorySpace.VMEM)] * len(ins),
        out_specs=(pl.BlockSpec(memory_space=pltpu.MemorySpace.VMEM),
                   pl.BlockSpec(memory_space=pltpu.MemorySpace.VMEM)),
        scratch_shapes=[pltpu.VMEM((T, B, 4 * H), jnp.float32)],      # staged x*W_ih0 + b0
    )(*ins)

    d = jnp.transpose(d_tb1, (1, 0, 2))      # (B, T, 1)
    lo = jnp.transpose(lo_tbh, (1, 0, 2))    # (B, T, H)
    return d, lo


def init_params(key, time_steps):
    """Deterministic synthetic init (PyTorch-style U(-1/sqrt(H), 1/sqrt(H)))."""
    H = HIDDEN
    k = 1.0 / (H ** 0.5)
    keys = jax.random.split(key, 10)
    u = lambda kk, shape: jax.random.uniform(kk, shape, jnp.float32, -k, k)
    return {
        'w_ih_l0': u(keys[0], (4 * H, 1)),
        'w_hh_l0': u(keys[1], (4 * H, H)),
        'b_ih_l0': u(keys[2], (4 * H,)),
        'b_hh_l0': u(keys[3], (4 * H,)),
        'w_ih_l1': u(keys[4], (4 * H, H)),
        'w_hh_l1': u(keys[5], (4 * H, H)),
        'b_ih_l1': u(keys[6], (4 * H,)),
        'b_hh_l1': u(keys[7], (4 * H,)),
        'w_fc':    u(keys[8], (time_steps, H)),   # row t = fc[t].weight (1,128)
        'b_fc':    u(keys[9], (time_steps,)),     # elem t = fc[t].bias
    }


def reference_forward(x, params):
    """Pure-JAX reference mirroring nn.LSTM + per-step Linear semantics."""
    B, T, _ = x.shape
    H = HIDDEN
    hp = jax.lax.Precision.HIGHEST
    h0 = jnp.zeros((B, H), jnp.float32)
    c0 = jnp.zeros((B, H), jnp.float32)
    h1 = jnp.zeros((B, H), jnp.float32)
    c1 = jnp.zeros((B, H), jnp.float32)
    outs = []
    for t in range(T):
        xt = x[:, t, :]
        g0 = (jnp.dot(xt, params['w_ih_l0'].T, precision=hp)
              + jnp.dot(h0, params['w_hh_l0'].T, precision=hp)
              + params['b_ih_l0'] + params['b_hh_l0'])
        i, f, g, o = jnp.split(g0, 4, axis=-1)
        c0 = jax.nn.sigmoid(f) * c0 + jax.nn.sigmoid(i) * jnp.tanh(g)
        h0 = jax.nn.sigmoid(o) * jnp.tanh(c0)
        g1 = (jnp.dot(h0, params['w_ih_l1'].T, precision=hp)
              + jnp.dot(h1, params['w_hh_l1'].T, precision=hp)
              + params['b_ih_l1'] + params['b_hh_l1'])
        i, f, g, o = jnp.split(g1, 4, axis=-1)
        c1 = jax.nn.sigmoid(f) * c1 + jax.nn.sigmoid(i) * jnp.tanh(g)
        h1 = jax.nn.sigmoid(o) * jnp.tanh(c1)
        outs.append(h1)
    lo = jnp.stack(outs, axis=1)                                      # (B, T, H)
    d = jnp.einsum('bth,th->bt', lo, params['w_fc'], precision=hp) + params['b_fc'][None, :]
    return d[:, :, None], lo


# TODO(synk): compute_gradient_penalty is a training-time autograd utility (grad wrt
# inputs); it is not part of forward() and is not implemented as a kernel here.

if __name__ == "__main__":
    B, T = 8, 8          # batch=8, time_steps=8 (input_size=1 per the module)
    key = jax.random.PRNGKey(0)
    kx, kp = jax.random.split(key)
    x = jax.random.normal(kx, (B, T, 1), jnp.float32)
    params = init_params(kp, T)

    fwd = jax.jit(wgan_discriminator_forward)
    d, lo = fwd(x, params)
    jax.block_until_ready((d, lo))

    d_ref, lo_ref = reference_forward(x, params)
    assert d.shape == (B, T, 1) and lo.shape == (B, T, HIDDEN)
    np.testing.assert_allclose(np.asarray(d), np.asarray(d_ref), rtol=1e-2, atol=1e-2)
    np.testing.assert_allclose(np.asarray(lo), np.asarray(lo_ref), rtol=1e-2, atol=1e-2)
    print("KERNEL_OK")
</pallas_src>

<mosaic_0001>
module attributes {stable_mosaic.version = 11 : i64} {
  func.func @_wgan_disc_kernel(%arg0: memref<8x8x1xf32, #tpu.memory_space<vmem>>, %arg1: memref<1x512xf32, #tpu.memory_space<vmem>>, %arg2: memref<128x512xf32, #tpu.memory_space<vmem>>, %arg3: memref<1x512xf32, #tpu.memory_space<vmem>>, %arg4: memref<256x512xf32, #tpu.memory_space<vmem>>, %arg5: memref<1x512xf32, #tpu.memory_space<vmem>>, %arg6: memref<8x128xf32, #tpu.memory_space<vmem>>, %arg7: memref<8x1xf32, #tpu.memory_space<vmem>>, %arg8: memref<8x8x1xf32, #tpu.memory_space<vmem>>, %arg9: memref<8x8x128xf32, #tpu.memory_space<vmem>>, %arg10: memref<8x8x512xf32, #tpu.memory_space<vmem>>) attributes {dimension_semantics = [], scalar_prefetch = 0 : i64, scratch_operands = 1 : i64, tpu.core_type = #tpu.core_type<tc>} {
    %c0 = arith.constant 0 : index
    %c0_0 = arith.constant 0 : index
    %c0_1 = arith.constant 0 : index
    %0 = vector.load %arg0[%c0, %c0_0, %c0_1] : memref<8x8x1xf32, #tpu.memory_space<vmem>>, vector<8x8x1xf32>
    %c0_2 = arith.constant 0 : index
    %c0_3 = arith.constant 0 : index
    %1 = vector.load %arg1[%c0_2, %c0_3] : memref<1x512xf32, #tpu.memory_space<vmem>>, vector<1x512xf32>
    %2 = vector.shape_cast %1 : vector<1x512xf32> to vector<1x1x512xf32>
    %3 = vector.broadcast %0 : vector<8x8x1xf32> to vector<8x8x512xf32>
    %4 = vector.broadcast %2 : vector<1x1x512xf32> to vector<8x8x512xf32>
    %5 = arith.mulf %3, %4 : vector<8x8x512xf32>
    %c0_4 = arith.constant 0 : index
    %c0_5 = arith.constant 0 : index
    %6 = vector.load %arg3[%c0_4, %c0_5] : memref<1x512xf32, #tpu.memory_space<vmem>>, vector<1x512xf32>
    %7 = vector.shape_cast %6 : vector<1x512xf32> to vector<1x1x512xf32>
    %8 = vector.broadcast %7 : vector<1x1x512xf32> to vector<8x8x512xf32>
    %9 = arith.addf %5, %8 : vector<8x8x512xf32>
    %c0_6 = arith.constant 0 : index
    %c0_7 = arith.constant 0 : index
    %c0_8 = arith.constant 0 : index
    %10 = vector.load %arg10[%c0_6, %c0_7, %c0_8] : memref<8x8x512xf32, #tpu.memory_space<vmem>>, vector<8x8x512xf32>
    tpu.vector_store %arg10[%c0_6, %c0_7, %c0_8], %9 {strides = array<i32>} : memref<8x8x512xf32, #tpu.memory_space<vmem>>, vector<8x8x512xf32>,
    %c0_9 = arith.constant 0 : index
    %c0_10 = arith.constant 0 : index
    %11 = vector.load %arg2[%c0_9, %c0_10] : memref<128x512xf32, #tpu.memory_space<vmem>>, vector<128x512xf32>
    %c0_11 = arith.constant 0 : index
    %c0_12 = arith.constant 0 : index
    %12 = vector.load %arg4[%c0_11, %c0_12] : memref<256x512xf32, #tpu.memory_space<vmem>>, vector<256x512xf32>
    %c0_13 = arith.constant 0 : index
    %c0_14 = arith.constant 0 : index
    %13 = vector.load %arg5[%c0_13, %c0_14] : memref<1x512xf32, #tpu.memory_space<vmem>>, vector<1x512xf32>
    %14 = vector.shape_cast %13 : vector<1x512xf32> to vector<1x512xf32>
    %15 = vector.broadcast %14 : vector<1x512xf32> to vector<8x512xf32>
    %cst = arith.constant 0.000000e+00 : f32
    %16 = vector.broadcast %cst : f32 to vector<8x128xf32>
    %c0_i32 = arith.constant 0 : i32
    %17 = arith.index_cast %c0_i32 : i32 to index
    %c0_15 = arith.constant 0 : index
    %c0_16 = arith.constant 0 : index
    %18 = vector.load %arg10[%17, %c0_15, %c0_16] : memref<8x8x512xf32, #tpu.memory_space<vmem>>, vector<1x8x512xf32>
    %19 = vector.shape_cast %18 : vector<1x8x512xf32> to vector<8x512xf32>
    %cst_17 = arith.constant dense<0.000000e+00> : vector<8x512xf32>
    %20 = tpu.matmul %16, %11, %cst_17 {dimension_numbers = #tpu.dot_dimension_numbers<[1], [0], [0], [1], [0, 0, 1, 1], [], []>} : vector<8x128xf32>, vector<128x512xf32>, vector<8x512xf32> -> vector<8x512xf32>
    %21 = arith.addf %19, %20 : vector<8x512xf32>
    %22 = vector.extract_strided_slice %21 {offsets = [0, 0], sizes = [8, 128], strides = [1, 1]} : vector<8x512xf32> to vector<8x128xf32>
    %23 = arith.negf %22 : vector<8x128xf32>
    %24 = math.exp %23 : vector<8x128xf32>
    %cst_18 = arith.constant 1.000000e+00 : f32
    %25 = vector.broadcast %cst_18 : f32 to vector<8x128xf32>
    %26 = arith.addf %25, %24 : vector<8x128xf32>
    %27 = arith.divf %25, %26 : vector<8x128xf32>
    %28 = vector.extract_strided_slice %21 {offsets = [0, 128], sizes = [8, 128], strides = [1, 1]} : vector<8x512xf32> to vector<8x128xf32>
    %29 = arith.negf %28 : vector<8x128xf32>
    %30 = math.exp %29 : vector<8x128xf32>
    %cst_19 = arith.constant 1.000000e+00 : f32
    %31 = vector.broadcast %cst_19 : f32 to vector<8x128xf32>
    %32 = arith.addf %31, %30 : vector<8x128xf32>
    %33 = arith.divf %31, %32 : vector<8x128xf32>
    %34 = vector.extract_strided_slice %21 {offsets = [0, 256], sizes = [8, 128], strides = [1, 1]} : vector<8x512xf32> to vector<8x128xf32>
    %35 = math.tanh %34 : vector<8x128xf32>
    %36 = vector.extract_strided_slice %21 {offsets = [0, 384], sizes = [8, 128], strides = [1, 1]} : vector<8x512xf32> to vector<8x128xf32>
    %37 = arith.negf %36 : vector<8x128xf32>
    %38 = math.exp %37 : vector<8x128xf32>
    %cst_20 = arith.constant 1.000000e+00 : f32
    %39 = vector.broadcast %cst_20 : f32 to vector<8x128xf32>
    %40 = arith.addf %39, %38 : vector<8x128xf32>
    %41 = arith.divf %39, %40 : vector<8x128xf32>
    %42 = arith.mulf %33, %16 : vector<8x128xf32>
    %43 = arith.mulf %27, %35 : vector<8x128xf32>
    %44 = arith.addf %42, %43 : vector<8x128xf32>
    %45 = math.tanh %44 : vector<8x128xf32>
    %46 = arith.mulf %41, %45 : vector<8x128xf32>
    %47 = tpu.concatenate %46, %16 in 1 : vector<8x128xf32>, vector<8x128xf32> -> vector<8x256xf32>
    %cst_21 = arith.constant dense<0.000000e+00> : vector<8x512xf32>
    %48 = tpu.matmul %47, %12, %cst_21 {dimension_numbers = #tpu.dot_dimension_numbers<[1], [0], [0], [1], [0, 0, 1, 1], [], []>} : vector<8x256xf32>, vector<256x512xf32>, vector<8x512xf32> -> vector<8x512xf32>
    %49 = arith.addf %48, %15 : vector<8x512xf32>
    %50 = vector.extract_strided_slice %49 {offsets = [0, 0], sizes = [8, 128], strides = [1, 1]} : vector<8x512xf32> to vector<8x128xf32>
    %51 = arith.negf %50 : vector<8x128xf32>
    %52 = math.exp %51 : vector<8x128xf32>
    %cst_22 = arith.constant 1.000000e+00 : f32
    %53 = vector.broadcast %cst_22 : f32 to vector<8x128xf32>
    %54 = arith.addf %53, %52 : vector<8x128xf32>
    %55 = arith.divf %53, %54 : vector<8x128xf32>
    %56 = vector.extract_strided_slice %49 {offsets = [0, 128], sizes = [8, 128], strides = [1, 1]} : vector<8x512xf32> to vector<8x128xf32>
    %57 = arith.negf %56 : vector<8x128xf32>
    %58 = math.exp %57 : vector<8x128xf32>
    %cst_23 = arith.constant 1.000000e+00 : f32
    %59 = vector.broadcast %cst_23 : f32 to vector<8x128xf32>
    %60 = arith.addf %59, %58 : vector<8x128xf32>
    %61 = arith.divf %59, %60 : vector<8x128xf32>
    %62 = vector.extract_strided_slice %49 {offsets = [0, 256], sizes = [8, 128], strides = [1, 1]} : vector<8x512xf32> to vector<8x128xf32>
    %63 = math.tanh %62 : vector<8x128xf32>
    %64 = vector.extract_strided_slice %49 {offsets = [0, 384], sizes = [8, 128], strides = [1, 1]} : vector<8x512xf32> to vector<8x128xf32>
    %65 = arith.negf %64 : vector<8x128xf32>
    %66 = math.exp %65 : vector<8x128xf32>
    %cst_24 = arith.constant 1.000000e+00 : f32
    %67 = vector.broadcast %cst_24 : f32 to vector<8x128xf32>
    %68 = arith.addf %67, %66 : vector<8x128xf32>
    %69 = arith.divf %67, %68 : vector<8x128xf32>
    %70 = arith.mulf %61, %16 : vector<8x128xf32>
    %71 = arith.mulf %55, %63 : vector<8x128xf32>
    %72 = arith.addf %70, %71 : vector<8x128xf32>
    %73 = math.tanh %72 : vector<8x128xf32>
    %74 = arith.mulf %69, %73 : vector<8x128xf32>
    %75 = arith.index_cast %c0_i32 : i32 to index
    %c0_25 = arith.constant 0 : index
    %c0_26 = arith.constant 0 : index
    %76 = vector.load %arg9[%75, %c0_25, %c0_26] : memref<8x8x128xf32, #tpu.memory_space<vmem>>, vector<1x8x128xf32>
    %77 = vector.shape_cast %76 : vector<1x8x128xf32> to vector<8x128xf32>
    %78 = vector.shape_cast %74 : vector<8x128xf32> to vector<1x8x128xf32>
    tpu.vector_store %arg9[%75, %c0_25, %c0_26], %78 {strides = array<i32>} : memref<8x8x128xf32, #tpu.memory_space<vmem>>, vector<1x8x128xf32>,
    %79 = arith.index_cast %c0_i32 : i32 to index
    %c0_27 = arith.constant 0 : index
    %80 = vector.load %arg6[%79, %c0_27] : memref<8x128xf32, #tpu.memory_space<vmem>>, vector<1x128xf32>
    %81 = arith.index_cast %c0_i32 : i32 to index
    %c0_28 = arith.constant 0 : index
    %82 = vector.load %arg7[%81, %c0_28] : memref<8x1xf32, #tpu.memory_space<vmem>>, vector<1x1xf32>
    %83 = vector.broadcast %80 : vector<1x128xf32> to vector<8x128xf32>
    %84 = arith.mulf %74, %83 : vector<8x128xf32>
    %cst_29 = arith.constant dense<0.000000e+00> : vector<8xf32>
    %85 = vector.multi_reduction <add>, %84, %cst_29 [1] : vector<8x128xf32> to vector<8xf32>
    %86 = vector.shape_cast %85 : vector<8xf32> to vector<8x1xf32>
    %87 = vector.broadcast %82 : vector<1x1xf32> to vector<8x1xf32>
    %88 = arith.addf %86, %87 : vector<8x1xf32>
    %89 = arith.index_cast %c0_i32 : i32 to index
    %c0_30 = arith.constant 0 : index
    %c0_31 = arith.constant 0 : index
    %90 = vector.load %arg8[%89, %c0_30, %c0_31] : memref<8x8x1xf32, #tpu.memory_space<vmem>>, vector<1x8x1xf32>
    %91 = vector.shape_cast %90 : vector<1x8x1xf32> to vector<8x1xf32>
    %92 = vector.shape_cast %88 : vector<8x1xf32> to vector<1x8x1xf32>
    tpu.vector_store %arg8[%89, %c0_30, %c0_31], %92 {strides = array<i32>} : memref<8x8x1xf32, #tpu.memory_space<vmem>>, vector<1x8x1xf32>,
    %c1_i32 = arith.constant 1 : i32
    %93 = arith.index_cast %c1_i32 : i32 to index
    %c0_32 = arith.constant 0 : index
    %c0_33 = arith.constant 0 : index
    %94 = vector.load %arg10[%93, %c0_32, %c0_33] : memref<8x8x512xf32, #tpu.memory_space<vmem>>, vector<1x8x512xf32>
    %95 = vector.shape_cast %94 : vector<1x8x512xf32> to vector<8x512xf32>
    %cst_34 = arith.constant dense<0.000000e+00> : vector<8x512xf32>
    %96 = tpu.matmul %46, %11, %cst_34 {dimension_numbers = #tpu.dot_dimension_numbers<[1], [0], [0], [1], [0, 0, 1, 1], [], []>} : vector<8x128xf32>, vector<128x512xf32>, vector<8x512xf32> -> vector<8x512xf32>
    %97 = arith.addf %95, %96 : vector<8x512xf32>
    %98 = vector.extract_strided_slice %97 {offsets = [0, 0], sizes = [8, 128], strides = [1, 1]} : vector<8x512xf32> to vector<8x128xf32>
    %99 = arith.negf %98 : vector<8x128xf32>
    %100 = math.exp %99 : vector<8x128xf32>
    %cst_35 = arith.constant 1.000000e+00 : f32
    %101 = vector.broadcast %cst_35 : f32 to vector<8x128xf32>
    %102 = arith.addf %101, %100 : vector<8x128xf32>
    %103 = arith.divf %101, %102 : vector<8x128xf32>
    %104 = vector.extract_strided_slice %97 {offsets = [0, 128], sizes = [8, 128], strides = [1, 1]} : vector<8x512xf32> to vector<8x128xf32>
    %105 = arith.negf %104 : vector<8x128xf32>
    %106 = math.exp %105 : vector<8x128xf32>
    %cst_36 = arith.constant 1.000000e+00 : f32
    %107 = vector.broadcast %cst_36 : f32 to vector<8x128xf32>
    %108 = arith.addf %107, %106 : vector<8x128xf32>
    %109 = arith.divf %107, %108 : vector<8x128xf32>
    %110 = vector.extract_strided_slice %97 {offsets = [0, 256], sizes = [8, 128], strides = [1, 1]} : vector<8x512xf32> to vector<8x128xf32>
    %111 = math.tanh %110 : vector<8x128xf32>
    %112 = vector.extract_strided_slice %97 {offsets = [0, 384], sizes = [8, 128], strides = [1, 1]} : vector<8x512xf32> to vector<8x128xf32>
    %113 = arith.negf %112 : vector<8x128xf32>
    %114 = math.exp %113 : vector<8x128xf32>
    %cst_37 = arith.constant 1.000000e+00 : f32
    %115 = vector.broadcast %cst_37 : f32 to vector<8x128xf32>
    %116 = arith.addf %115, %114 : vector<8x128xf32>
    %117 = arith.divf %115, %116 : vector<8x128xf32>
    %118 = arith.mulf %109, %44 : vector<8x128xf32>
    %119 = arith.mulf %103, %111 : vector<8x128xf32>
    %120 = arith.addf %118, %119 : vector<8x128xf32>
    %121 = math.tanh %120 : vector<8x128xf32>
    %122 = arith.mulf %117, %121 : vector<8x128xf32>
    %123 = tpu.concatenate %122, %74 in 1 : vector<8x128xf32>, vector<8x128xf32> -> vector<8x256xf32>
    %cst_38 = arith.constant dense<0.000000e+00> : vector<8x512xf32>
    %124 = tpu.matmul %123, %12, %cst_38 {dimension_numbers = #tpu.dot_dimension_numbers<[1], [0], [0], [1], [0, 0, 1, 1], [], []>} : vector<8x256xf32>, vector<256x512xf32>, vector<8x512xf32> -> vector<8x512xf32>
    %125 = arith.addf %124, %15 : vector<8x512xf32>
    %126 = vector.extract_strided_slice %125 {offsets = [0, 0], sizes = [8, 128], strides = [1, 1]} : vector<8x512xf32> to vector<8x128xf32>
    %127 = arith.negf %126 : vector<8x128xf32>
    %128 = math.exp %127 : vector<8x128xf32>
    %cst_39 = arith.constant 1.000000e+00 : f32
    %129 = vector.broadcast %cst_39 : f32 to vector<8x128xf32>
    %130 = arith.addf %129, %128 : vector<8x128xf32>
    %131 = arith.divf %129, %130 : vector<8x128xf32>
    %132 = vector.extract_strided_slice %125 {offsets = [0, 128], sizes = [8, 128], strides = [1, 1]} : vector<8x512xf32> to vector<8x128xf32>
    %133 = arith.negf %132 : vector<8x128xf32>
    %134 = math.exp %133 : vector<8x128xf32>
    %cst_40 = arith.constant 1.000000e+00 : f32
    %135 = vector.broadcast %cst_40 : f32 to vector<8x128xf32>
    %136 = arith.addf %135, %134 : vector<8x128xf32>
    %137 = arith.divf %135, %136 : vector<8x128xf32>
    %138 = vector.extract_strided_slice %125 {offsets = [0, 256], sizes = [8, 128], strides = [1, 1]} : vector<8x512xf32> to vector<8x128xf32>
    %139 = math.tanh %138 : vector<8x128xf32>
    %140 = vector.extract_strided_slice %125 {offsets = [0, 384], sizes = [8, 128], strides = [1, 1]} : vector<8x512xf32> to vector<8x128xf32>
    %141 = arith.negf %140 : vector<8x128xf32>
    %142 = math.exp %141 : vector<8x128xf32>
    %cst_41 = arith.constant 1.000000e+00 : f32
    %143 = vector.broadcast %cst_41 : f32 to vector<8x128xf32>
    %144 = arith.addf %143, %142 : vector<8x128xf32>
    %145 = arith.divf %143, %144 : vector<8x128xf32>
    %146 = arith.mulf %137, %72 : vector<8x128xf32>
    %147 = arith.mulf %131, %139 : vector<8x128xf32>
    %148 = arith.addf %146, %147 : vector<8x128xf32>
    %149 = math.tanh %148 : vector<8x128xf32>
    %150 = arith.mulf %145, %149 : vector<8x128xf32>
    %151 = arith.index_cast %c1_i32 : i32 to index
    %c0_42 = arith.constant 0 : index
    %c0_43 = arith.constant 0 : index
    %152 = vector.load %arg9[%151, %c0_42, %c0_43] : memref<8x8x128xf32, #tpu.memory_space<vmem>>, vector<1x8x128xf32>
    %153 = vector.shape_cast %152 : vector<1x8x128xf32> to vector<8x128xf32>
    %154 = vector.shape_cast %150 : vector<8x128xf32> to vector<1x8x128xf32>
    tpu.vector_store %arg9[%151, %c0_42, %c0_43], %154 {strides = array<i32>} : memref<8x8x128xf32, #tpu.memory_space<vmem>>, vector<1x8x128xf32>,
    %155 = arith.index_cast %c1_i32 : i32 to index
    %c0_44 = arith.constant 0 : index
    %156 = vector.load %arg6[%155, %c0_44] : memref<8x128xf32, #tpu.memory_space<vmem>>, vector<1x128xf32>
    %157 = arith.index_cast %c1_i32 : i32 to index
    %c0_45 = arith.constant 0 : index
    %158 = vector.load %arg7[%157, %c0_45] : memref<8x1xf32, #tpu.memory_space<vmem>>, vector<1x1xf32>
    %159 = vector.broadcast %156 : vector<1x128xf32> to vector<8x128xf32>
    %160 = arith.mulf %150, %159 : vector<8x128xf32>
    %cst_46 = arith.constant dense<0.000000e+00> : vector<8xf32>
    %161 = vector.multi_reduction <add>, %160, %cst_46 [1] : vector<8x128xf32> to vector<8xf32>
    %162 = vector.shape_cast %161 : vector<8xf32> to vector<8x1xf32>
    %163 = vector.broadcast %158 : vector<1x1xf32> to vector<8x1xf32>
    %164 = arith.addf %162, %163 : vector<8x1xf32>
    %165 = arith.index_cast %c1_i32 : i32 to index
    %c0_47 = arith.constant 0 : index
    %c0_48 = arith.constant 0 : index
    %166 = vector.load %arg8[%165, %c0_47, %c0_48] : memref<8x8x1xf32, #tpu.memory_space<vmem>>, vector<1x8x1xf32>
    %167 = vector.shape_cast %166 : vector<1x8x1xf32> to vector<8x1xf32>
    %168 = vector.shape_cast %164 : vector<8x1xf32> to vector<1x8x1xf32>
    tpu.vector_store %arg8[%165, %c0_47, %c0_48], %168 {strides = array<i32>} : memref<8x8x1xf32, #tpu.memory_space<vmem>>, vector<1x8x1xf32>,
    %c2_i32 = arith.constant 2 : i32
    %169 = arith.index_cast %c2_i32 : i32 to index
    %c0_49 = arith.constant 0 : index
    %c0_50 = arith.constant 0 : index
    %170 = vector.load %arg10[%169, %c0_49, %c0_50] : memref<8x8x512xf32, #tpu.memory_space<vmem>>, vector<1x8x512xf32>
    %171 = vector.shape_cast %170 : vector<1x8x512xf32> to vector<8x512xf32>
    %cst_51 = arith.constant dense<0.000000e+00> : vector<8x512xf32>
    %172 = tpu.matmul %122, %11, %cst_51 {dimension_numbers = #tpu.dot_dimension_numbers<[1], [0], [0], [1], [0, 0, 1, 1], [], []>} : vector<8x128xf32>, vector<128x512xf32>, vector<8x512xf32> -> vector<8x512xf32>
    %173 = arith.addf %171, %172 : vector<8x512xf32>
    %174 = vector.extract_strided_slice %173 {offsets = [0, 0], sizes = [8, 128], strides = [1, 1]} : vector<8x512xf32> to vector<8x128xf32>
    %175 = arith.negf %174 : vector<8x128xf32>
    %176 = math.exp %175 : vector<8x128xf32>
    %cst_52 = arith.constant 1.000000e+00 : f32
    %177 = vector.broadcast %cst_52 : f32 to vector<8x128xf32>
    %178 = arith.addf %177, %176 : vector<8x128xf32>
    %179 = arith.divf %177, %178 : vector<8x128xf32>
    %180 = vector.extract_strided_slice %173 {offsets = [0, 128], sizes = [8, 128], strides = [1, 1]} : vector<8x512xf32> to vector<8x128xf32>
    %181 = arith.negf %180 : vector<8x128xf32>
    %182 = math.exp %181 : vector<8x128xf32>
    %cst_53 = arith.constant 1.000000e+00 : f32
    %183 = vector.broadcast %cst_53 : f32 to vector<8x128xf32>
    %184 = arith.addf %183, %182 : vector<8x128xf32>
    %185 = arith.divf %183, %184 : vector<8x128xf32>
    %186 = vector.extract_strided_slice %173 {offsets = [0, 256], sizes = [8, 128], strides = [1, 1]} : vector<8x512xf32> to vector<8x128xf32>
    %187 = math.tanh %186 : vector<8x128xf32>
    %188 = vector.extract_strided_slice %173 {offsets = [0, 384], sizes = [8, 128], strides = [1, 1]} : vector<8x512xf32> to vector<8x128xf32>
    %189 = arith.negf %188 : vector<8x128xf32>
    %190 = math.exp %189 : vector<8x128xf32>
    %cst_54 = arith.constant 1.000000e+00 : f32
    %191 = vector.broadcast %cst_54 : f32 to vector<8x128xf32>
    %192 = arith.addf %191, %190 : vector<8x128xf32>
    %193 = arith.divf %191, %192 : vector<8x128xf32>
    %194 = arith.mulf %185, %120 : vector<8x128xf32>
    %195 = arith.mulf %179, %187 : vector<8x128xf32>
    %196 = arith.addf %194, %195 : vector<8x128xf32>
    %197 = math.tanh %196 : vector<8x128xf32>
    %198 = arith.mulf %193, %197 : vector<8x128xf32>
    %199 = tpu.concatenate %198, %150 in 1 : vector<8x128xf32>, vector<8x128xf32> -> vector<8x256xf32>
    %cst_55 = arith.constant dense<0.000000e+00> : vector<8x512xf32>
    %200 = tpu.matmul %199, %12, %cst_55 {dimension_numbers = #tpu.dot_dimension_numbers<[1], [0], [0], [1], [0, 0, 1, 1], [], []>} : vector<8x256xf32>, vector<256x512xf32>, vector<8x512xf32> -> vector<8x512xf32>
    %201 = arith.addf %200, %15 : vector<8x512xf32>
    %202 = vector.extract_strided_slice %201 {offsets = [0, 0], sizes = [8, 128], strides = [1, 1]} : vector<8x512xf32> to vector<8x128xf32>
    %203 = arith.negf %202 : vector<8x128xf32>
    %204 = math.exp %203 : vector<8x128xf32>
    %cst_56 = arith.constant 1.000000e+00 : f32
    %205 = vector.broadcast %cst_56 : f32 to vector<8x128xf32>
    %206 = arith.addf %205, %204 : vector<8x128xf32>
    %207 = arith.divf %205, %206 : vector<8x128xf32>
    %208 = vector.extract_strided_slice %201 {offsets = [0, 128], sizes = [8, 128], strides = [1, 1]} : vector<8x512xf32> to vector<8x128xf32>
    %209 = arith.negf %208 : vector<8x128xf32>
    %210 = math.exp %209 : vector<8x128xf32>
    %cst_57 = arith.constant 1.000000e+00 : f32
    %211 = vector.broadcast %cst_57 : f32 to vector<8x128xf32>
    %212 = arith.addf %211, %210 : vector<8x128xf32>
    %213 = arith.divf %211, %212 : vector<8x128xf32>
    %214 = vector.extract_strided_slice %201 {offsets = [0, 256], sizes = [8, 128], strides = [1, 1]} : vector<8x512xf32> to vector<8x128xf32>
    %215 = math.tanh %214 : vector<8x128xf32>
    %216 = vector.extract_strided_slice %201 {offsets = [0, 384], sizes = [8, 128], strides = [1, 1]} : vector<8x512xf32> to vector<8x128xf32>
    %217 = arith.negf %216 : vector<8x128xf32>
    %218 = math.exp %217 : vector<8x128xf32>
    %cst_58 = arith.constant 1.000000e+00 : f32
    %219 = vector.broadcast %cst_58 : f32 to vector<8x128xf32>
    %220 = arith.addf %219, %218 : vector<8x128xf32>
    %221 = arith.divf %219, %220 : vector<8x128xf32>
    %222 = arith.mulf %213, %148 : vector<8x128xf32>
    %223 = arith.mulf %207, %215 : vector<8x128xf32>
    %224 = arith.addf %222, %223 : vector<8x128xf32>
    %225 = math.tanh %224 : vector<8x128xf32>
    %226 = arith.mulf %221, %225 : vector<8x128xf32>
    %227 = arith.index_cast %c2_i32 : i32 to index
    %c0_59 = arith.constant 0 : index
    %c0_60 = arith.constant 0 : index
    %228 = vector.load %arg9[%227, %c0_59, %c0_60] : memref<8x8x128xf32, #tpu.memory_space<vmem>>, vector<1x8x128xf32>
    %229 = vector.shape_cast %228 : vector<1x8x128xf32> to vector<8x128xf32>
    %230 = vector.shape_cast %226 : vector<8x128xf32> to vector<1x8x128xf32>
    tpu.vector_store %arg9[%227, %c0_59, %c0_60], %230 {strides = array<i32>} : memref<8x8x128xf32, #tpu.memory_space<vmem>>, vector<1x8x128xf32>,
    %231 = arith.index_cast %c2_i32 : i32 to index
    %c0_61 = arith.constant 0 : index
    %232 = vector.load %arg6[%231, %c0_61] : memref<8x128xf32, #tpu.memory_space<vmem>>, vector<1x128xf32>
    %233 = arith.index_cast %c2_i32 : i32 to index
    %c0_62 = arith.constant 0 : index
    %234 = vector.load %arg7[%233, %c0_62] : memref<8x1xf32, #tpu.memory_space<vmem>>, vector<1x1xf32>
    %235 = vector.broadcast %232 : vector<1x128xf32> to vector<8x128xf32>
    %236 = arith.mulf %226, %235 : vector<8x128xf32>
    %cst_63 = arith.constant dense<0.000000e+00> : vector<8xf32>
    %237 = vector.multi_reduction <add>, %236, %cst_63 [1] : vector<8x128xf32> to vector<8xf32>
    %238 = vector.shape_cast %237 : vector<8xf32> to vector<8x1xf32>
    %239 = vector.broadcast %234 : vector<1x1xf32> to vector<8x1xf32>
    %240 = arith.addf %238, %239 : vector<8x1xf32>
    %241 = arith.index_cast %c2_i32 : i32 to index
    %c0_64 = arith.constant 0 : index
    %c0_65 = arith.constant 0 : index
    %242 = vector.load %arg8[%241, %c0_64, %c0_65] : memref<8x8x1xf32, #tpu.memory_space<vmem>>, vector<1x8x1xf32>
    %243 = vector.shape_cast %242 : vector<1x8x1xf32> to vector<8x1xf32>
    %244 = vector.shape_cast %240 : vector<8x1xf32> to vector<1x8x1xf32>
    tpu.vector_store %arg8[%241, %c0_64, %c0_65], %244 {strides = array<i32>} : memref<8x8x1xf32, #tpu.memory_space<vmem>>, vector<1x8x1xf32>,
    %c3_i32 = arith.constant 3 : i32
    %245 = arith.index_cast %c3_i32 : i32 to index
    %c0_66 = arith.constant 0 : index
    %c0_67 = arith.constant 0 : index
    %246 = vector.load %arg10[%245, %c0_66, %c0_67] : memref<8x8x512xf32, #tpu.memory_space<vmem>>, vector<1x8x512xf32>
    %247 = vector.shape_cast %246 : vector<1x8x512xf32> to vector<8x512xf32>
    %cst_68 = arith.constant dense<0.000000e+00> : vector<8x512xf32>
    %248 = tpu.matmul %198, %11, %cst_68 {dimension_numbers = #tpu.dot_dimension_numbers<[1], [0], [0], [1], [0, 0, 1, 1], [], []>} : vector<8x128xf32>, vector<128x512xf32>, vector<8x512xf32> -> vector<8x512xf32>
    %249 = arith.addf %247, %248 : vector<8x512xf32>
    %250 = vector.extract_strided_slice %249 {offsets = [0, 0], sizes = [8, 128], strides = [1, 1]} : vector<8x512xf32> to vector<8x128xf32>
    %251 = arith.negf %250 : vector<8x128xf32>
    %252 = math.exp %251 : vector<8x128xf32>
    %cst_69 = arith.constant 1.000000e+00 : f32
    %253 = vector.broadcast %cst_69 : f32 to vector<8x128xf32>
    %254 = arith.addf %253, %252 : vector<8x128xf32>
    %255 = arith.divf %253, %254 : vector<8x128xf32>
    %256 = vector.extract_strided_slice %249 {offsets = [0, 128], sizes = [8, 128], strides = [1, 1]} : vector<8x512xf32> to vector<8x128xf32>
    %257 = arith.negf %256 : vector<8x128xf32>
    %258 = math.exp %257 : vector<8x128xf32>
    %cst_70 = arith.constant 1.000000e+00 : f32
    %259 = vector.broadcast %cst_70 : f32 to vector<8x128xf32>
    %260 = arith.addf %259, %258 : vector<8x128xf32>
    %261 = arith.divf %259, %260 : vector<8x128xf32>
    %262 = vector.extract_strided_slice %249 {offsets = [0, 256], sizes = [8, 128], strides = [1, 1]} : vector<8x512xf32> to vector<8x128xf32>
    %263 = math.tanh %262 : vector<8x128xf32>
    %264 = vector.extract_strided_slice %249 {offsets = [0, 384], sizes = [8, 128], strides = [1, 1]} : vector<8x512xf32> to vector<8x128xf32>
    %265 = arith.negf %264 : vector<8x128xf32>
    %266 = math.exp %265 : vector<8x128xf32>
    %cst_71 = arith.constant 1.000000e+00 : f32
    %267 = vector.broadcast %cst_71 : f32 to vector<8x128xf32>
    %268 = arith.addf %267, %266 : vector<8x128xf32>
    %269 = arith.divf %267, %268 : vector<8x128xf32>
    %270 = arith.mulf %261, %196 : vector<8x128xf32>
    %271 = arith.mulf %255, %263 : vector<8x128xf32>
    %272 = arith.addf %270, %271 : vector<8x128xf32>
    %273 = math.tanh %272 : vector<8x128xf32>
    %274 = arith.mulf %269, %273 : vector<8x128xf32>
    %275 = tpu.concatenate %274, %226 in 1 : vector<8x128xf32>, vector<8x128xf32> -> vector<8x256xf32>
    %cst_72 = arith.constant dense<0.000000e+00> : vector<8x512xf32>
    %276 = tpu.matmul %275, %12, %cst_72 {dimension_numbers = #tpu.dot_dimension_numbers<[1], [0], [0], [1], [0, 0, 1, 1], [], []>} : vector<8x256xf32>, vector<256x512xf32>, vector<8x512xf32> -> vector<8x512xf32>
    %277 = arith.addf %276, %15 : vector<8x512xf32>
    %278 = vector.extract_strided_slice %277 {offsets = [0, 0], sizes = [8, 128], strides = [1, 1]} : vector<8x512xf32> to vector<8x128xf32>
    %279 = arith.negf %278 : vector<8x128xf32>
    %280 = math.exp %279 : vector<8x128xf32>
    %cst_73 = arith.constant 1.000000e+00 : f32
    %281 = vector.broadcast %cst_73 : f32 to vector<8x128xf32>
    %282 = arith.addf %281, %280 : vector<8x128xf32>
    %283 = arith.divf %281, %282 : vector<8x128xf32>
    %284 = vector.extract_strided_slice %277 {offsets = [0, 128], sizes = [8, 128], strides = [1, 1]} : vector<8x512xf32> to vector<8x128xf32>
    %285 = arith.negf %284 : vector<8x128xf32>
    %286 = math.exp %285 : vector<8x128xf32>
    %cst_74 = arith.constant 1.000000e+00 : f32
    %287 = vector.broadcast %cst_74 : f32 to vector<8x128xf32>
    %288 = arith.addf %287, %286 : vector<8x128xf32>
    %289 = arith.divf %287, %288 : vector<8x128xf32>
    %290 = vector.extract_strided_slice %277 {offsets = [0, 256], sizes = [8, 128], strides = [1, 1]} : vector<8x512xf32> to vector<8x128xf32>
    %291 = math.tanh %290 : vector<8x128xf32>
    %292 = vector.extract_strided_slice %277 {offsets = [0, 384], sizes = [8, 128], strides = [1, 1]} : vector<8x512xf32> to vector<8x128xf32>
    %293 = arith.negf %292 : vector<8x128xf32>
    %294 = math.exp %293 : vector<8x128xf32>
    %cst_75 = arith.constant 1.000000e+00 : f32
    %295 = vector.broadcast %cst_75 : f32 to vector<8x128xf32>
    %296 = arith.addf %295, %294 : vector<8x128xf32>
    %297 = arith.divf %295, %296 : vector<8x128xf32>
    %298 = arith.mulf %289, %224 : vector<8x128xf32>
    %299 = arith.mulf %283, %291 : vector<8x128xf32>
    %300 = arith.addf %298, %299 : vector<8x128xf32>
    %301 = math.tanh %300 : vector<8x128xf32>
    %302 = arith.mulf %297, %301 : vector<8x128xf32>
    %303 = arith.index_cast %c3_i32 : i32 to index
    %c0_76 = arith.constant 0 : index
    %c0_77 = arith.constant 0 : index
    %304 = vector.load %arg9[%303, %c0_76, %c0_77] : memref<8x8x128xf32, #tpu.memory_space<vmem>>, vector<1x8x128xf32>
    %305 = vector.shape_cast %304 : vector<1x8x128xf32> to vector<8x128xf32>
    %306 = vector.shape_cast %302 : vector<8x128xf32> to vector<1x8x128xf32>
    tpu.vector_store %arg9[%303, %c0_76, %c0_77], %306 {strides = array<i32>} : memref<8x8x128xf32, #tpu.memory_space<vmem>>, vector<1x8x128xf32>,
    %307 = arith.index_cast %c3_i32 : i32 to index
    %c0_78 = arith.constant 0 : index
    %308 = vector.load %arg6[%307, %c0_78] : memref<8x128xf32, #tpu.memory_space<vmem>>, vector<1x128xf32>
    %309 = arith.index_cast %c3_i32 : i32 to index
    %c0_79 = arith.constant 0 : index
    %310 = vector.load %arg7[%309, %c0_79] : memref<8x1xf32, #tpu.memory_space<vmem>>, vector<1x1xf32>
    %311 = vector.broadcast %308 : vector<1x128xf32> to vector<8x128xf32>
    %312 = arith.mulf %302, %311 : vector<8x128xf32>
    %cst_80 = arith.constant dense<0.000000e+00> : vector<8xf32>
    %313 = vector.multi_reduction <add>, %312, %cst_80 [1] : vector<8x128xf32> to vector<8xf32>
    %314 = vector.shape_cast %313 : vector<8xf32> to vector<8x1xf32>
    %315 = vector.broadcast %310 : vector<1x1xf32> to vector<8x1xf32>
    %316 = arith.addf %314, %315 : vector<8x1xf32>
    %317 = arith.index_cast %c3_i32 : i32 to index
    %c0_81 = arith.constant 0 : index
    %c0_82 = arith.constant 0 : index
    %318 = vector.load %arg8[%317, %c0_81, %c0_82] : memref<8x8x1xf32, #tpu.memory_space<vmem>>, vector<1x8x1xf32>
    %319 = vector.shape_cast %318 : vector<1x8x1xf32> to vector<8x1xf32>
    %320 = vector.shape_cast %316 : vector<8x1xf32> to vector<1x8x1xf32>
    tpu.vector_store %arg8[%317, %c0_81, %c0_82], %320 {strides = array<i32>} : memref<8x8x1xf32, #tpu.memory_space<vmem>>, vector<1x8x1xf32>,
    %c4_i32 = arith.constant 4 : i32
    %321 = arith.index_cast %c4_i32 : i32 to index
    %c0_83 = arith.constant 0 : index
    %c0_84 = arith.constant 0 : index
    %322 = vector.load %arg10[%321, %c0_83, %c0_84] : memref<8x8x512xf32, #tpu.memory_space<vmem>>, vector<1x8x512xf32>
    %323 = vector.shape_cast %322 : vector<1x8x512xf32> to vector<8x512xf32>
    %cst_85 = arith.constant dense<0.000000e+00> : vector<8x512xf32>
    %324 = tpu.matmul %274, %11, %cst_85 {dimension_numbers = #tpu.dot_dimension_numbers<[1], [0], [0], [1], [0, 0, 1, 1], [], []>} : vector<8x128xf32>, vector<128x512xf32>, vector<8x512xf32> -> vector<8x512xf32>
    %325 = arith.addf %323, %324 : vector<8x512xf32>
    %326 = vector.extract_strided_slice %325 {offsets = [0, 0], sizes = [8, 128], strides = [1, 1]} : vector<8x512xf32> to vector<8x128xf32>
    %327 = arith.negf %326 : vector<8x128xf32>
    %328 = math.exp %327 : vector<8x128xf32>
    %cst_86 = arith.constant 1.000000e+00 : f32
    %329 = vector.broadcast %cst_86 : f32 to vector<8x128xf32>
    %330 = arith.addf %329, %328 : vector<8x128xf32>
    %331 = arith.divf %329, %330 : vector<8x128xf32>
    %332 = vector.extract_strided_slice %325 {offsets = [0, 128], sizes = [8, 128], strides = [1, 1]} : vector<8x512xf32> to vector<8x128xf32>
    %333 = arith.negf %332 : vector<8x128xf32>
    %334 = math.exp %333 : vector<8x128xf32>
    %cst_87 = arith.constant 1.000000e+00 : f32
    %335 = vector.broadcast %cst_87 : f32 to vector<8x128xf32>
    %336 = arith.addf %335, %334 : vector<8x128xf32>
    %337 = arith.divf %335, %336 : vector<8x128xf32>
    %338 = vector.extract_strided_slice %325 {offsets = [0, 256], sizes = [8, 128], strides = [1, 1]} : vector<8x512xf32> to vector<8x128xf32>
    %339 = math.tanh %338 : vector<8x128xf32>
    %340 = vector.extract_strided_slice %325 {offsets = [0, 384], sizes = [8, 128], strides = [1, 1]} : vector<8x512xf32> to vector<8x128xf32>
    %341 = arith.negf %340 : vector<8x128xf32>
    %342 = math.exp %341 : vector<8x128xf32>
    %cst_88 = arith.constant 1.000000e+00 : f32
    %343 = vector.broadcast %cst_88 : f32 to vector<8x128xf32>
    %344 = arith.addf %343, %342 : vector<8x128xf32>
    %345 = arith.divf %343, %344 : vector<8x128xf32>
    %346 = arith.mulf %337, %272 : vector<8x128xf32>
    %347 = arith.mulf %331, %339 : vector<8x128xf32>
    %348 = arith.addf %346, %347 : vector<8x128xf32>
    %349 = math.tanh %348 : vector<8x128xf32>
    %350 = arith.mulf %345, %349 : vector<8x128xf32>
    %351 = tpu.concatenate %350, %302 in 1 : vector<8x128xf32>, vector<8x128xf32> -> vector<8x256xf32>
    %cst_89 = arith.constant dense<0.000000e+00> : vector<8x512xf32>
    %352 = tpu.matmul %351, %12, %cst_89 {dimension_numbers = #tpu.dot_dimension_numbers<[1], [0], [0], [1], [0, 0, 1, 1], [], []>} : vector<8x256xf32>, vector<256x512xf32>, vector<8x512xf32> -> vector<8x512xf32>
    %353 = arith.addf %352, %15 : vector<8x512xf32>
    %354 = vector.extract_strided_slice %353 {offsets = [0, 0], sizes = [8, 128], strides = [1, 1]} : vector<8x512xf32> to vector<8x128xf32>
    %355 = arith.negf %354 : vector<8x128xf32>
    %356 = math.exp %355 : vector<8x128xf32>
    %cst_90 = arith.constant 1.000000e+00 : f32
    %357 = vector.broadcast %cst_90 : f32 to vector<8x128xf32>
    %358 = arith.addf %357, %356 : vector<8x128xf32>
    %359 = arith.divf %357, %358 : vector<8x128xf32>
    %360 = vector.extract_strided_slice %353 {offsets = [0, 128], sizes = [8, 128], strides = [1, 1]} : vector<8x512xf32> to vector<8x128xf32>
    %361 = arith.negf %360 : vector<8x128xf32>
    %362 = math.exp %361 : vector<8x128xf32>
    %cst_91 = arith.constant 1.000000e+00 : f32
    %363 = vector.broadcast %cst_91 : f32 to vector<8x128xf32>
    %364 = arith.addf %363, %362 : vector<8x128xf32>
    %365 = arith.divf %363, %364 : vector<8x128xf32>
    %366 = vector.extract_strided_slice %353 {offsets = [0, 256], sizes = [8, 128], strides = [1, 1]} : vector<8x512xf32> to vector<8x128xf32>
    %367 = math.tanh %366 : vector<8x128xf32>
    %368 = vector.extract_strided_slice %353 {offsets = [0, 384], sizes = [8, 128], strides = [1, 1]} : vector<8x512xf32> to vector<8x128xf32>
    %369 = arith.negf %368 : vector<8x128xf32>
    %370 = math.exp %369 : vector<8x128xf32>
    %cst_92 = arith.constant 1.000000e+00 : f32
    %371 = vector.broadcast %cst_92 : f32 to vector<8x128xf32>
    %372 = arith.addf %371, %370 : vector<8x128xf32>
    %373 = arith.divf %371, %372 : vector<8x128xf32>
    %374 = arith.mulf %365, %300 : vector<8x128xf32>
    %375 = arith.mulf %359, %367 : vector<8x128xf32>
    %376 = arith.addf %374, %375 : vector<8x128xf32>
    %377 = math.tanh %376 : vector<8x128xf32>
    %378 = arith.mulf %373, %377 : vector<8x128xf32>
    %379 = arith.index_cast %c4_i32 : i32 to index
    %c0_93 = arith.constant 0 : index
    %c0_94 = arith.constant 0 : index
    %380 = vector.load %arg9[%379, %c0_93, %c0_94] : memref<8x8x128xf32, #tpu.memory_space<vmem>>, vector<1x8x128xf32>
    %381 = vector.shape_cast %380 : vector<1x8x128xf32> to vector<8x128xf32>
    %382 = vector.shape_cast %378 : vector<8x128xf32> to vector<1x8x128xf32>
    tpu.vector_store %arg9[%379, %c0_93, %c0_94], %382 {strides = array<i32>} : memref<8x8x128xf32, #tpu.memory_space<vmem>>, vector<1x8x128xf32>,
    %383 = arith.index_cast %c4_i32 : i32 to index
    %c0_95 = arith.constant 0 : index
    %384 = vector.load %arg6[%383, %c0_95] : memref<8x128xf32, #tpu.memory_space<vmem>>, vector<1x128xf32>
    %385 = arith.index_cast %c4_i32 : i32 to index
    %c0_96 = arith.constant 0 : index
    %386 = vector.load %arg7[%385, %c0_96] : memref<8x1xf32, #tpu.memory_space<vmem>>, vector<1x1xf32>
    %387 = vector.broadcast %384 : vector<1x128xf32> to vector<8x128xf32>
    %388 = arith.mulf %378, %387 : vector<8x128xf32>
    %cst_97 = arith.constant dense<0.000000e+00> : vector<8xf32>
    %389 = vector.multi_reduction <add>, %388, %cst_97 [1] : vector<8x128xf32> to vector<8xf32>
    %390 = vector.shape_cast %389 : vector<8xf32> to vector<8x1xf32>
    %391 = vector.broadcast %386 : vector<1x1xf32> to vector<8x1xf32>
    %392 = arith.addf %390, %391 : vector<8x1xf32>
    %393 = arith.index_cast %c4_i32 : i32 to index
    %c0_98 = arith.constant 0 : index
    %c0_99 = arith.constant 0 : index
    %394 = vector.load %arg8[%393, %c0_98, %c0_99] : memref<8x8x1xf32, #tpu.memory_space<vmem>>, vector<1x8x1xf32>
    %395 = vector.shape_cast %394 : vector<1x8x1xf32> to vector<8x1xf32>
    %396 = vector.shape_cast %392 : vector<8x1xf32> to vector<1x8x1xf32>
    tpu.vector_store %arg8[%393, %c0_98, %c0_99], %396 {strides = array<i32>} : memref<8x8x1xf32, #tpu.memory_space<vmem>>, vector<1x8x1xf32>,
    %c5_i32 = arith.constant 5 : i32
    %397 = arith.index_cast %c5_i32 : i32 to index
    %c0_100 = arith.constant 0 : index
    %c0_101 = arith.constant 0 : index
    %398 = vector.load %arg10[%397, %c0_100, %c0_101] : memref<8x8x512xf32, #tpu.memory_space<vmem>>, vector<1x8x512xf32>
    %399 = vector.shape_cast %398 : vector<1x8x512xf32> to vector<8x512xf32>
    %cst_102 = arith.constant dense<0.000000e+00> : vector<8x512xf32>
    %400 = tpu.matmul %350, %11, %cst_102 {dimension_numbers = #tpu.dot_dimension_numbers<[1], [0], [0], [1], [0, 0, 1, 1], [], []>} : vector<8x128xf32>, vector<128x512xf32>, vector<8x512xf32> -> vector<8x512xf32>
    %401 = arith.addf %399, %400 : vector<8x512xf32>
    %402 = vector.extract_strided_slice %401 {offsets = [0, 0], sizes = [8, 128], strides = [1, 1]} : vector<8x512xf32> to vector<8x128xf32>
    %403 = arith.negf %402 : vector<8x128xf32>
    %404 = math.exp %403 : vector<8x128xf32>
    %cst_103 = arith.constant 1.000000e+00 : f32
    %405 = vector.broadcast %cst_103 : f32 to vector<8x128xf32>
    %406 = arith.addf %405, %404 : vector<8x128xf32>
    %407 = arith.divf %405, %406 : vector<8x128xf32>
    %408 = vector.extract_strided_slice %401 {offsets = [0, 128], sizes = [8, 128], strides = [1, 1]} : vector<8x512xf32> to vector<8x128xf32>
    %409 = arith.negf %408 : vector<8x128xf32>
    %410 = math.exp %409 : vector<8x128xf32>
    %cst_104 = arith.constant 1.000000e+00 : f32
    %411 = vector.broadcast %cst_104 : f32 to vector<8x128xf32>
    %412 = arith.addf %411, %410 : vector<8x128xf32>
    %413 = arith.divf %411, %412 : vector<8x128xf32>
    %414 = vector.extract_strided_slice %401 {offsets = [0, 256], sizes = [8, 128], strides = [1, 1]} : vector<8x512xf32> to vector<8x128xf32>
    %415 = math.tanh %414 : vector<8x128xf32>
    %416 = vector.extract_strided_slice %401 {offsets = [0, 384], sizes = [8, 128], strides = [1, 1]} : vector<8x512xf32> to vector<8x128xf32>
    %417 = arith.negf %416 : vector<8x128xf32>
    %418 = math.exp %417 : vector<8x128xf32>
    %cst_105 = arith.constant 1.000000e+00 : f32
    %419 = vector.broadcast %cst_105 : f32 to vector<8x128xf32>
    %420 = arith.addf %419, %418 : vector<8x128xf32>
    %421 = arith.divf %419, %420 : vector<8x128xf32>
    %422 = arith.mulf %413, %348 : vector<8x128xf32>
    %423 = arith.mulf %407, %415 : vector<8x128xf32>
    %424 = arith.addf %422, %423 : vector<8x128xf32>
    %425 = math.tanh %424 : vector<8x128xf32>
    %426 = arith.mulf %421, %425 : vector<8x128xf32>
    %427 = tpu.concatenate %426, %378 in 1 : vector<8x128xf32>, vector<8x128xf32> -> vector<8x256xf32>
    %cst_106 = arith.constant dense<0.000000e+00> : vector<8x512xf32>
    %428 = tpu.matmul %427, %12, %cst_106 {dimension_numbers = #tpu.dot_dimension_numbers<[1], [0], [0], [1], [0, 0, 1, 1], [], []>} : vector<8x256xf32>, vector<256x512xf32>, vector<8x512xf32> -> vector<8x512xf32>
    %429 = arith.addf %428, %15 : vector<8x512xf32>
    %430 = vector.extract_strided_slice %429 {offsets = [0, 0], sizes = [8, 128], strides = [1, 1]} : vector<8x512xf32> to vector<8x128xf32>
    %431 = arith.negf %430 : vector<8x128xf32>
    %432 = math.exp %431 : vector<8x128xf32>
    %cst_107 = arith.constant 1.000000e+00 : f32
    %433 = vector.broadcast %cst_107 : f32 to vector<8x128xf32>
    %434 = arith.addf %433, %432 : vector<8x128xf32>
    %435 = arith.divf %433, %434 : vector<8x128xf32>
    %436 = vector.extract_strided_slice %429 {offsets = [0, 128], sizes = [8, 128], strides = [1, 1]} : vector<8x512xf32> to vector<8x128xf32>
    %437 = arith.negf %436 : vector<8x128xf32>
    %438 = math.exp %437 : vector<8x128xf32>
    %cst_108 = arith.constant 1.000000e+00 : f32
    %439 = vector.broadcast %cst_108 : f32 to vector<8x128xf32>
    %440 = arith.addf %439, %438 : vector<8x128xf32>
    %441 = arith.divf %439, %440 : vector<8x128xf32>
    %442 = vector.extract_strided_slice %429 {offsets = [0, 256], sizes = [8, 128], strides = [1, 1]} : vector<8x512xf32> to vector<8x128xf32>
    %443 = math.tanh %442 : vector<8x128xf32>
    %444 = vector.extract_strided_slice %429 {offsets = [0, 384], sizes = [8, 128], strides = [1, 1]} : vector<8x512xf32> to vector<8x128xf32>
    %445 = arith.negf %444 : vector<8x128xf32>
    %446 = math.exp %445 : vector<8x128xf32>
    %cst_109 = arith.constant 1.000000e+00 : f32
    %447 = vector.broadcast %cst_109 : f32 to vector<8x128xf32>
    %448 = arith.addf %447, %446 : vector<8x128xf32>
    %449 = arith.divf %447, %448 : vector<8x128xf32>
    %450 = arith.mulf %441, %376 : vector<8x128xf32>
    %451 = arith.mulf %435, %443 : vector<8x128xf32>
    %452 = arith.addf %450, %451 : vector<8x128xf32>
    %453 = math.tanh %452 : vector<8x128xf32>
    %454 = arith.mulf %449, %453 : vector<8x128xf32>
    %455 = arith.index_cast %c5_i32 : i32 to index
    %c0_110 = arith.constant 0 : index
    %c0_111 = arith.constant 0 : index
    %456 = vector.load %arg9[%455, %c0_110, %c0_111] : memref<8x8x128xf32, #tpu.memory_space<vmem>>, vector<1x8x128xf32>
    %457 = vector.shape_cast %456 : vector<1x8x128xf32> to vector<8x128xf32>
    %458 = vector.shape_cast %454 : vector<8x128xf32> to vector<1x8x128xf32>
    tpu.vector_store %arg9[%455, %c0_110, %c0_111], %458 {strides = array<i32>} : memref<8x8x128xf32, #tpu.memory_space<vmem>>, vector<1x8x128xf32>,
    %459 = arith.index_cast %c5_i32 : i32 to index
    %c0_112 = arith.constant 0 : index
    %460 = vector.load %arg6[%459, %c0_112] : memref<8x128xf32, #tpu.memory_space<vmem>>, vector<1x128xf32>
    %461 = arith.index_cast %c5_i32 : i32 to index
    %c0_113 = arith.constant 0 : index
    %462 = vector.load %arg7[%461, %c0_113] : memref<8x1xf32, #tpu.memory_space<vmem>>, vector<1x1xf32>
    %463 = vector.broadcast %460 : vector<1x128xf32> to vector<8x128xf32>
    %464 = arith.mulf %454, %463 : vector<8x128xf32>
    %cst_114 = arith.constant dense<0.000000e+00> : vector<8xf32>
    %465 = vector.multi_reduction <add>, %464, %cst_114 [1] : vector<8x128xf32> to vector<8xf32>
    %466 = vector.shape_cast %465 : vector<8xf32> to vector<8x1xf32>
    %467 = vector.broadcast %462 : vector<1x1xf32> to vector<8x1xf32>
    %468 = arith.addf %466, %467 : vector<8x1xf32>
    %469 = arith.index_cast %c5_i32 : i32 to index
    %c0_115 = arith.constant 0 : index
    %c0_116 = arith.constant 0 : index
    %470 = vector.load %arg8[%469, %c0_115, %c0_116] : memref<8x8x1xf32, #tpu.memory_space<vmem>>, vector<1x8x1xf32>
    %471 = vector.shape_cast %470 : vector<1x8x1xf32> to vector<8x1xf32>
    %472 = vector.shape_cast %468 : vector<8x1xf32> to vector<1x8x1xf32>
    tpu.vector_store %arg8[%469, %c0_115, %c0_116], %472 {strides = array<i32>} : memref<8x8x1xf32, #tpu.memory_space<vmem>>, vector<1x8x1xf32>,
    %c6_i32 = arith.constant 6 : i32
    %473 = arith.index_cast %c6_i32 : i32 to index
    %c0_117 = arith.constant 0 : index
    %c0_118 = arith.constant 0 : index
    %474 = vector.load %arg10[%473, %c0_117, %c0_118] : memref<8x8x512xf32, #tpu.memory_space<vmem>>, vector<1x8x512xf32>
    %475 = vector.shape_cast %474 : vector<1x8x512xf32> to vector<8x512xf32>
    %cst_119 = arith.constant dense<0.000000e+00> : vector<8x512xf32>
    %476 = tpu.matmul %426, %11, %cst_119 {dimension_numbers = #tpu.dot_dimension_numbers<[1], [0], [0], [1], [0, 0, 1, 1], [], []>} : vector<8x128xf32>, vector<128x512xf32>, vector<8x512xf32> -> vector<8x512xf32>
    %477 = arith.addf %475, %476 : vector<8x512xf32>
    %478 = vector.extract_strided_slice %477 {offsets = [0, 0], sizes = [8, 128], strides = [1, 1]} : vector<8x512xf32> to vector<8x128xf32>
    %479 = arith.negf %478 : vector<8x128xf32>
    %480 = math.exp %479 : vector<8x128xf32>
    %cst_120 = arith.constant 1.000000e+00 : f32
    %481 = vector.broadcast %cst_120 : f32 to vector<8x128xf32>
    %482 = arith.addf %481, %480 : vector<8x128xf32>
    %483 = arith.divf %481, %482 : vector<8x128xf32>
    %484 = vector.extract_strided_slice %477 {offsets = [0, 128], sizes = [8, 128], strides = [1, 1]} : vector<8x512xf32> to vector<8x128xf32>
    %485 = arith.negf %484 : vector<8x128xf32>
    %486 = math.exp %485 : vector<8x128xf32>
    %cst_121 = arith.constant 1.000000e+00 : f32
    %487 = vector.broadcast %cst_121 : f32 to vector<8x128xf32>
    %488 = arith.addf %487, %486 : vector<8x128xf32>
    %489 = arith.divf %487, %488 : vector<8x128xf32>
    %490 = vector.extract_strided_slice %477 {offsets = [0, 256], sizes = [8, 128], strides = [1, 1]} : vector<8x512xf32> to vector<8x128xf32>
    %491 = math.tanh %490 : vector<8x128xf32>
    %492 = vector.extract_strided_slice %477 {offsets = [0, 384], sizes = [8, 128], strides = [1, 1]} : vector<8x512xf32> to vector<8x128xf32>
    %493 = arith.negf %492 : vector<8x128xf32>
    %494 = math.exp %493 : vector<8x128xf32>
    %cst_122 = arith.constant 1.000000e+00 : f32
    %495 = vector.broadcast %cst_122 : f32 to vector<8x128xf32>
    %496 = arith.addf %495, %494 : vector<8x128xf32>
    %497 = arith.divf %495, %496 : vector<8x128xf32>
    %498 = arith.mulf %489, %424 : vector<8x128xf32>
    %499 = arith.mulf %483, %491 : vector<8x128xf32>
    %500 = arith.addf %498, %499 : vector<8x128xf32>
    %501 = math.tanh %500 : vector<8x128xf32>
    %502 = arith.mulf %497, %501 : vector<8x128xf32>
    %503 = tpu.concatenate %502, %454 in 1 : vector<8x128xf32>, vector<8x128xf32> -> vector<8x256xf32>
    %cst_123 = arith.constant dense<0.000000e+00> : vector<8x512xf32>
    %504 = tpu.matmul %503, %12, %cst_123 {dimension_numbers = #tpu.dot_dimension_numbers<[1], [0], [0], [1], [0, 0, 1, 1], [], []>} : vector<8x256xf32>, vector<256x512xf32>, vector<8x512xf32> -> vector<8x512xf32>
    %505 = arith.addf %504, %15 : vector<8x512xf32>
    %506 = vector.extract_strided_slice %505 {offsets = [0, 0], sizes = [8, 128], strides = [1, 1]} : vector<8x512xf32> to vector<8x128xf32>
    %507 = arith.negf %506 : vector<8x128xf32>
    %508 = math.exp %507 : vector<8x128xf32>
    %cst_124 = arith.constant 1.000000e+00 : f32
    %509 = vector.broadcast %cst_124 : f32 to vector<8x128xf32>
    %510 = arith.addf %509, %508 : vector<8x128xf32>
    %511 = arith.divf %509, %510 : vector<8x128xf32>
    %512 = vector.extract_strided_slice %505 {offsets = [0, 128], sizes = [8, 128], strides = [1, 1]} : vector<8x512xf32> to vector<8x128xf32>
    %513 = arith.negf %512 : vector<8x128xf32>
    %514 = math.exp %513 : vector<8x128xf32>
    %cst_125 = arith.constant 1.000000e+00 : f32
    %515 = vector.broadcast %cst_125 : f32 to vector<8x128xf32>
    %516 = arith.addf %515, %514 : vector<8x128xf32>
    %517 = arith.divf %515, %516 : vector<8x128xf32>
    %518 = vector.extract_strided_slice %505 {offsets = [0, 256], sizes = [8, 128], strides = [1, 1]} : vector<8x512xf32> to vector<8x128xf32>
    %519 = math.tanh %518 : vector<8x128xf32>
    %520 = vector.extract_strided_slice %505 {offsets = [0, 384], sizes = [8, 128], strides = [1, 1]} : vector<8x512xf32> to vector<8x128xf32>
    %521 = arith.negf %520 : vector<8x128xf32>
    %522 = math.exp %521 : vector<8x128xf32>
    %cst_126 = arith.constant 1.000000e+00 : f32
    %523 = vector.broadcast %cst_126 : f32 to vector<8x128xf32>
    %524 = arith.addf %523, %522 : vector<8x128xf32>
    %525 = arith.divf %523, %524 : vector<8x128xf32>
    %526 = arith.mulf %517, %452 : vector<8x128xf32>
    %527 = arith.mulf %511, %519 : vector<8x128xf32>
    %528 = arith.addf %526, %527 : vector<8x128xf32>
    %529 = math.tanh %528 : vector<8x128xf32>
    %530 = arith.mulf %525, %529 : vector<8x128xf32>
    %531 = arith.index_cast %c6_i32 : i32 to index
    %c0_127 = arith.constant 0 : index
    %c0_128 = arith.constant 0 : index
    %532 = vector.load %arg9[%531, %c0_127, %c0_128] : memref<8x8x128xf32, #tpu.memory_space<vmem>>, vector<1x8x128xf32>
    %533 = vector.shape_cast %532 : vector<1x8x128xf32> to vector<8x128xf32>
    %534 = vector.shape_cast %530 : vector<8x128xf32> to vector<1x8x128xf32>
    tpu.vector_store %arg9[%531, %c0_127, %c0_128], %534 {strides = array<i32>} : memref<8x8x128xf32, #tpu.memory_space<vmem>>, vector<1x8x128xf32>,
    %535 = arith.index_cast %c6_i32 : i32 to index
    %c0_129 = arith.constant 0 : index
    %536 = vector.load %arg6[%535, %c0_129] : memref<8x128xf32, #tpu.memory_space<vmem>>, vector<1x128xf32>
    %537 = arith.index_cast %c6_i32 : i32 to index
    %c0_130 = arith.constant 0 : index
    %538 = vector.load %arg7[%537, %c0_130] : memref<8x1xf32, #tpu.memory_space<vmem>>, vector<1x1xf32>
    %539 = vector.broadcast %536 : vector<1x128xf32> to vector<8x128xf32>
    %540 = arith.mulf %530, %539 : vector<8x128xf32>
    %cst_131 = arith.constant dense<0.000000e+00> : vector<8xf32>
    %541 = vector.multi_reduction <add>, %540, %cst_131 [1] : vector<8x128xf32> to vector<8xf32>
    %542 = vector.shape_cast %541 : vector<8xf32> to vector<8x1xf32>
    %543 = vector.broadcast %538 : vector<1x1xf32> to vector<8x1xf32>
    %544 = arith.addf %542, %543 : vector<8x1xf32>
    %545 = arith.index_cast %c6_i32 : i32 to index
    %c0_132 = arith.constant 0 : index
    %c0_133 = arith.constant 0 : index
    %546 = vector.load %arg8[%545, %c0_132, %c0_133] : memref<8x8x1xf32, #tpu.memory_space<vmem>>, vector<1x8x1xf32>
    %547 = vector.shape_cast %546 : vector<1x8x1xf32> to vector<8x1xf32>
    %548 = vector.shape_cast %544 : vector<8x1xf32> to vector<1x8x1xf32>
    tpu.vector_store %arg8[%545, %c0_132, %c0_133], %548 {strides = array<i32>} : memref<8x8x1xf32, #tpu.memory_space<vmem>>, vector<1x8x1xf32>,
    %c7_i32 = arith.constant 7 : i32
    %549 = arith.index_cast %c7_i32 : i32 to index
    %c0_134 = arith.constant 0 : index
    %c0_135 = arith.constant 0 : index
    %550 = vector.load %arg10[%549, %c0_134, %c0_135] : memref<8x8x512xf32, #tpu.memory_space<vmem>>, vector<1x8x512xf32>
    %551 = vector.shape_cast %550 : vector<1x8x512xf32> to vector<8x512xf32>
    %cst_136 = arith.constant dense<0.000000e+00> : vector<8x512xf32>
    %552 = tpu.matmul %502, %11, %cst_136 {dimension_numbers = #tpu.dot_dimension_numbers<[1], [0], [0], [1], [0, 0, 1, 1], [], []>} : vector<8x128xf32>, vector<128x512xf32>, vector<8x512xf32> -> vector<8x512xf32>
    %553 = arith.addf %551, %552 : vector<8x512xf32>
    %554 = vector.extract_strided_slice %553 {offsets = [0, 0], sizes = [8, 128], strides = [1, 1]} : vector<8x512xf32> to vector<8x128xf32>
    %555 = arith.negf %554 : vector<8x128xf32>
    %556 = math.exp %555 : vector<8x128xf32>
    %cst_137 = arith.constant 1.000000e+00 : f32
    %557 = vector.broadcast %cst_137 : f32 to vector<8x128xf32>
    %558 = arith.addf %557, %556 : vector<8x128xf32>
    %559 = arith.divf %557, %558 : vector<8x128xf32>
    %560 = vector.extract_strided_slice %553 {offsets = [0, 128], sizes = [8, 128], strides = [1, 1]} : vector<8x512xf32> to vector<8x128xf32>
    %561 = arith.negf %560 : vector<8x128xf32>
    %562 = math.exp %561 : vector<8x128xf32>
    %cst_138 = arith.constant 1.000000e+00 : f32
    %563 = vector.broadcast %cst_138 : f32 to vector<8x128xf32>
    %564 = arith.addf %563, %562 : vector<8x128xf32>
    %565 = arith.divf %563, %564 : vector<8x128xf32>
    %566 = vector.extract_strided_slice %553 {offsets = [0, 256], sizes = [8, 128], strides = [1, 1]} : vector<8x512xf32> to vector<8x128xf32>
    %567 = math.tanh %566 : vector<8x128xf32>
    %568 = vector.extract_strided_slice %553 {offsets = [0, 384], sizes = [8, 128], strides = [1, 1]} : vector<8x512xf32> to vector<8x128xf32>
    %569 = arith.negf %568 : vector<8x128xf32>
    %570 = math.exp %569 : vector<8x128xf32>
    %cst_139 = arith.constant 1.000000e+00 : f32
    %571 = vector.broadcast %cst_139 : f32 to vector<8x128xf32>
    %572 = arith.addf %571, %570 : vector<8x128xf32>
    %573 = arith.divf %571, %572 : vector<8x128xf32>
    %574 = arith.mulf %565, %500 : vector<8x128xf32>
    %575 = arith.mulf %559, %567 : vector<8x128xf32>
    %576 = arith.addf %574, %575 : vector<8x128xf32>
    %577 = math.tanh %576 : vector<8x128xf32>
    %578 = arith.mulf %573, %577 : vector<8x128xf32>
    %579 = tpu.concatenate %578, %530 in 1 : vector<8x128xf32>, vector<8x128xf32> -> vector<8x256xf32>
    %cst_140 = arith.constant dense<0.000000e+00> : vector<8x512xf32>
    %580 = tpu.matmul %579, %12, %cst_140 {dimension_numbers = #tpu.dot_dimension_numbers<[1], [0], [0], [1], [0, 0, 1, 1], [], []>} : vector<8x256xf32>, vector<256x512xf32>, vector<8x512xf32> -> vector<8x512xf32>
    %581 = arith.addf %580, %15 : vector<8x512xf32>
    %582 = vector.extract_strided_slice %581 {offsets = [0, 0], sizes = [8, 128], strides = [1, 1]} : vector<8x512xf32> to vector<8x128xf32>
    %583 = arith.negf %582 : vector<8x128xf32>
    %584 = math.exp %583 : vector<8x128xf32>
    %cst_141 = arith.constant 1.000000e+00 : f32
    %585 = vector.broadcast %cst_141 : f32 to vector<8x128xf32>
    %586 = arith.addf %585, %584 : vector<8x128xf32>
    %587 = arith.divf %585, %586 : vector<8x128xf32>
    %588 = vector.extract_strided_slice %581 {offsets = [0, 128], sizes = [8, 128], strides = [1, 1]} : vector<8x512xf32> to vector<8x128xf32>
    %589 = arith.negf %588 : vector<8x128xf32>
    %590 = math.exp %589 : vector<8x128xf32>
    %cst_142 = arith.constant 1.000000e+00 : f32
    %591 = vector.broadcast %cst_142 : f32 to vector<8x128xf32>
    %592 = arith.addf %591, %590 : vector<8x128xf32>
    %593 = arith.divf %591, %592 : vector<8x128xf32>
    %594 = vector.extract_strided_slice %581 {offsets = [0, 256], sizes = [8, 128], strides = [1, 1]} : vector<8x512xf32> to vector<8x128xf32>
    %595 = math.tanh %594 : vector<8x128xf32>
    %596 = vector.extract_strided_slice %581 {offsets = [0, 384], sizes = [8, 128], strides = [1, 1]} : vector<8x512xf32> to vector<8x128xf32>
    %597 = arith.negf %596 : vector<8x128xf32>
    %598 = math.exp %597 : vector<8x128xf32>
    %cst_143 = arith.constant 1.000000e+00 : f32
    %599 = vector.broadcast %cst_143 : f32 to vector<8x128xf32>
    %600 = arith.addf %599, %598 : vector<8x128xf32>
    %601 = arith.divf %599, %600 : vector<8x128xf32>
    %602 = arith.mulf %593, %528 : vector<8x128xf32>
    %603 = arith.mulf %587, %595 : vector<8x128xf32>
    %604 = arith.addf %602, %603 : vector<8x128xf32>
    %605 = math.tanh %604 : vector<8x128xf32>
    %606 = arith.mulf %601, %605 : vector<8x128xf32>
    %607 = arith.index_cast %c7_i32 : i32 to index
    %c0_144 = arith.constant 0 : index
    %c0_145 = arith.constant 0 : index
    %608 = vector.load %arg9[%607, %c0_144, %c0_145] : memref<8x8x128xf32, #tpu.memory_space<vmem>>, vector<1x8x128xf32>
    %609 = vector.shape_cast %608 : vector<1x8x128xf32> to vector<8x128xf32>
    %610 = vector.shape_cast %606 : vector<8x128xf32> to vector<1x8x128xf32>
    tpu.vector_store %arg9[%607, %c0_144, %c0_145], %610 {strides = array<i32>} : memref<8x8x128xf32, #tpu.memory_space<vmem>>, vector<1x8x128xf32>,
    %611 = arith.index_cast %c7_i32 : i32 to index
    %c0_146 = arith.constant 0 : index
    %612 = vector.load %arg6[%611, %c0_146] : memref<8x128xf32, #tpu.memory_space<vmem>>, vector<1x128xf32>
    %613 = arith.index_cast %c7_i32 : i32 to index
    %c0_147 = arith.constant 0 : index
    %614 = vector.load %arg7[%613, %c0_147] : memref<8x1xf32, #tpu.memory_space<vmem>>, vector<1x1xf32>
    %615 = vector.broadcast %612 : vector<1x128xf32> to vector<8x128xf32>
    %616 = arith.mulf %606, %615 : vector<8x128xf32>
    %cst_148 = arith.constant dense<0.000000e+00> : vector<8xf32>
    %617 = vector.multi_reduction <add>, %616, %cst_148 [1] : vector<8x128xf32> to vector<8xf32>
    %618 = vector.shape_cast %617 : vector<8xf32> to vector<8x1xf32>
    %619 = vector.broadcast %614 : vector<1x1xf32> to vector<8x1xf32>
    %620 = arith.addf %618, %619 : vector<8x1xf32>
    %621 = arith.index_cast %c7_i32 : i32 to index
    %c0_149 = arith.constant 0 : index
    %c0_150 = arith.constant 0 : index
    %622 = vector.load %arg8[%621, %c0_149, %c0_150] : memref<8x8x1xf32, #tpu.memory_space<vmem>>, vector<1x8x1xf32>
    %623 = vector.shape_cast %622 : vector<1x8x1xf32> to vector<8x1xf32>
    %624 = vector.shape_cast %620 : vector<8x1xf32> to vector<1x8x1xf32>
    tpu.vector_store %arg8[%621, %c0_149, %c0_150], %624 {strides = array<i32>} : memref<8x8x1xf32, #tpu.memory_space<vmem>>, vector<1x8x1xf32>,
    %c8_i32 = arith.constant 8 : i32
    return
  }
}

</mosaic_0001>

<llo_original>
// kernel: wgan_discriminator_forward.1
$region0: #{wgan_discriminator_forward.1}
  #allocation0 [shape = 'u32[]', space=smem, size = 0x4, offset = 0x4, fixed_abs, tag = 'smem constant byte address 0x4 - core index']
  #allocation1 [shape = 'u32[144,128]{1,0:T(1,128)}', space=vmem, size = 0x12000, scoped, tag = 'internal scratch']
  #allocation2 [shape = 'f32[8,8,512]{2,1,0:T(8,128)}', space=vmem, size = 0x20000, scoped, tag = 'scratch operand']
  %s0 = inlined_call_operand.vmem [shape: f32[8,8,1], index: 0, kind: input, shape index: {}]
  %s1 = inlined_call_operand.vmem [shape: f32[1,512], index: 1, kind: input, shape index: {}]
  %s2 = inlined_call_operand.vmem [shape: f32[128,512], index: 2, kind: input, shape index: {}]
  %s3 = inlined_call_operand.vmem [shape: f32[1,512], index: 3, kind: input, shape index: {}]
  %s4 = inlined_call_operand.vmem [shape: f32[256,512], index: 4, kind: input, shape index: {}]
  %s5 = inlined_call_operand.vmem [shape: f32[1,512], index: 5, kind: input, shape index: {}]
  %s6 = inlined_call_operand.vmem [shape: f32[8,128], index: 6, kind: input, shape index: {}]
  %s7 = inlined_call_operand.vmem [shape: f32[8,1], index: 7, kind: input, shape index: {}]
  %s8 = inlined_call_operand.vmem [shape: f32[8,8,1], index: 8, kind: output, shape index: {0}]
  %s9 = inlined_call_operand.vmem [shape: f32[8,8,128], index: 9, kind: output, shape index: {1}]
  %10 = xla_tuple %s8, %s9
  %s11 = sld [smem:[#allocation0]]
  $region50: #{wgan_discriminator_forward.1} parent=0
    _
  %s13 = ssub.s32 1, %s11
  %s14 = scalar_select 0, %s13, %s11
  // Predicated region
  $region2: #{wgan_discriminator_forward.1} parent=0 // pred_check
    _
  $region3: #{wgan_discriminator_forward.1} parent=0 // pred_check_branch
    %16 = sbr.rel (0) target = $region5
  $region4: #{wgan_discriminator_forward.1} parent=0 // pred_region
    _
  $region5: #{wgan_discriminator_forward.1} parent=0 // pred_fallthru
    _
  // Predicated region
  $region6: #{wgan_discriminator_forward.1} parent=0 // pred_check
    _
  $region7: #{wgan_discriminator_forward.1} parent=0 // pred_check_branch
    %18 = sbr.rel (0) target = $region9
  $region8: #{wgan_discriminator_forward.1} parent=0 // pred_region
    _
  $region9: #{wgan_discriminator_forward.1} parent=0 // pred_fallthru
    _
  // Predicated region
  $region10: #{wgan_discriminator_forward.1} parent=0 // pred_check
    _
  $region11: #{wgan_discriminator_forward.1} parent=0 // pred_check_branch
    %20 = sbr.rel (0) target = $region13
  $region12: #{wgan_discriminator_forward.1} parent=0 // pred_region
    _
  $region13: #{wgan_discriminator_forward.1} parent=0 // pred_fallthru
    _
  // Predicated region
  $region14: #{wgan_discriminator_forward.1} parent=0 // pred_check
    _
  $region15: #{wgan_discriminator_forward.1} parent=0 // pred_check_branch
    %22 = sbr.rel (0) target = $region17
  $region16: #{wgan_discriminator_forward.1} parent=0 // pred_region
    _
  $region17: #{wgan_discriminator_forward.1} parent=0 // pred_fallthru
    _
  // Predicated region
  $region18: #{wgan_discriminator_forward.1} parent=0 // pred_check
    _
  $region19: #{wgan_discriminator_forward.1} parent=0 // pred_check_branch
    %24 = sbr.rel (0) target = $region21
  $region20: #{wgan_discriminator_forward.1} parent=0 // pred_region
    _
  $region21: #{wgan_discriminator_forward.1} parent=0 // pred_fallthru
    _
  // Predicated region
  $region22: #{wgan_discriminator_forward.1} parent=0 // pred_check
    _
  $region23: #{wgan_discriminator_forward.1} parent=0 // pred_check_branch
    %26 = sbr.rel (0) target = $region25
  $region24: #{wgan_discriminator_forward.1} parent=0 // pred_region
    _
  $region25: #{wgan_discriminator_forward.1} parent=0 // pred_fallthru
    _
  // Predicated region
  $region26: #{wgan_discriminator_forward.1} parent=0 // pred_check
    _
  $region27: #{wgan_discriminator_forward.1} parent=0 // pred_check_branch
    %28 = sbr.rel (0) target = $region29
  $region28: #{wgan_discriminator_forward.1} parent=0 // pred_region
    _
  $region29: #{wgan_discriminator_forward.1} parent=0 // pred_fallthru
    _
  // Predicated region
  $region30: #{wgan_discriminator_forward.1} parent=0 // pred_check
    _
  $region31: #{wgan_discriminator_forward.1} parent=0 // pred_check_branch
    %30 = sbr.rel (0) target = $region33
  $region32: #{wgan_discriminator_forward.1} parent=0 // pred_region
    _
  $region33: #{wgan_discriminator_forward.1} parent=0 // pred_fallthru
    _
  %v31 = vld [vmem:[%s0] sm:$0xff]
  %v32 = vld [vmem:[%s0 + $0x8] sm:$0xff]
  %v33 = vld [vmem:[%s0 + $0x10] sm:$0xff]
  %v34 = vld [vmem:[%s0 + $0x18] sm:$0xff]
  %v35 = vld [vmem:[%s0 + $0x20] sm:$0xff]
  %v36 = vld [vmem:[%s0 + $0x28] sm:$0xff]
  %v37 = vld [vmem:[%s0 + $0x30] sm:$0xff]
  %v38 = vld [vmem:[%s0 + $0x38] sm:$0xff]
  %v39 = vld [vmem:[%s1] sm:$0xf]
  %41 = vset.pattern.permute.xlu0 0
  %42 = vperm.xlu0 %41, %v31
  %v43 = vpop.permute.xlu0 %42
  %46 = vset.pattern.permute.xlu0 0
  %47 = vperm.xlu0 %46, %v32
  %v48 = vpop.permute.xlu0 %47
  %51 = vset.pattern.permute.xlu0 0
  %52 = vperm.xlu0 %51, %v33
  %v53 = vpop.permute.xlu0 %52
  %56 = vset.pattern.permute.xlu0 0
  %57 = vperm.xlu0 %56, %v34
  %v58 = vpop.permute.xlu0 %57
  %61 = vset.pattern.permute.xlu0 0
  %62 = vperm.xlu0 %61, %v35
  %v63 = vpop.permute.xlu0 %62
  %66 = vset.pattern.permute.xlu0 0
  %67 = vperm.xlu0 %66, %v36
  %v68 = vpop.permute.xlu0 %67
  %71 = vset.pattern.permute.xlu0 0
  %72 = vperm.xlu0 %71, %v37
  %v73 = vpop.permute.xlu0 %72
  %76 = vset.pattern.permute.xlu0 0
  %77 = vperm.xlu0 %76, %v38
  %v78 = vpop.permute.xlu0 %77
  %v81 = vlaneseq
  %v82 = vshrl.u32 %v81, 7
  %v83 = vsub.s32 0, %v82
  %v84 = vrot.slane %v39, %v83
  %v85 = vlaneseq
  %v86 = vshrl.u32 %v85, 7
  %v87 = vsub.s32 1, %v86
  %v88 = vrot.slane %v39, %v87
  %v89 = vlaneseq
  %v90 = vshrl.u32 %v89, 7
  %v91 = vsub.s32 2, %v90
  %v92 = vrot.slane %v39, %v91
  %v93 = vlaneseq
  %v94 = vshrl.u32 %v93, 7
  %v95 = vsub.s32 3, %v94
  %v96 = vrot.slane %v39, %v95
  %v101 = vmul.f32 %v43, %v84
  %v102 = vmul.f32 %v43, %v88
  %v103 = vmul.f32 %v43, %v92
  %v104 = vmul.f32 %v43, %v96
  %v105 = vmul.f32 %v48, %v84
  %v106 = vmul.f32 %v48, %v88
  %v107 = vmul.f32 %v48, %v92
  %v108 = vmul.f32 %v48, %v96
  %v109 = vmul.f32 %v53, %v84
  %v110 = vmul.f32 %v53, %v88
  %v111 = vmul.f32 %v53, %v92
  %v112 = vmul.f32 %v53, %v96
  %v113 = vmul.f32 %v58, %v84
  %v114 = vmul.f32 %v58, %v88
  %v115 = vmul.f32 %v58, %v92
  %v116 = vmul.f32 %v58, %v96
  %v117 = vmul.f32 %v63, %v84
  %v118 = vmul.f32 %v63, %v88
  %v119 = vmul.f32 %v63, %v92
  %v120 = vmul.f32 %v63, %v96
  %v121 = vmul.f32 %v68, %v84
  %v122 = vmul.f32 %v68, %v88
  %v123 = vmul.f32 %v68, %v92
  %v124 = vmul.f32 %v68, %v96
  %v125 = vmul.f32 %v73, %v84
  %v126 = vmul.f32 %v73, %v88
  %v127 = vmul.f32 %v73, %v92
  %v128 = vmul.f32 %v73, %v96
  %v129 = vmul.f32 %v78, %v84
  %v130 = vmul.f32 %v78, %v88
  %v131 = vmul.f32 %v78, %v92
  %v132 = vmul.f32 %v78, %v96
  %v133 = vld [vmem:[%s3] sm:$0xf]
  %v135 = vlaneseq
  %v136 = vshrl.u32 %v135, 7
  %v137 = vsub.s32 0, %v136
  %v138 = vrot.slane %v133, %v137
  %v139 = vlaneseq
  %v140 = vshrl.u32 %v139, 7
  %v141 = vsub.s32 1, %v140
  %v142 = vrot.slane %v133, %v141
  %v143 = vlaneseq
  %v144 = vshrl.u32 %v143, 7
  %v145 = vsub.s32 2, %v144
  %v146 = vrot.slane %v133, %v145
  %v147 = vlaneseq
  %v148 = vshrl.u32 %v147, 7
  %v149 = vsub.s32 3, %v148
  %v150 = vrot.slane %v133, %v149
  %v155 = vadd.f32 %v101, %v138
  %v156 = vadd.f32 %v102, %v142
  %v157 = vadd.f32 %v103, %v146
  %v158 = vadd.f32 %v104, %v150
  %v159 = vadd.f32 %v105, %v138
  %v160 = vadd.f32 %v106, %v142
  %v161 = vadd.f32 %v107, %v146
  %v162 = vadd.f32 %v108, %v150
  %v163 = vadd.f32 %v109, %v138
  %v164 = vadd.f32 %v110, %v142
  %v165 = vadd.f32 %v111, %v146
  %v166 = vadd.f32 %v112, %v150
  %v167 = vadd.f32 %v113, %v138
  %v168 = vadd.f32 %v114, %v142
  %v169 = vadd.f32 %v115, %v146
  %v170 = vadd.f32 %v116, %v150
  %v171 = vadd.f32 %v117, %v138
  %v172 = vadd.f32 %v118, %v142
  %v173 = vadd.f32 %v119, %v146
  %v174 = vadd.f32 %v120, %v150
  %v175 = vadd.f32 %v121, %v138
  %v176 = vadd.f32 %v122, %v142
  %v177 = vadd.f32 %v123, %v146
  %v178 = vadd.f32 %v124, %v150
  %v179 = vadd.f32 %v125, %v138
  %v180 = vadd.f32 %v126, %v142
  %v181 = vadd.f32 %v127, %v146
  %v182 = vadd.f32 %v128, %v150
  %v183 = vadd.f32 %v129, %v138
  %v184 = vadd.f32 %v130, %v142
  %v185 = vadd.f32 %v131, %v146
  %v186 = vadd.f32 %v132, %v150
  %187 = vst [vmem:[#allocation2] sm:$0xff] %v155
  %188 = vst [vmem:[#allocation2 + $0x8] sm:$0xff] %v156
  %189 = vst [vmem:[#allocation2 + $0x10] sm:$0xff] %v157
  %190 = vst [vmem:[#allocation2 + $0x18] sm:$0xff] %v158
  %191 = vst [vmem:[#allocation2 + $0x20] sm:$0xff] %v159
  %192 = vst [vmem:[#allocation2 + $0x28] sm:$0xff] %v160
  %193 = vst [vmem:[#allocation2 + $0x30] sm:$0xff] %v161
  %194 = vst [vmem:[#allocation2 + $0x38] sm:$0xff] %v162
  %195 = vst [vmem:[#allocation2 + $0x40] sm:$0xff] %v163
  %196 = vst [vmem:[#allocation2 + $0x48] sm:$0xff] %v164
  %197 = vst [vmem:[#allocation2 + $0x50] sm:$0xff] %v165
  %198 = vst [vmem:[#allocation2 + $0x58] sm:$0xff] %v166
  %199 = vst [vmem:[#allocation2 + $0x60] sm:$0xff] %v167
  %200 = vst [vmem:[#allocation2 + $0x68] sm:$0xff] %v168
  %201 = vst [vmem:[#allocation2 + $0x70] sm:$0xff] %v169
  %202 = vst [vmem:[#allocation2 + $0x78] sm:$0xff] %v170
  %203 = vst [vmem:[#allocation2 + $0x80] sm:$0xff] %v171
  %204 = vst [vmem:[#allocation2 + $0x88] sm:$0xff] %v172
  %205 = vst [vmem:[#allocation2 + $0x90] sm:$0xff] %v173
  %206 = vst [vmem:[#allocation2 + $0x98] sm:$0xff] %v174
  %207 = vst [vmem:[#allocation2 + $0xa0] sm:$0xff] %v175
  %208 = vst [vmem:[#allocation2 + $0xa8] sm:$0xff] %v176
  %209 = vst [vmem:[#allocation2 + $0xb0] sm:$0xff] %v177
  %210 = vst [vmem:[#allocation2 + $0xb8] sm:$0xff] %v178
  %211 = vst [vmem:[#allocation2 + $0xc0] sm:$0xff] %v179
  %212 = vst [vmem:[#allocation2 + $0xc8] sm:$0xff] %v180
  %213 = vst [vmem:[#allocation2 + $0xd0] sm:$0xff] %v181
  %214 = vst [vmem:[#allocation2 + $0xd8] sm:$0xff] %v182
  %215 = vst [vmem:[#allocation2 + $0xe0] sm:$0xff] %v183
  %216 = vst [vmem:[#allocation2 + $0xe8] sm:$0xff] %v184
  %217 = vst [vmem:[#allocation2 + $0xf0] sm:$0xff] %v185
  %218 = vst [vmem:[#allocation2 + $0xf8] sm:$0xff] %v186
  %v219 = vld [vmem:[%s2] sm:$0xff]
  %v220 = vld [vmem:[%s2 + $0x8] sm:$0xff]
  %v221 = vld [vmem:[%s2 + $0x10] sm:$0xff]
  %v222 = vld [vmem:[%s2 + $0x18] sm:$0xff]
  %v223 = vld [vmem:[%s2 + $0x20] sm:$0xff]
  %v224 = vld [vmem:[%s2 + $0x28] sm:$0xff]
  %v225 = vld [vmem:[%s2 + $0x30] sm:$0xff]
  %v226 = vld [vmem:[%s2 + $0x38] sm:$0xff]
  %v227 = vld [vmem:[%s2 + $0x40] sm:$0xff]
  %v228 = vld [vmem:[%s2 + $0x48] sm:$0xff]
  %v229 = vld [vmem:[%s2 + $0x50] sm:$0xff]
  %v230 = vld [vmem:[%s2 + $0x58] sm:$0xff]
  %v231 = vld [vmem:[%s2 + $0x60] sm:$0xff]
  %v232 = vld [vmem:[%s2 + $0x68] sm:$0xff]
  %v233 = vld [vmem:[%s2 + $0x70] sm:$0xff]
  %v234 = vld [vmem:[%s2 + $0x78] sm:$0xff]
  %v235 = vld [vmem:[%s2 + $0x80] sm:$0xff]
  %v236 = vld [vmem:[%s2 + $0x88] sm:$0xff]
  %v237 = vld [vmem:[%s2 + $0x90] sm:$0xff]
  %v238 = vld [vmem:[%s2 + $0x98] sm:$0xff]
  %v239 = vld [vmem:[%s2 + $0xa0] sm:$0xff]
  %v240 = vld [vmem:[%s2 + $0xa8] sm:$0xff]
  %v241 = vld [vmem:[%s2 + $0xb0] sm:$0xff]
  %v242 = vld [vmem:[%s2 + $0xb8] sm:$0xff]
  %v243 = vld [vmem:[%s2 + $0xc0] sm:$0xff]
  %v244 = vld [vmem:[%s2 + $0xc8] sm:$0xff]
  %v245 = vld [vmem:[%s2 + $0xd0] sm:$0xff]
  %v246 = vld [vmem:[%s2 + $0xd8] sm:$0xff]
  %v247 = vld [vmem:[%s2 + $0xe0] sm:$0xff]
  %v248 = vld [vmem:[%s2 + $0xe8] sm:$0xff]
  %v249 = vld [vmem:[%s2 + $0xf0] sm:$0xff]
  %v250 = vld [vmem:[%s2 + $0xf8] sm:$0xff]
  %v251 = vld [vmem:[%s2 + $0x100] sm:$0xff]
  %v252 = vld [vmem:[%s2 + $0x108] sm:$0xff]
  %v253 = vld [vmem:[%s2 + $0x110] sm:$0xff]
  %v254 = vld [vmem:[%s2 + $0x118] sm:$0xff]
  %v255 = vld [vmem:[%s2 + $0x120] sm:$0xff]
  %v256 = vld [vmem:[%s2 + $0x128] sm:$0xff]
  %v257 = vld [vmem:[%s2 + $0x130] sm:$0xff]
  %v258 = vld [vmem:[%s2 + $0x138] sm:$0xff]
  %v259 = vld [vmem:[%s2 + $0x140] sm:$0xff]
  %v260 = vld [vmem:[%s2 + $0x148] sm:$0xff]
  %v261 = vld [vmem:[%s2 + $0x150] sm:$0xff]
  %v262 = vld [vmem:[%s2 + $0x158] sm:$0xff]
  %v263 = vld [vmem:[%s2 + $0x160] sm:$0xff]
  %v264 = vld [vmem:[%s2 + $0x168] sm:$0xff]
  %v265 = vld [vmem:[%s2 + $0x170] sm:$0xff]
  %v266 = vld [vmem:[%s2 + $0x178] sm:$0xff]
  %v267 = vld [vmem:[%s2 + $0x180] sm:$0xff]
  %v268 = vld [vmem:[%s2 + $0x188] sm:$0xff]
  %v269 = vld [vmem:[%s2 + $0x190] sm:$0xff]
  %v270 = vld [vmem:[%s2 + $0x198] sm:$0xff]
  %v271 = vld [vmem:[%s2 + $0x1a0] sm:$0xff]
  %v272 = vld [vmem:[%s2 + $0x1a8] sm:$0xff]
  %v273 = vld [vmem:[%s2 + $0x1b0] sm:$0xff]
  %v274 = vld [vmem:[%s2 + $0x1b8] sm:$0xff]
  %v275 = vld [vmem:[%s2 + $0x1c0] sm:$0xff]
  %v276 = vld [vmem:[%s2 + $0x1c8] sm:$0xff]
  %v277 = vld [vmem:[%s2 + $0x1d0] sm:$0xff]
  %v278 = vld [vmem:[%s2 + $0x1d8] sm:$0xff]
  %v279 = vld [vmem:[%s2 + $0x1e0] sm:$0xff]
  %v280 = vld [vmem:[%s2 + $0x1e8] sm:$0xff]
  %v281 = vld [vmem:[%s2 + $0x1f0] sm:$0xff]
  %v282 = vld [vmem:[%s2 + $0x1f8] sm:$0xff]
  %v283 = vld [vmem:[%s4] sm:$0xff]
  %v284 = vld [vmem:[%s4 + $0x8] sm:$0xff]
  %v285 = vld [vmem:[%s4 + $0x10] sm:$0xff]
  %v286 = vld [vmem:[%s4 + $0x18] sm:$0xff]
  %v287 = vld [vmem:[%s4 + $0x20] sm:$0xff]
  %v288 = vld [vmem:[%s4 + $0x28] sm:$0xff]
  %v289 = vld [vmem:[%s4 + $0x30] sm:$0xff]
  %v290 = vld [vmem:[%s4 + $0x38] sm:$0xff]
  %v291 = vld [vmem:[%s4 + $0x40] sm:$0xff]
  %v292 = vld [vmem:[%s4 + $0x48] sm:$0xff]
  %v293 = vld [vmem:[%s4 + $0x50] sm:$0xff]
  %v294 = vld [vmem:[%s4 + $0x58] sm:$0xff]
  %v295 = vld [vmem:[%s4 + $0x60] sm:$0xff]
  %v296 = vld [vmem:[%s4 + $0x68] sm:$0xff]
  %v297 = vld [vmem:[%s4 + $0x70] sm:$0xff]
  %v298 = vld [vmem:[%s4 + $0x78] sm:$0xff]
  %v299 = vld [vmem:[%s4 + $0x80] sm:$0xff]
  %v300 = vld [vmem:[%s4 + $0x88] sm:$0xff]
  %v301 = vld [vmem:[%s4 + $0x90] sm:$0xff]
  %v302 = vld [vmem:[%s4 + $0x98] sm:$0xff]
  %v303 = vld [vmem:[%s4 + $0xa0] sm:$0xff]
  %v304 = vld [vmem:[%s4 + $0xa8] sm:$0xff]
  %v305 = vld [vmem:[%s4 + $0xb0] sm:$0xff]
  %v306 = vld [vmem:[%s4 + $0xb8] sm:$0xff]
  %v307 = vld [vmem:[%s4 + $0xc0] sm:$0xff]
  %v308 = vld [vmem:[%s4 + $0xc8] sm:$0xff]
  %v309 = vld [vmem:[%s4 + $0xd0] sm:$0xff]
  %v310 = vld [vmem:[%s4 + $0xd8] sm:$0xff]
  %v311 = vld [vmem:[%s4 + $0xe0] sm:$0xff]
  %v312 = vld [vmem:[%s4 + $0xe8] sm:$0xff]
  %v313 = vld [vmem:[%s4 + $0xf0] sm:$0xff]
  %v314 = vld [vmem:[%s4 + $0xf8] sm:$0xff]
  %v315 = vld [vmem:[%s4 + $0x100] sm:$0xff]
  %v316 = vld [vmem:[%s4 + $0x108] sm:$0xff]
  %v317 = vld [vmem:[%s4 + $0x110] sm:$0xff]
  %v318 = vld [vmem:[%s4 + $0x118] sm:$0xff]
  %v319 = vld [vmem:[%s4 + $0x120] sm:$0xff]
  %v320 = vld [vmem:[%s4 + $0x128] sm:$0xff]
  %v321 = vld [vmem:[%s4 + $0x130] sm:$0xff]
  %v322 = vld [vmem:[%s4 + $0x138] sm:$0xff]
  %v323 = vld [vmem:[%s4 + $0x140] sm:$0xff]
  %v324 = vld [vmem:[%s4 + $0x148] sm:$0xff]
  %v325 = vld [vmem:[%s4 + $0x150] sm:$0xff]
  %v326 = vld [vmem:[%s4 + $0x158] sm:$0xff]
  %v327 = vld [vmem:[%s4 + $0x160] sm:$0xff]
  %v328 = vld [vmem:[%s4 + $0x168] sm:$0xff]
  %v329 = vld [vmem:[%s4 + $0x170] sm:$0xff]
  %v330 = vld [vmem:[%s4 + $0x178] sm:$0xff]
  %v331 = vld [vmem:[%s4 + $0x180] sm:$0xff]
  %v332 = vld [vmem:[%s4 + $0x188] sm:$0xff]
  %v333 = vld [vmem:[%s4 + $0x190] sm:$0xff]
  %v334 = vld [vmem:[%s4 + $0x198] sm:$0xff]
  %v335 = vld [vmem:[%s4 + $0x1a0] sm:$0xff]
  %v336 = vld [vmem:[%s4 + $0x1a8] sm:$0xff]
  %v337 = vld [vmem:[%s4 + $0x1b0] sm:$0xff]
  %v338 = vld [vmem:[%s4 + $0x1b8] sm:$0xff]
  %v339 = vld [vmem:[%s4 + $0x1c0] sm:$0xff]
  %v340 = vld [vmem:[%s4 + $0x1c8] sm:$0xff]
  %v341 = vld [vmem:[%s4 + $0x1d0] sm:$0xff]
  %v342 = vld [vmem:[%s4 + $0x1d8] sm:$0xff]
  %v343 = vld [vmem:[%s4 + $0x1e0] sm:$0xff]
  %v344 = vld [vmem:[%s4 + $0x1e8] sm:$0xff]
  %v345 = vld [vmem:[%s4 + $0x1f0] sm:$0xff]
  %v346 = vld [vmem:[%s4 + $0x1f8] sm:$0xff]
  %v347 = vld [vmem:[%s4 + $0x200] sm:$0xff]
  %v348 = vld [vmem:[%s4 + $0x208] sm:$0xff]
  %v349 = vld [vmem:[%s4 + $0x210] sm:$0xff]
  %v350 = vld [vmem:[%s4 + $0x218] sm:$0xff]
  %v351 = vld [vmem:[%s4 + $0x220] sm:$0xff]
  %v352 = vld [vmem:[%s4 + $0x228] sm:$0xff]
  %v353 = vld [vmem:[%s4 + $0x230] sm:$0xff]
  %v354 = vld [vmem:[%s4 + $0x238] sm:$0xff]
  %v355 = vld [vmem:[%s4 + $0x240] sm:$0xff]
  %v356 = vld [vmem:[%s4 + $0x248] sm:$0xff]
  %v357 = vld [vmem:[%s4 + $0x250] sm:$0xff]
  %v358 = vld [vmem:[%s4 + $0x258] sm:$0xff]
  %v359 = vld [vmem:[%s4 + $0x260] sm:$0xff]
  %v360 = vld [vmem:[%s4 + $0x268] sm:$0xff]
  %v361 = vld [vmem:[%s4 + $0x270] sm:$0xff]
  %v362 = vld [vmem:[%s4 + $0x278] sm:$0xff]
  %v363 = vld [vmem:[%s4 + $0x280] sm:$0xff]
  %v364 = vld [vmem:[%s4 + $0x288] sm:$0xff]
  %v365 = vld [vmem:[%s4 + $0x290] sm:$0xff]
  %v366 = vld [vmem:[%s4 + $0x298] sm:$0xff]
  %v367 = vld [vmem:[%s4 + $0x2a0] sm:$0xff]
  %v368 = vld [vmem:[%s4 + $0x2a8] sm:$0xff]
  %v369 = vld [vmem:[%s4 + $0x2b0] sm:$0xff]
  %v370 = vld [vmem:[%s4 + $0x2b8] sm:$0xff]
  %v371 = vld [vmem:[%s4 + $0x2c0] sm:$0xff]
  %v372 = vld [vmem:[%s4 + $0x2c8] sm:$0xff]
  %v373 = vld [vmem:[%s4 + $0x2d0] sm:$0xff]
  %v374 = vld [vmem:[%s4 + $0x2d8] sm:$0xff]
  %v375 = vld [vmem:[%s4 + $0x2e0] sm:$0xff]
  %v376 = vld [vmem:[%s4 + $0x2e8] sm:$0xff]
  %v377 = vld [vmem:[%s4 + $0x2f0] sm:$0xff]
  %v378 = vld [vmem:[%s4 + $0x2f8] sm:$0xff]
  %v379 = vld [vmem:[%s4 + $0x300] sm:$0xff]
  %v380 = vld [vmem:[%s4 + $0x308] sm:$0xff]
  %v381 = vld [vmem:[%s4 + $0x310] sm:$0xff]
  %v382 = vld [vmem:[%s4 + $0x318] sm:$0xff]
  %v383 = vld [vmem:[%s4 + $0x320] sm:$0xff]
  %v384 = vld [vmem:[%s4 + $0x328] sm:$0xff]
  %v385 = vld [vmem:[%s4 + $0x330] sm:$0xff]
  %v386 = vld [vmem:[%s4 + $0x338] sm:$0xff]
  %v387 = vld [vmem:[%s4 + $0x340] sm:$0xff]
  %v388 = vld [vmem:[%s4 + $0x348] sm:$0xff]
  %v389 = vld [vmem:[%s4 + $0x350] sm:$0xff]
  %v390 = vld [vmem:[%s4 + $0x358] sm:$0xff]
  %v391 = vld [vmem:[%s4 + $0x360] sm:$0xff]
  %v392 = vld [vmem:[%s4 + $0x368] sm:$0xff]
  %v393 = vld [vmem:[%s4 + $0x370] sm:$0xff]
  %v394 = vld [vmem:[%s4 + $0x378] sm:$0xff]
  %v395 = vld [vmem:[%s4 + $0x380] sm:$0xff]
  %v396 = vld [vmem:[%s4 + $0x388] sm:$0xff]
  %v397 = vld [vmem:[%s4 + $0x390] sm:$0xff]
  %v398 = vld [vmem:[%s4 + $0x398] sm:$0xff]
  %v399 = vld [vmem:[%s4 + $0x3a0] sm:$0xff]
  %v400 = vld [vmem:[%s4 + $0x3a8] sm:$0xff]
  %v401 = vld [vmem:[%s4 + $0x3b0] sm:$0xff]
  %v402 = vld [vmem:[%s4 + $0x3b8] sm:$0xff]
  %v403 = vld [vmem:[%s4 + $0x3c0] sm:$0xff]
  %v404 = vld [vmem:[%s4 + $0x3c8] sm:$0xff]
  %v405 = vld [vmem:[%s4 + $0x3d0] sm:$0xff]
  %v406 = vld [vmem:[%s4 + $0x3d8] sm:$0xff]
  %v407 = vld [vmem:[%s4 + $0x3e0] sm:$0xff]
  %v408 = vld [vmem:[%s4 + $0x3e8] sm:$0xff]
  %v409 = vld [vmem:[%s4 + $0x3f0] sm:$0xff]
  %v410 = vld [vmem:[%s4 + $0x3f8] sm:$0xff]
  %v411 = vld [vmem:[%s5] sm:$0xf]
  %v413 = vlaneseq
  %v414 = vshrl.u32 %v413, 7
  %v415 = vsub.s32 0, %v414
  %v416 = vrot.slane %v411, %v415
  %v417 = vlaneseq
  %v418 = vshrl.u32 %v417, 7
  %v419 = vsub.s32 1, %v418
  %v420 = vrot.slane %v411, %v419
  %v421 = vlaneseq
  %v422 = vshrl.u32 %v421, 7
  %v423 = vsub.s32 2, %v422
  %v424 = vrot.slane %v411, %v423
  %v425 = vlaneseq
  %v426 = vshrl.u32 %v425, 7
  %v427 = vsub.s32 3, %v426
  %v428 = vrot.slane %v411, %v427
  %v433 = vld [vmem:[#allocation2] sm:$0xff]
  %v434 = vld [vmem:[#allocation2 + $0x8] sm:$0xff]
  %v435 = vld [vmem:[#allocation2 + $0x10] sm:$0xff]
  %v436 = vld [vmem:[#allocation2 + $0x18] sm:$0xff]
  %437 = vmatprep.subr.mxu0 %v280
  %438 = vmatpush1.msra.mxu0 %v279
  %439 = vmatprep.subr.mxu0 %v276
  %440 = vmatpush1.msra.mxu0 %v275
  %441 = vmatprep.subr.mxu0 %v272
  %442 = vmatpush1.msra.mxu0 %v271
  %443 = vmatprep.subr.mxu0 %v268
  %444 = vmatpush1.msra.mxu0 %v267
  %445 = vmatprep.subr.mxu0 %v264
  %446 = vmatpush1.msra.mxu0 %v263
  %447 = vmatprep.subr.mxu0 %v260
  %448 = vmatpush1.msra.mxu0 %v259
  %449 = vmatprep.subr.mxu0 %v256
  %450 = vmatpush1.msra.mxu0 %v255
  %451 = vmatprep.subr.mxu0 %v252
  %452 = vmatpush1.msra.mxu0 %v251
  %453 = vmatprep.subr.mxu0 %v248
  %454 = vmatpush1.msra.mxu0 %v247
  %455 = vmatprep.subr.mxu0 %v244
  %456 = vmatpush1.msra.mxu0 %v243
  %457 = vmatprep.subr.mxu0 %v240
  %458 = vmatpush1.msra.mxu0 %v239
  %459 = vmatprep.subr.mxu0 %v236
  %460 = vmatpush1.msra.mxu0 %v235
  %461 = vmatprep.subr.mxu0 %v232
  %462 = vmatpush1.msra.mxu0 %v231
  %463 = vmatprep.subr.mxu0 %v228
  %464 = vmatpush1.msra.mxu0 %v227
  %465 = vmatprep.subr.mxu0 %v224
  %466 = vmatpush1.msra.mxu0 %v223
  %467 = vmatprep.subr.mxu0 %v220
  %468 = vmatpush1.msra.mxu0 %v219
  %469 = vmatprep.subr.mxu0 0.0
  %470 = vmatpush2.msra.mxu0 0.0
  %471 = vmatprep.subr.mxu0 0.0
  %472 = vmatpush2.msra.mxu0 0.0
  %473 = vmatprep.subr.mxu0 0.0
  %474 = vmatpush2.msra.mxu0 0.0
  %475 = vmatprep.subr.mxu0 0.0
  %476 = vmatpush2.msra.mxu0 0.0
  %477 = vmatprep.subr.mxu0 0.0
  %478 = vmatpush2.msra.mxu0 0.0
  %479 = vmatprep.subr.mxu0 0.0
  %480 = vmatpush2.msra.mxu0 0.0
  %481 = vmatprep.subr.mxu0 0.0
  %482 = vmatpush2.msra.mxu0 0.0
  %483 = vmatprep.subr.mxu0 0.0
  %484 = vmatpush2.msra.mxu0 0.0
  %485 = vmatprep.subr.mxu0 0.0
  %486 = vmatpush2.msra.mxu0 0.0
  %487 = vmatprep.subr.mxu0 0.0
  %488 = vmatpush2.msra.mxu0 0.0
  %489 = vmatprep.subr.mxu0 0.0
  %490 = vmatpush2.msra.mxu0 0.0
  %491 = vmatprep.subr.mxu0 0.0
  %492 = vmatpush2.msra.mxu0 0.0
  %493 = vmatprep.subr.mxu0 0.0
  %494 = vmatpush2.msra.mxu0 0.0
  %495 = vmatprep.subr.mxu0 0.0
  %496 = vmatpush2.msra.mxu0 0.0
  %497 = vmatprep.subr.mxu0 0.0
  %498 = vmatpush2.msra.mxu0 0.0
  %499 = vmatprep.subr.mxu0 0.0
  %500 = vmatpush2.msra.mxu0 0.0
  %501 = vmatprep.mubr.f32.mxu0 0.0
  %502 = vmatmul.mubr.f32.gmra.mxu0 0.0
  %v503 = vpop.f32.mrf.mxu0
  %v504 = vadd.f32 0.0, %v503
  %v505 = vpop.f32.mrf.mxu0
  %v506 = vadd.f32 0.0, %v505
  %507 = vdwg.mxu0
  %508 = vmatprep.subr.mxu0 %v282
  %509 = vmatpush1.msra.mxu0 %v281
  %510 = vmatprep.subr.mxu0 %v278
  %511 = vmatpush1.msra.mxu0 %v277
  %512 = vmatprep.subr.mxu0 %v274
  %513 = vmatpush1.msra.mxu0 %v273
  %514 = vmatprep.subr.mxu0 %v270
  %515 = vmatpush1.msra.mxu0 %v269
  %516 = vmatprep.subr.mxu0 %v266
  %517 = vmatpush1.msra.mxu0 %v265
  %518 = vmatprep.subr.mxu0 %v262
  %519 = vmatpush1.msra.mxu0 %v261
  %520 = vmatprep.subr.mxu0 %v258
  %521 = vmatpush1.msra.mxu0 %v257
  %522 = vmatprep.subr.mxu0 %v254
  %523 = vmatpush1.msra.mxu0 %v253
  %524 = vmatprep.subr.mxu0 %v250
  %525 = vmatpush1.msra.mxu0 %v249
  %526 = vmatprep.subr.mxu0 %v246
  %527 = vmatpush1.msra.mxu0 %v245
  %528 = vmatprep.subr.mxu0 %v242
  %529 = vmatpush1.msra.mxu0 %v241
  %530 = vmatprep.subr.mxu0 %v238
  %531 = vmatpush1.msra.mxu0 %v237
  %532 = vmatprep.subr.mxu0 %v234
  %533 = vmatpush1.msra.mxu0 %v233
  %534 = vmatprep.subr.mxu0 %v230
  %535 = vmatpush1.msra.mxu0 %v229
  %536 = vmatprep.subr.mxu0 %v226
  %537 = vmatpush1.msra.mxu0 %v225
  %538 = vmatprep.subr.mxu0 %v222
  %539 = vmatpush1.msra.mxu0 %v221
  %540 = vmatprep.subr.mxu0 0.0
  %541 = vmatpush2.msra.mxu0 0.0
  %542 = vmatprep.subr.mxu0 0.0
  %543 = vmatpush2.msra.mxu0 0.0
  %544 = vmatprep.subr.mxu0 0.0
  %545 = vmatpush2.msra.mxu0 0.0
  %546 = vmatprep.subr.mxu0 0.0
  %547 = vmatpush2.msra.mxu0 0.0
  %548 = vmatprep.subr.mxu0 0.0
  %549 = vmatpush2.msra.mxu0 0.0
  %550 = vmatprep.subr.mxu0 0.0
  %551 = vmatpush2.msra.mxu0 0.0
  %552 = vmatprep.subr.mxu0 0.0
  %553 = vmatpush2.msra.mxu0 0.0
  %554 = vmatprep.subr.mxu0 0.0
  %555 = vmatpush2.msra.mxu0 0.0
  %556 = vmatprep.subr.mxu0 0.0
  %557 = vmatpush2.msra.mxu0 0.0
  %558 = vmatprep.subr.mxu0 0.0
  %559 = vmatpush2.msra.mxu0 0.0
  %560 = vmatprep.subr.mxu0 0.0
  %561 = vmatpush2.msra.mxu0 0.0
  %562 = vmatprep.subr.mxu0 0.0
  %563 = vmatpush2.msra.mxu0 0.0
  %564 = vmatprep.subr.mxu0 0.0
  %565 = vmatpush2.msra.mxu0 0.0
  %566 = vmatprep.subr.mxu0 0.0
  %567 = vmatpush2.msra.mxu0 0.0
  %568 = vmatprep.subr.mxu0 0.0
  %569 = vmatpush2.msra.mxu0 0.0
  %570 = vmatprep.subr.mxu0 0.0
  %571 = vmatpush2.msra.mxu0 0.0
  %572 = vmatprep.mubr.f32.mxu0 0.0
  %573 = vmatmul.mubr.f32.gmra.mxu0 0.0
  %v574 = vpop.f32.mrf.mxu0
  %v575 = vadd.f32 0.0, %v574
  %v576 = vpop.f32.mrf.mxu0
  %v577 = vadd.f32 0.0, %v576
  %578 = vdwg.mxu0
  %v579 = vadd.f32 %v433, %v504
  %v580 = vadd.f32 %v434, %v506
  %v581 = vadd.f32 %v435, %v575
  %v582 = vadd.f32 %v436, %v577
  %v583 = vxor.u32 %v579, 2147483648
  %v584 = vmul.f32 %v583, 1.442695
  %v585 = vpow.pop %v584
  %v586 = vadd.f32 %v585, 1.0
  %v587 = vrcp.pop %v586
  %v588 = vmul.f32 1.0, %v587
  %v589 = vxor.u32 %v580, 2147483648
  %v590 = vmul.f32 %v589, 1.442695
  %v591 = vpow.pop %v590
  %v592 = vadd.f32 %v591, 1.0
  %v593 = vrcp.pop %v592
  %v594 = vmul.f32 1.0, %v593
  %v595 = vtanh.pop %v581
  %v596 = vxor.u32 %v582, 2147483648
  %v597 = vmul.f32 %v596, 1.442695
  %v598 = vpow.pop %v597
  %v599 = vadd.f32 %v598, 1.0
  %v600 = vrcp.pop %v599
  %v601 = vmul.f32 1.0, %v600
  %v602 = vmul.f32 %v594, 0.0
  %v603 = vmul.f32 %v588, %v595
  %v604 = vadd.f32 %v602, %v603
  %v605 = vtanh.pop %v604
  %v606 = vmul.f32 %v601, %v605
  %607 = vmatprep.subr.mxu0 %v344
  %608 = vmatpush1.msra.mxu0 %v343
  %609 = vmatprep.subr.mxu0 %v340
  %610 = vmatpush1.msra.mxu0 %v339
  %611 = vmatprep.subr.mxu0 %v336
  %612 = vmatpush1.msra.mxu0 %v335
  %613 = vmatprep.subr.mxu0 %v332
  %614 = vmatpush1.msra.mxu0 %v331
  %615 = vmatprep.subr.mxu0 %v328
  %616 = vmatpush1.msra.mxu0 %v327
  %617 = vmatprep.subr.mxu0 %v324
  %618 = vmatpush1.msra.mxu0 %v323
  %619 = vmatprep.subr.mxu0 %v320
  %620 = vmatpush1.msra.mxu0 %v319
  %621 = vmatprep.subr.mxu0 %v316
  %622 = vmatpush1.msra.mxu0 %v315
  %623 = vmatprep.subr.mxu0 %v312
  %624 = vmatpush1.msra.mxu0 %v311
  %625 = vmatprep.subr.mxu0 %v308
  %626 = vmatpush1.msra.mxu0 %v307
  %627 = vmatprep.subr.mxu0 %v304
  %628 = vmatpush1.msra.mxu0 %v303
  %629 = vmatprep.subr.mxu0 %v300
  %630 = vmatpush1.msra.mxu0 %v299
  %631 = vmatprep.subr.mxu0 %v296
  %632 = vmatpush1.msra.mxu0 %v295
  %633 = vmatprep.subr.mxu0 %v292
  %634 = vmatpush1.msra.mxu0 %v291
  %635 = vmatprep.subr.mxu0 %v288
  %636 = vmatpush1.msra.mxu0 %v287
  %637 = vmatprep.subr.mxu0 %v284
  %638 = vmatpush1.msra.mxu0 %v283
  %639 = vmatprep.subr.mxu0 %v408
  %640 = vmatpush2.msra.mxu0 %v407
  %641 = vmatprep.subr.mxu0 %v404
  %642 = vmatpush2.msra.mxu0 %v403
  %643 = vmatprep.subr.mxu0 %v400
  %644 = vmatpush2.msra.mxu0 %v399
  %645 = vmatprep.subr.mxu0 %v396
  %646 = vmatpush2.msra.mxu0 %v395
  %647 = vmatprep.subr.mxu0 %v392
  %648 = vmatpush2.msra.mxu0 %v391
  %649 = vmatprep.subr.mxu0 %v388
  %650 = vmatpush2.msra.mxu0 %v387
  %651 = vmatprep.subr.mxu0 %v384
  %652 = vmatpush2.msra.mxu0 %v383
  %653 = vmatprep.subr.mxu0 %v380
  %654 = vmatpush2.msra.mxu0 %v379
  %655 = vmatprep.subr.mxu0 %v376
  %656 = vmatpush2.msra.mxu0 %v375
  %657 = vmatprep.subr.mxu0 %v372
  %658 = vmatpush2.msra.mxu0 %v371
  %659 = vmatprep.subr.mxu0 %v368
  %660 = vmatpush2.msra.mxu0 %v367
  %661 = vmatprep.subr.mxu0 %v364
  %662 = vmatpush2.msra.mxu0 %v363
  %663 = vmatprep.subr.mxu0 %v360
  %664 = vmatpush2.msra.mxu0 %v359
  %665 = vmatprep.subr.mxu0 %v356
  %666 = vmatpush2.msra.mxu0 %v355
  %667 = vmatprep.subr.mxu0 %v352
  %668 = vmatpush2.msra.mxu0 %v351
  %669 = vmatprep.subr.mxu0 %v348
  %670 = vmatpush2.msra.mxu0 %v347
  %671 = vmatprep.mubr.f32.mxu0 0.0
  %672 = vmatmul.mubr.f32.gmra.mxu0 %v606
  %v673 = vpop.f32.mrf.mxu0
  %v674 = vadd.f32 %v416, %v673
  %v675 = vpop.f32.mrf.mxu0
  %v676 = vadd.f32 %v420, %v675
  %677 = vdwg.mxu0
  %678 = vmatprep.subr.mxu0 %v346
  %679 = vmatpush1.msra.mxu0 %v345
  %680 = vmatprep.subr.mxu0 %v342
  %681 = vmatpush1.msra.mxu0 %v341
  %682 = vmatprep.subr.mxu0 %v338
  %683 = vmatpush1.msra.mxu0 %v337
  %684 = vmatprep.subr.mxu0 %v334
  %685 = vmatpush1.msra.mxu0 %v333
  %686 = vmatprep.subr.mxu0 %v330
  %687 = vmatpush1.msra.mxu0 %v329
  %688 = vmatprep.subr.mxu0 %v326
  %689 = vmatpush1.msra.mxu0 %v325
  %690 = vmatprep.subr.mxu0 %v322
  %691 = vmatpush1.msra.mxu0 %v321
  %692 = vmatprep.subr.mxu0 %v318
  %693 = vmatpush1.msra.mxu0 %v317
  %694 = vmatprep.subr.mxu0 %v314
  %695 = vmatpush1.msra.mxu0 %v313
  %696 = vmatprep.subr.mxu0 %v310
  %697 = vmatpush1.msra.mxu0 %v309
  %698 = vmatprep.subr.mxu0 %v306
  %699 = vmatpush1.msra.mxu0 %v305
  %700 = vmatprep.subr.mxu0 %v302
  %701 = vmatpush1.msra.mxu0 %v301
  %702 = vmatprep.subr.mxu0 %v298
  %703 = vmatpush1.msra.mxu0 %v297
  %704 = vmatprep.subr.mxu0 %v294
  %705 = vmatpush1.msra.mxu0 %v293
  %706 = vmatprep.subr.mxu0 %v290
  %707 = vmatpush1.msra.mxu0 %v289
  %708 = vmatprep.subr.mxu0 %v286
  %709 = vmatpush1.msra.mxu0 %v285
  %710 = vmatprep.subr.mxu0 %v410
  %711 = vmatpush2.msra.mxu0 %v409
  %712 = vmatprep.subr.mxu0 %v406
  %713 = vmatpush2.msra.mxu0 %v405
  %714 = vmatprep.subr.mxu0 %v402
  %715 = vmatpush2.msra.mxu0 %v401
  %716 = vmatprep.subr.mxu0 %v398
  %717 = vmatpush2.msra.mxu0 %v397
  %718 = vmatprep.subr.mxu0 %v394
  %719 = vmatpush2.msra.mxu0 %v393
  %720 = vmatprep.subr.mxu0 %v390
  %721 = vmatpush2.msra.mxu0 %v389
  %722 = vmatprep.subr.mxu0 %v386
  %723 = vmatpush2.msra.mxu0 %v385
  %724 = vmatprep.subr.mxu0 %v382
  %725 = vmatpush2.msra.mxu0 %v381
  %726 = vmatprep.subr.mxu0 %v378
  %727 = vmatpush2.msra.mxu0 %v377
  %728 = vmatprep.subr.mxu0 %v374
  %729 = vmatpush2.msra.mxu0 %v373
  %730 = vmatprep.subr.mxu0 %v370
  %731 = vmatpush2.msra.mxu0 %v369
  %732 = vmatprep.subr.mxu0 %v366
  %733 = vmatpush2.msra.mxu0 %v365
  %734 = vmatprep.subr.mxu0 %v362
  %735 = vmatpush2.msra.mxu0 %v361
  %736 = vmatprep.subr.mxu0 %v358
  %737 = vmatpush2.msra.mxu0 %v357
  %738 = vmatprep.subr.mxu0 %v354
  %739 = vmatpush2.msra.mxu0 %v353
  %740 = vmatprep.subr.mxu0 %v350
  %741 = vmatpush2.msra.mxu0 %v349
  %742 = vmatprep.mubr.f32.mxu0 0.0
  %743 = vmatmul.mubr.f32.gmra.mxu0 %v606
  %v744 = vpop.f32.mrf.mxu0
  %v745 = vadd.f32 %v424, %v744
  %v746 = vpop.f32.mrf.mxu0
  %v747 = vadd.f32 %v428, %v746
  %748 = vdwg.mxu0
  %v749 = vxor.u32 %v674, 2147483648
  %v750 = vmul.f32 %v749, 1.442695
  %v751 = vpow.pop %v750
  %v752 = vadd.f32 %v751, 1.0
  %v753 = vrcp.pop %v752
  %v754 = vmul.f32 1.0, %v753
  %v755 = vxor.u32 %v676, 2147483648
  %v756 = vmul.f32 %v755, 1.442695
  %v757 = vpow.pop %v756
  %v758 = vadd.f32 %v757, 1.0
  %v759 = vrcp.pop %v758
  %v760 = vmul.f32 1.0, %v759
  %v761 = vtanh.pop %v745
  %v762 = vxor.u32 %v747, 2147483648
  %v763 = vmul.f32 %v762, 1.442695
  %v764 = vpow.pop %v763
  %v765 = vadd.f32 %v764, 1.0
  %v766 = vrcp.pop %v765
  %v767 = vmul.f32 1.0, %v766
  %v768 = vmul.f32 %v760, 0.0
  %v769 = vmul.f32 %v754, %v761
  %v770 = vadd.f32 %v768, %v769
  %v771 = vtanh.pop %v770
  %v772 = vmul.f32 %v767, %v771
  %773 = vst [vmem:[%s9] sm:$0xff] %v772
  %v774 = vld [vmem:[%s6] sm:$0x1]
  %v775 = vld [vmem:[%s7] sm:$0x1]
  %v776 = vlaneseq
  %v777 = vshrl.u32 %v776, 7
  %v778 = vsub.s32 0, %v777
  %v779 = vrot.slane %v774, %v778
  %v780 = vmul.f32 %v772, %v779
  %781 = vadd.xlane.f32.xlu0 %v780
  %v782 = vpop.xlane.xlu0 %781
  %v783 = vlaneseq
  %v784 = vshrl.u32 %v783, 7
  %v785 = vsub.s32 0, %v784
  %v786 = vrot.slane %v775, %v785
  %v787 = vadd.f32 %v782, %v786
  %vm788 = vcmask 7168
  %789 = vst.msk [vmem:[%s8] sm:$0xff] %vm788, %v787
  %s790 = scalar_lea.vmem [#allocation2], 32
  %v791 = vld [vmem:[%s790] sm:$0xff]
  %v792 = vld [vmem:[%s790 + $0x8] sm:$0xff]
  %v793 = vld [vmem:[%s790 + $0x10] sm:$0xff]
  %v794 = vld [vmem:[%s790 + $0x18] sm:$0xff]
  %795 = vmatprep.subr.mxu0 %v280
  %796 = vmatpush1.msra.mxu0 %v279
  %797 = vmatprep.subr.mxu0 %v276
  %798 = vmatpush1.msra.mxu0 %v275
  %799 = vmatprep.subr.mxu0 %v272
  %800 = vmatpush1.msra.mxu0 %v271
  %801 = vmatprep.subr.mxu0 %v268
  %802 = vmatpush1.msra.mxu0 %v267
  %803 = vmatprep.subr.mxu0 %v264
  %804 = vmatpush1.msra.mxu0 %v263
  %805 = vmatprep.subr.mxu0 %v260
  %806 = vmatpush1.msra.mxu0 %v259
  %807 = vmatprep.subr.mxu0 %v256
  %808 = vmatpush1.msra.mxu0 %v255
  %809 = vmatprep.subr.mxu0 %v252
  %810 = vmatpush1.msra.mxu0 %v251
  %811 = vmatprep.subr.mxu0 %v248
  %812 = vmatpush1.msra.mxu0 %v247
  %813 = vmatprep.subr.mxu0 %v244
  %814 = vmatpush1.msra.mxu0 %v243
  %815 = vmatprep.subr.mxu0 %v240
  %816 = vmatpush1.msra.mxu0 %v239
  %817 = vmatprep.subr.mxu0 %v236
  %818 = vmatpush1.msra.mxu0 %v235
  %819 = vmatprep.subr.mxu0 %v232
  %820 = vmatpush1.msra.mxu0 %v231
  %821 = vmatprep.subr.mxu0 %v228
  %822 = vmatpush1.msra.mxu0 %v227
  %823 = vmatprep.subr.mxu0 %v224
  %824 = vmatpush1.msra.mxu0 %v223
  %825 = vmatprep.subr.mxu0 %v220
  %826 = vmatpush1.msra.mxu0 %v219
  %827 = vmatprep.subr.mxu0 0.0
  %828 = vmatpush2.msra.mxu0 0.0
  %829 = vmatprep.subr.mxu0 0.0
  %830 = vmatpush2.msra.mxu0 0.0
  %831 = vmatprep.subr.mxu0 0.0
  %832 = vmatpush2.msra.mxu0 0.0
  %833 = vmatprep.subr.mxu0 0.0
  %834 = vmatpush2.msra.mxu0 0.0
  %835 = vmatprep.subr.mxu0 0.0
  %836 = vmatpush2.msra.mxu0 0.0
  %837 = vmatprep.subr.mxu0 0.0
  %838 = vmatpush2.msra.mxu0 0.0
  %839 = vmatprep.subr.mxu0 0.0
  %840 = vmatpush2.msra.mxu0 0.0
  %841 = vmatprep.subr.mxu0 0.0
  %842 = vmatpush2.msra.mxu0 0.0
  %843 = vmatprep.subr.mxu0 0.0
  %844 = vmatpush2.msra.mxu0 0.0
  %845 = vmatprep.subr.mxu0 0.0
  %846 = vmatpush2.msra.mxu0 0.0
  %847 = vmatprep.subr.mxu0 0.0
  %848 = vmatpush2.msra.mxu0 0.0
  %849 = vmatprep.subr.mxu0 0.0
  %850 = vmatpush2.msra.mxu0 0.0
  %851 = vmatprep.subr.mxu0 0.0
  %852 = vmatpush2.msra.mxu0 0.0
  %853 = vmatprep.subr.mxu0 0.0
  %854 = vmatpush2.msra.mxu0 0.0
  %855 = vmatprep.subr.mxu0 0.0
  %856 = vmatpush2.msra.mxu0 0.0
  %857 = vmatprep.subr.mxu0 0.0
  %858 = vmatpush2.msra.mxu0 0.0
  %859 = vmatprep.mubr.f32.mxu0 0.0
  %860 = vmatmul.mubr.f32.gmra.mxu0 %v606
  %v861 = vpop.f32.mrf.mxu0
  %v862 = vadd.f32 0.0, %v861
  %v863 = vpop.f32.mrf.mxu0
  %v864 = vadd.f32 0.0, %v863
  %865 = vdwg.mxu0
  %866 = vmatprep.subr.mxu0 %v282
  %867 = vmatpush1.msra.mxu0 %v281
  %868 = vmatprep.subr.mxu0 %v278
  %869 = vmatpush1.msra.mxu0 %v277
  %870 = vmatprep.subr.mxu0 %v274
  %871 = vmatpush1.msra.mxu0 %v273
  %872 = vmatprep.subr.mxu0 %v270
  %873 = vmatpush1.msra.mxu0 %v269
  %874 = vmatprep.subr.mxu0 %v266
  %875 = vmatpush1.msra.mxu0 %v265
  %876 = vmatprep.subr.mxu0 %v262
  %877 = vmatpush1.msra.mxu0 %v261
  %878 = vmatprep.subr.mxu0 %v258
  %879 = vmatpush1.msra.mxu0 %v257
  %880 = vmatprep.subr.mxu0 %v254
  %881 = vmatpush1.msra.mxu0 %v253
  %882 = vmatprep.subr.mxu0 %v250
  %883 = vmatpush1.msra.mxu0 %v249
  %884 = vmatprep.subr.mxu0 %v246
  %885 = vmatpush1.msra.mxu0 %v245
  %886 = vmatprep.subr.mxu0 %v242
  %887 = vmatpush1.msra.mxu0 %v241
  %888 = vmatprep.subr.mxu0 %v238
  %889 = vmatpush1.msra.mxu0 %v237
  %890 = vmatprep.subr.mxu0 %v234
  %891 = vmatpush1.msra.mxu0 %v233
  %892 = vmatprep.subr.mxu0 %v230
  %893 = vmatpush1.msra.mxu0 %v229
  %894 = vmatprep.subr.mxu0 %v226
  %895 = vmatpush1.msra.mxu0 %v225
  %896 = vmatprep.subr.mxu0 %v222
  %897 = vmatpush1.msra.mxu0 %v221
  %898 = vmatprep.subr.mxu0 0.0
  %899 = vmatpush2.msra.mxu0 0.0
  %900 = vmatprep.subr.mxu0 0.0
  %901 = vmatpush2.msra.mxu0 0.0
  %902 = vmatprep.subr.mxu0 0.0
  %903 = vmatpush2.msra.mxu0 0.0
  %904 = vmatprep.subr.mxu0 0.0
  %905 = vmatpush2.msra.mxu0 0.0
  %906 = vmatprep.subr.mxu0 0.0
  %907 = vmatpush2.msra.mxu0 0.0
  %908 = vmatprep.subr.mxu0 0.0
  %909 = vmatpush2.msra.mxu0 0.0
  %910 = vmatprep.subr.mxu0 0.0
  %911 = vmatpush2.msra.mxu0 0.0
  %912 = vmatprep.subr.mxu0 0.0
  %913 = vmatpush2.msra.mxu0 0.0
  %914 = vmatprep.subr.mxu0 0.0
  %915 = vmatpush2.msra.mxu0 0.0
  %916 = vmatprep.subr.mxu0 0.0
  %917 = vmatpush2.msra.mxu0 0.0
  %918 = vmatprep.subr.mxu0 0.0
  %919 = vmatpush2.msra.mxu0 0.0
  %920 = vmatprep.subr.mxu0 0.0
  %921 = vmatpush2.msra.mxu0 0.0
  %922 = vmatprep.subr.mxu0 0.0
  %923 = vmatpush2.msra.mxu0 0.0
  %924 = vmatprep.subr.mxu0 0.0
  %925 = vmatpush2.msra.mxu0 0.0
  %926 = vmatprep.subr.mxu0 0.0
  %927 = vmatpush2.msra.mxu0 0.0
  %928 = vmatprep.subr.mxu0 0.0
  %929 = vmatpush2.msra.mxu0 0.0
  %930 = vmatprep.mubr.f32.mxu0 0.0
  %931 = vmatmul.mubr.f32.gmra.mxu0 %v606
  %v932 = vpop.f32.mrf.mxu0
  %v933 = vadd.f32 0.0, %v932
  %v934 = vpop.f32.mrf.mxu0
  %v935 = vadd.f32 0.0, %v934
  %936 = vdwg.mxu0
  %v937 = vadd.f32 %v791, %v862
  %v938 = vadd.f32 %v792, %v864
  %v939 = vadd.f32 %v793, %v933
  %v940 = vadd.f32 %v794, %v935
  %v941 = vxor.u32 %v937, 2147483648
  %v942 = vmul.f32 %v941, 1.442695
  %v943 = vpow.pop %v942
  %v944 = vadd.f32 %v943, 1.0
  %v945 = vrcp.pop %v944
  %v946 = vmul.f32 1.0, %v945
  %v947 = vxor.u32 %v938, 2147483648
  %v948 = vmul.f32 %v947, 1.442695
  %v949 = vpow.pop %v948
  %v950 = vadd.f32 %v949, 1.0
  %v951 = vrcp.pop %v950
  %v952 = vmul.f32 1.0, %v951
  %v953 = vtanh.pop %v939
  %v954 = vxor.u32 %v940, 2147483648
  %v955 = vmul.f32 %v954, 1.442695
  %v956 = vpow.pop %v955
  %v957 = vadd.f32 %v956, 1.0
  %v958 = vrcp.pop %v957
  %v959 = vmul.f32 1.0, %v958
  %v960 = vmul.f32 %v952, %v604
  %v961 = vmul.f32 %v946, %v953
  %v962 = vadd.f32 %v960, %v961
  %v963 = vtanh.pop %v962
  %v964 = vmul.f32 %v959, %v963
  %965 = vmatprep.subr.mxu0 %v344
  %966 = vmatpush1.msra.mxu0 %v343
  %967 = vmatprep.subr.mxu0 %v340
  %968 = vmatpush1.msra.mxu0 %v339
  %969 = vmatprep.subr.mxu0 %v336
  %970 = vmatpush1.msra.mxu0 %v335
  %971 = vmatprep.subr.mxu0 %v332
  %972 = vmatpush1.msra.mxu0 %v331
  %973 = vmatprep.subr.mxu0 %v328
  %974 = vmatpush1.msra.mxu0 %v327
  %975 = vmatprep.subr.mxu0 %v324
  %976 = vmatpush1.msra.mxu0 %v323
  %977 = vmatprep.subr.mxu0 %v320
  %978 = vmatpush1.msra.mxu0 %v319
  %979 = vmatprep.subr.mxu0 %v316
  %980 = vmatpush1.msra.mxu0 %v315
  %981 = vmatprep.subr.mxu0 %v312
  %982 = vmatpush1.msra.mxu0 %v311
  %983 = vmatprep.subr.mxu0 %v308
  %984 = vmatpush1.msra.mxu0 %v307
  %985 = vmatprep.subr.mxu0 %v304
  %986 = vmatpush1.msra.mxu0 %v303
  %987 = vmatprep.subr.mxu0 %v300
  %988 = vmatpush1.msra.mxu0 %v299
  %989 = vmatprep.subr.mxu0 %v296
  %990 = vmatpush1.msra.mxu0 %v295
  %991 = vmatprep.subr.mxu0 %v292
  %992 = vmatpush1.msra.mxu0 %v291
  %993 = vmatprep.subr.mxu0 %v288
  %994 = vmatpush1.msra.mxu0 %v287
  %995 = vmatprep.subr.mxu0 %v284
  %996 = vmatpush1.msra.mxu0 %v283
  %997 = vmatprep.subr.mxu0 %v408
  %998 = vmatpush2.msra.mxu0 %v407
  %999 = vmatprep.subr.mxu0 %v404
  %1000 = vmatpush2.msra.mxu0 %v403
  %1001 = vmatprep.subr.mxu0 %v400
  %1002 = vmatpush2.msra.mxu0 %v399
  %1003 = vmatprep.subr.mxu0 %v396
  %1004 = vmatpush2.msra.mxu0 %v395
  %1005 = vmatprep.subr.mxu0 %v392
  %1006 = vmatpush2.msra.mxu0 %v391
  %1007 = vmatprep.subr.mxu0 %v388
  %1008 = vmatpush2.msra.mxu0 %v387
  %1009 = vmatprep.subr.mxu0 %v384
  %1010 = vmatpush2.msra.mxu0 %v383
  %1011 = vmatprep.subr.mxu0 %v380
  %1012 = vmatpush2.msra.mxu0 %v379
  %1013 = vmatprep.subr.mxu0 %v376
  %1014 = vmatpush2.msra.mxu0 %v375
  %1015 = vmatprep.subr.mxu0 %v372
  %1016 = vmatpush2.msra.mxu0 %v371
  %1017 = vmatprep.subr.mxu0 %v368
  %1018 = vmatpush2.msra.mxu0 %v367
  %1019 = vmatprep.subr.mxu0 %v364
  %1020 = vmatpush2.msra.mxu0 %v363
  %1021 = vmatprep.subr.mxu0 %v360
  %1022 = vmatpush2.msra.mxu0 %v359
  %1023 = vmatprep.subr.mxu0 %v356
  %1024 = vmatpush2.msra.mxu0 %v355
  %1025 = vmatprep.subr.mxu0 %v352
  %1026 = vmatpush2.msra.mxu0 %v351
  %1027 = vmatprep.subr.mxu0 %v348
  %1028 = vmatpush2.msra.mxu0 %v347
  %1029 = vmatprep.mubr.f32.mxu0 %v772
  %1030 = vmatmul.mubr.f32.gmra.mxu0 %v964
  %v1031 = vpop.f32.mrf.mxu0
  %v1032 = vadd.f32 %v416, %v1031
  %v1033 = vpop.f32.mrf.mxu0
  %v1034 = vadd.f32 %v420, %v1033
  %1035 = vdwg.mxu0
  %1036 = vmatprep.subr.mxu0 %v346
  %1037 = vmatpush1.msra.mxu0 %v345
  %1038 = vmatprep.subr.mxu0 %v342
  %1039 = vmatpush1.msra.mxu0 %v341
  %1040 = vmatprep.subr.mxu0 %v338
  %1041 = vmatpush1.msra.mxu0 %v337
  %1042 = vmatprep.subr.mxu0 %v334
  %1043 = vmatpush1.msra.mxu0 %v333
  %1044 = vmatprep.subr.mxu0 %v330
  %1045 = vmatpush1.msra.mxu0 %v329
  %1046 = vmatprep.subr.mxu0 %v326
  %1047 = vmatpush1.msra.mxu0 %v325
  %1048 = vmatprep.subr.mxu0 %v322
  %1049 = vmatpush1.msra.mxu0 %v321
  %1050 = vmatprep.subr.mxu0 %v318
  %1051 = vmatpush1.msra.mxu0 %v317
  %1052 = vmatprep.subr.mxu0 %v314
  %1053 = vmatpush1.msra.mxu0 %v313
  %1054 = vmatprep.subr.mxu0 %v310
  %1055 = vmatpush1.msra.mxu0 %v309
  %1056 = vmatprep.subr.mxu0 %v306
  %1057 = vmatpush1.msra.mxu0 %v305
  %1058 = vmatprep.subr.mxu0 %v302
  %1059 = vmatpush1.msra.mxu0 %v301
  %1060 = vmatprep.subr.mxu0 %v298
  %1061 = vmatpush1.msra.mxu0 %v297
  %1062 = vmatprep.subr.mxu0 %v294
  %1063 = vmatpush1.msra.mxu0 %v293
  %1064 = vmatprep.subr.mxu0 %v290
  %1065 = vmatpush1.msra.mxu0 %v289
  %1066 = vmatprep.subr.mxu0 %v286
  %1067 = vmatpush1.msra.mxu0 %v285
  %1068 = vmatprep.subr.mxu0 %v410
  %1069 = vmatpush2.msra.mxu0 %v409
  %1070 = vmatprep.subr.mxu0 %v406
  %1071 = vmatpush2.msra.mxu0 %v405
  %1072 = vmatprep.subr.mxu0 %v402
  %1073 = vmatpush2.msra.mxu0 %v401
  %1074 = vmatprep.subr.mxu0 %v398
  %1075 = vmatpush2.msra.mxu0 %v397
  %1076 = vmatprep.subr.mxu0 %v394
  %1077 = vmatpush2.msra.mxu0 %v393
  %1078 = vmatprep.subr.mxu0 %v390
  %1079 = vmatpush2.msra.mxu0 %v389
  %1080 = vmatprep.subr.mxu0 %v386
  %1081 = vmatpush2.msra.mxu0 %v385
  %1082 = vmatprep.subr.mxu0 %v382
  %1083 = vmatpush2.msra.mxu0 %v381
  %1084 = vmatprep.subr.mxu0 %v378
  %1085 = vmatpush2.msra.mxu0 %v377
  %1086 = vmatprep.subr.mxu0 %v374
  %1087 = vmatpush2.msra.mxu0 %v373
  %1088 = vmatprep.subr.mxu0 %v370
  %1089 = vmatpush2.msra.mxu0 %v369
  %1090 = vmatprep.subr.mxu0 %v366
  %1091 = vmatpush2.msra.mxu0 %v365
  %1092 = vmatprep.subr.mxu0 %v362
  %1093 = vmatpush2.msra.mxu0 %v361
  %1094 = vmatprep.subr.mxu0 %v358
  %1095 = vmatpush2.msra.mxu0 %v357
  %1096 = vmatprep.subr.mxu0 %v354
  %1097 = vmatpush2.msra.mxu0 %v353
  %1098 = vmatprep.subr.mxu0 %v350
  %1099 = vmatpush2.msra.mxu0 %v349
  %1100 = vmatprep.mubr.f32.mxu0 %v772
  %1101 = vmatmul.mubr.f32.gmra.mxu0 %v964
  %v1102 = vpop.f32.mrf.mxu0
  %v1103 = vadd.f32 %v424, %v1102
  %v1104 = vpop.f32.mrf.mxu0
  %v1105 = vadd.f32 %v428, %v1104
  %1106 = vdwg.mxu0
  %v1107 = vxor.u32 %v1032, 2147483648
  %v1108 = vmul.f32 %v1107, 1.442695
  %v1109 = vpow.pop %v1108
  %v1110 = vadd.f32 %v1109, 1.0
  %v1111 = vrcp.pop %v1110
  %v1112 = vmul.f32 1.0, %v1111
  %v1113 = vxor.u32 %v1034, 2147483648
  %v1114 = vmul.f32 %v1113, 1.442695
  %v1115 = vpow.pop %v1114
  %v1116 = vadd.f32 %v1115, 1.0
  %v1117 = vrcp.pop %v1116
  %v1118 = vmul.f32 1.0, %v1117
  %v1119 = vtanh.pop %v1103
  %v1120 = vxor.u32 %v1105, 2147483648
  %v1121 = vmul.f32 %v1120, 1.442695
  %v1122 = vpow.pop %v1121
  %v1123 = vadd.f32 %v1122, 1.0
  %v1124 = vrcp.pop %v1123
  %v1125 = vmul.f32 1.0, %v1124
  %v1126 = vmul.f32 %v1118, %v770
  %v1127 = vmul.f32 %v1112, %v1119
  %v1128 = vadd.f32 %v1126, %v1127
  %v1129 = vtanh.pop %v1128
  %v1130 = vmul.f32 %v1125, %v1129
  %s1131 = scalar_lea.vmem %s9, 8
  %1132 = vst [vmem:[%s1131] sm:$0xff] %v1130
  %v1133 = vld [vmem:[%s6 + $0x1] sm:$0x1]
  %v1134 = vld [vmem:[%s7 + $0x1] sm:$0x1]
  %v1135 = vlaneseq
  %v1136 = vshrl.u32 %v1135, 7
  %v1137 = vsub.s32 0, %v1136
  %v1138 = vrot.slane %v1133, %v1137
  %v1139 = vmul.f32 %v1130, %v1138
  %1140 = vadd.xlane.f32.xlu0 %v1139
  %v1141 = vpop.xlane.xlu0 %1140
  %v1142 = vlaneseq
  %v1143 = vshrl.u32 %v1142, 7
  %v1144 = vsub.s32 0, %v1143
  %v1145 = vrot.slane %v1134, %v1144
  %v1146 = vadd.f32 %v1141, %v1145
  %s1147 = scalar_lea.vmem %s8, 8
  %1148 = vst.msk [vmem:[%s1147] sm:$0xff] %vm788, %v1146
  %s1149 = scalar_lea.vmem [#allocation2], 64
  %v1150 = vld [vmem:[%s1149] sm:$0xff]
  %v1151 = vld [vmem:[%s1149 + $0x8] sm:$0xff]
  %v1152 = vld [vmem:[%s1149 + $0x10] sm:$0xff]
  %v1153 = vld [vmem:[%s1149 + $0x18] sm:$0xff]
  %1154 = vmatprep.subr.mxu0 %v280
  %1155 = vmatpush1.msra.mxu0 %v279
  %1156 = vmatprep.subr.mxu0 %v276
  %1157 = vmatpush1.msra.mxu0 %v275
  %1158 = vmatprep.subr.mxu0 %v272
  %1159 = vmatpush1.msra.mxu0 %v271
  %1160 = vmatprep.subr.mxu0 %v268
  %1161 = vmatpush1.msra.mxu0 %v267
  %1162 = vmatprep.subr.mxu0 %v264
  %1163 = vmatpush1.msra.mxu0 %v263
  %1164 = vmatprep.subr.mxu0 %v260
  %1165 = vmatpush1.msra.mxu0 %v259
  %1166 = vmatprep.subr.mxu0 %v256
  %1167 = vmatpush1.msra.mxu0 %v255
  %1168 = vmatprep.subr.mxu0 %v252
  %1169 = vmatpush1.msra.mxu0 %v251
  %1170 = vmatprep.subr.mxu0 %v248
  %1171 = vmatpush1.msra.mxu0 %v247
  %1172 = vmatprep.subr.mxu0 %v244
  %1173 = vmatpush1.msra.mxu0 %v243
  %1174 = vmatprep.subr.mxu0 %v240
  %1175 = vmatpush1.msra.mxu0 %v239
  %1176 = vmatprep.subr.mxu0 %v236
  %1177 = vmatpush1.msra.mxu0 %v235
  %1178 = vmatprep.subr.mxu0 %v232
  %1179 = vmatpush1.msra.mxu0 %v231
  %1180 = vmatprep.subr.mxu0 %v228
  %1181 = vmatpush1.msra.mxu0 %v227
  %1182 = vmatprep.subr.mxu0 %v224
  %1183 = vmatpush1.msra.mxu0 %v223
  %1184 = vmatprep.subr.mxu0 %v220
  %1185 = vmatpush1.msra.mxu0 %v219
  %1186 = vmatprep.subr.mxu0 0.0
  %1187 = vmatpush2.msra.mxu0 0.0
  %1188 = vmatprep.subr.mxu0 0.0
  %1189 = vmatpush2.msra.mxu0 0.0
  %1190 = vmatprep.subr.mxu0 0.0
  %1191 = vmatpush2.msra.mxu0 0.0
  %1192 = vmatprep.subr.mxu0 0.0
  %1193 = vmatpush2.msra.mxu0 0.0
  %1194 = vmatprep.subr.mxu0 0.0
  %1195 = vmatpush2.msra.mxu0 0.0
  %1196 = vmatprep.subr.mxu0 0.0
  %1197 = vmatpush2.msra.mxu0 0.0
  %1198 = vmatprep.subr.mxu0 0.0
  %1199 = vmatpush2.msra.mxu0 0.0
  %1200 = vmatprep.subr.mxu0 0.0
  %1201 = vmatpush2.msra.mxu0 0.0
  %1202 = vmatprep.subr.mxu0 0.0
  %1203 = vmatpush2.msra.mxu0 0.0
  %1204 = vmatprep.subr.mxu0 0.0
  %1205 = vmatpush2.msra.mxu0 0.0
  %1206 = vmatprep.subr.mxu0 0.0
  %1207 = vmatpush2.msra.mxu0 0.0
  %1208 = vmatprep.subr.mxu0 0.0
  %1209 = vmatpush2.msra.mxu0 0.0
  %1210 = vmatprep.subr.mxu0 0.0
  %1211 = vmatpush2.msra.mxu0 0.0
  %1212 = vmatprep.subr.mxu0 0.0
  %1213 = vmatpush2.msra.mxu0 0.0
  %1214 = vmatprep.subr.mxu0 0.0
  %1215 = vmatpush2.msra.mxu0 0.0
  %1216 = vmatprep.subr.mxu0 0.0
  %1217 = vmatpush2.msra.mxu0 0.0
  %1218 = vmatprep.mubr.f32.mxu0 0.0
  %1219 = vmatmul.mubr.f32.gmra.mxu0 %v964
  %v1220 = vpop.f32.mrf.mxu0
  %v1221 = vadd.f32 0.0, %v1220
  %v1222 = vpop.f32.mrf.mxu0
  %v1223 = vadd.f32 0.0, %v1222
  %1224 = vdwg.mxu0
  %1225 = vmatprep.subr.mxu0 %v282
  %1226 = vmatpush1.msra.mxu0 %v281
  %1227 = vmatprep.subr.mxu0 %v278
  %1228 = vmatpush1.msra.mxu0 %v277
  %1229 = vmatprep.subr.mxu0 %v274
  %1230 = vmatpush1.msra.mxu0 %v273
  %1231 = vmatprep.subr.mxu0 %v270
  %1232 = vmatpush1.msra.mxu0 %v269
  %1233 = vmatprep.subr.mxu0 %v266
  %1234 = vmatpush1.msra.mxu0 %v265
  %1235 = vmatprep.subr.mxu0 %v262
  %1236 = vmatpush1.msra.mxu0 %v261
  %1237 = vmatprep.subr.mxu0 %v258
  %1238 = vmatpush1.msra.mxu0 %v257
  %1239 = vmatprep.subr.mxu0 %v254
  %1240 = vmatpush1.msra.mxu0 %v253
  %1241 = vmatprep.subr.mxu0 %v250
  %1242 = vmatpush1.msra.mxu0 %v249
  %1243 = vmatprep.subr.mxu0 %v246
  %1244 = vmatpush1.msra.mxu0 %v245
  %1245 = vmatprep.subr.mxu0 %v242
  %1246 = vmatpush1.msra.mxu0 %v241
  %1247 = vmatprep.subr.mxu0 %v238
  %1248 = vmatpush1.msra.mxu0 %v237
  %1249 = vmatprep.subr.mxu0 %v234
  %1250 = vmatpush1.msra.mxu0 %v233
  %1251 = vmatprep.subr.mxu0 %v230
  %1252 = vmatpush1.msra.mxu0 %v229
  %1253 = vmatprep.subr.mxu0 %v226
  %1254 = vmatpush1.msra.mxu0 %v225
  %1255 = vmatprep.subr.mxu0 %v222
  %1256 = vmatpush1.msra.mxu0 %v221
  %1257 = vmatprep.subr.mxu0 0.0
  %1258 = vmatpush2.msra.mxu0 0.0
  %1259 = vmatprep.subr.mxu0 0.0
  %1260 = vmatpush2.msra.mxu0 0.0
  %1261 = vmatprep.subr.mxu0 0.0
  %1262 = vmatpush2.msra.mxu0 0.0
  %1263 = vmatprep.subr.mxu0 0.0
  %1264 = vmatpush2.msra.mxu0 0.0
  %1265 = vmatprep.subr.mxu0 0.0
  %1266 = vmatpush2.msra.mxu0 0.0
  %1267 = vmatprep.subr.mxu0 0.0
  %1268 = vmatpush2.msra.mxu0 0.0
  %1269 = vmatprep.subr.mxu0 0.0
  %1270 = vmatpush2.msra.mxu0 0.0
  %1271 = vmatprep.subr.mxu0 0.0
  %1272 = vmatpush2.msra.mxu0 0.0
  %1273 = vmatprep.subr.mxu0 0.0
  %1274 = vmatpush2.msra.mxu0 0.0
  %1275 = vmatprep.subr.mxu0 0.0
  %1276 = vmatpush2.msra.mxu0 0.0
  %1277 = vmatprep.subr.mxu0 0.0
  %1278 = vmatpush2.msra.mxu0 0.0
  %1279 = vmatprep.subr.mxu0 0.0
  %1280 = vmatpush2.msra.mxu0 0.0
  %1281 = vmatprep.subr.mxu0 0.0
  %1282 = vmatpush2.msra.mxu0 0.0
  %1283 = vmatprep.subr.mxu0 0.0
  %1284 = vmatpush2.msra.mxu0 0.0
  %1285 = vmatprep.subr.mxu0 0.0
  %1286 = vmatpush2.msra.mxu0 0.0
  %1287 = vmatprep.subr.mxu0 0.0
  %1288 = vmatpush2.msra.mxu0 0.0
  %1289 = vmatprep.mubr.f32.mxu0 0.0
  %1290 = vmatmul.mubr.f32.gmra.mxu0 %v964
  %v1291 = vpop.f32.mrf.mxu0
  %v1292 = vadd.f32 0.0, %v1291
  %v1293 = vpop.f32.mrf.mxu0
  %v1294 = vadd.f32 0.0, %v1293
  %1295 = vdwg.mxu0
  %v1296 = vadd.f32 %v1150, %v1221
  %v1297 = vadd.f32 %v1151, %v1223
  %v1298 = vadd.f32 %v1152, %v1292
  %v1299 = vadd.f32 %v1153, %v1294
  %v1300 = vxor.u32 %v1296, 2147483648
  %v1301 = vmul.f32 %v1300, 1.442695
  %v1302 = vpow.pop %v1301
  %v1303 = vadd.f32 %v1302, 1.0
  %v1304 = vrcp.pop %v1303
  %v1305 = vmul.f32 1.0, %v1304
  %v1306 = vxor.u32 %v1297, 2147483648
  %v1307 = vmul.f32 %v1306, 1.442695
  %v1308 = vpow.pop %v1307
  %v1309 = vadd.f32 %v1308, 1.0
  %v1310 = vrcp.pop %v1309
  %v1311 = vmul.f32 1.0, %v1310
  %v1312 = vtanh.pop %v1298
  %v1313 = vxor.u32 %v1299, 2147483648
  %v1314 = vmul.f32 %v1313, 1.442695
  %v1315 = vpow.pop %v1314
  %v1316 = vadd.f32 %v1315, 1.0
  %v1317 = vrcp.pop %v1316
  %v1318 = vmul.f32 1.0, %v1317
  %v1319 = vmul.f32 %v1311, %v962
  %v1320 = vmul.f32 %v1305, %v1312
  %v1321 = vadd.f32 %v1319, %v1320
  %v1322 = vtanh.pop %v1321
  %v1323 = vmul.f32 %v1318, %v1322
  %1324 = vmatprep.subr.mxu0 %v344
  %1325 = vmatpush1.msra.mxu0 %v343
  %1326 = vmatprep.subr.mxu0 %v340
  %1327 = vmatpush1.msra.mxu0 %v339
  %1328 = vmatprep.subr.mxu0 %v336
  %1329 = vmatpush1.msra.mxu0 %v335
  %1330 = vmatprep.subr.mxu0 %v332
  %1331 = vmatpush1.msra.mxu0 %v331
  %1332 = vmatprep.subr.mxu0 %v328
  %1333 = vmatpush1.msra.mxu0 %v327
  %1334 = vmatprep.subr.mxu0 %v324
  %1335 = vmatpush1.msra.mxu0 %v323
  %1336 = vmatprep.subr.mxu0 %v320
  %1337 = vmatpush1.msra.mxu0 %v319
  %1338 = vmatprep.subr.mxu0 %v316
  %1339 = vmatpush1.msra.mxu0 %v315
  %1340 = vmatprep.subr.mxu0 %v312
  %1341 = vmatpush1.msra.mxu0 %v311
  %1342 = vmatprep.subr.mxu0 %v308
  %1343 = vmatpush1.msra.mxu0 %v307
  %1344 = vmatprep.subr.mxu0 %v304
  %1345 = vmatpush1.msra.mxu0 %v303
  %1346 = vmatprep.subr.mxu0 %v300
  %1347 = vmatpush1.msra.mxu0 %v299
  %1348 = vmatprep.subr.mxu0 %v296
  %1349 = vmatpush1.msra.mxu0 %v295
  %1350 = vmatprep.subr.mxu0 %v292
  %1351 = vmatpush1.msra.mxu0 %v291
  %1352 = vmatprep.subr.mxu0 %v288
  %1353 = vmatpush1.msra.mxu0 %v287
  %1354 = vmatprep.subr.mxu0 %v284
  %1355 = vmatpush1.msra.mxu0 %v283
  %1356 = vmatprep.subr.mxu0 %v408
  %1357 = vmatpush2.msra.mxu0 %v407
  %1358 = vmatprep.subr.mxu0 %v404
  %1359 = vmatpush2.msra.mxu0 %v403
  %1360 = vmatprep.subr.mxu0 %v400
  %1361 = vmatpush2.msra.mxu0 %v399
  %1362 = vmatprep.subr.mxu0 %v396
  %1363 = vmatpush2.msra.mxu0 %v395
  %1364 = vmatprep.subr.mxu0 %v392
  %1365 = vmatpush2.msra.mxu0 %v391
  %1366 = vmatprep.subr.mxu0 %v388
  %1367 = vmatpush2.msra.mxu0 %v387
  %1368 = vmatprep.subr.mxu0 %v384
  %1369 = vmatpush2.msra.mxu0 %v383
  %1370 = vmatprep.subr.mxu0 %v380
  %1371 = vmatpush2.msra.mxu0 %v379
  %1372 = vmatprep.subr.mxu0 %v376
  %1373 = vmatpush2.msra.mxu0 %v375
  %1374 = vmatprep.subr.mxu0 %v372
  %1375 = vmatpush2.msra.mxu0 %v371
  %1376 = vmatprep.subr.mxu0 %v368
  %1377 = vmatpush2.msra.mxu0 %v367
  %1378 = vmatprep.subr.mxu0 %v364
  %1379 = vmatpush2.msra.mxu0 %v363
  %1380 = vmatprep.subr.mxu0 %v360
  %1381 = vmatpush2.msra.mxu0 %v359
  %1382 = vmatprep.subr.mxu0 %v356
  %1383 = vmatpush2.msra.mxu0 %v355
  %1384 = vmatprep.subr.mxu0 %v352
  %1385 = vmatpush2.msra.mxu0 %v351
  %1386 = vmatprep.subr.mxu0 %v348
  %1387 = vmatpush2.msra.mxu0 %v347
  %1388 = vmatprep.mubr.f32.mxu0 %v1130
  %1389 = vmatmul.mubr.f32.gmra.mxu0 %v1323
  %v1390 = vpop.f32.mrf.mxu0
  %v1391 = vadd.f32 %v416, %v1390
  %v1392 = vpop.f32.mrf.mxu0
  %v1393 = vadd.f32 %v420, %v1392
  %1394 = vdwg.mxu0
  %1395 = vmatprep.subr.mxu0 %v346
  %1396 = vmatpush1.msra.mxu0 %v345
  %1397 = vmatprep.subr.mxu0 %v342
  %1398 = vmatpush1.msra.mxu0 %v341
  %1399 = vmatprep.subr.mxu0 %v338
  %1400 = vmatpush1.msra.mxu0 %v337
  %1401 = vmatprep.subr.mxu0 %v334
  %1402 = vmatpush1.msra.mxu0 %v333
  %1403 = vmatprep.subr.mxu0 %v330
  %1404 = vmatpush1.msra.mxu0 %v329
  %1405 = vmatprep.subr.mxu0 %v326
  %1406 = vmatpush1.msra.mxu0 %v325
  %1407 = vmatprep.subr.mxu0 %v322
  %1408 = vmatpush1.msra.mxu0 %v321
  %1409 = vmatprep.subr.mxu0 %v318
  %1410 = vmatpush1.msra.mxu0 %v317
  %1411 = vmatprep.subr.mxu0 %v314
  %1412 = vmatpush1.msra.mxu0 %v313
  %1413 = vmatprep.subr.mxu0 %v310
  %1414 = vmatpush1.msra.mxu0 %v309
  %1415 = vmatprep.subr.mxu0 %v306
  %1416 = vmatpush1.msra.mxu0 %v305
  %1417 = vmatprep.subr.mxu0 %v302
  %1418 = vmatpush1.msra.mxu0 %v301
  %1419 = vmatprep.subr.mxu0 %v298
  %1420 = vmatpush1.msra.mxu0 %v297
  %1421 = vmatprep.subr.mxu0 %v294
  %1422 = vmatpush1.msra.mxu0 %v293
  %1423 = vmatprep.subr.mxu0 %v290
  %1424 = vmatpush1.msra.mxu0 %v289
  %1425 = vmatprep.subr.mxu0 %v286
  %1426 = vmatpush1.msra.mxu0 %v285
  %1427 = vmatprep.subr.mxu0 %v410
  %1428 = vmatpush2.msra.mxu0 %v409
  %1429 = vmatprep.subr.mxu0 %v406
  %1430 = vmatpush2.msra.mxu0 %v405
  %1431 = vmatprep.subr.mxu0 %v402
  %1432 = vmatpush2.msra.mxu0 %v401
  %1433 = vmatprep.subr.mxu0 %v398
  %1434 = vmatpush2.msra.mxu0 %v397
  %1435 = vmatprep.subr.mxu0 %v394
  %1436 = vmatpush2.msra.mxu0 %v393
  %1437 = vmatprep.subr.mxu0 %v390
  %1438 = vmatpush2.msra.mxu0 %v389
  %1439 = vmatprep.subr.mxu0 %v386
  %1440 = vmatpush2.msra.mxu0 %v385
  %1441 = vmatprep.subr.mxu0 %v382
  %1442 = vmatpush2.msra.mxu0 %v381
  %1443 = vmatprep.subr.mxu0 %v378
  %1444 = vmatpush2.msra.mxu0 %v377
  %1445 = vmatprep.subr.mxu0 %v374
  %1446 = vmatpush2.msra.mxu0 %v373
  %1447 = vmatprep.subr.mxu0 %v370
  %1448 = vmatpush2.msra.mxu0 %v369
  %1449 = vmatprep.subr.mxu0 %v366
  %1450 = vmatpush2.msra.mxu0 %v365
  %1451 = vmatprep.subr.mxu0 %v362
  %1452 = vmatpush2.msra.mxu0 %v361
  %1453 = vmatprep.subr.mxu0 %v358
  %1454 = vmatpush2.msra.mxu0 %v357
  %1455 = vmatprep.subr.mxu0 %v354
  %1456 = vmatpush2.msra.mxu0 %v353
  %1457 = vmatprep.subr.mxu0 %v350
  %1458 = vmatpush2.msra.mxu0 %v349
  %1459 = vmatprep.mubr.f32.mxu0 %v1130
  %1460 = vmatmul.mubr.f32.gmra.mxu0 %v1323
  %v1461 = vpop.f32.mrf.mxu0
  %v1462 = vadd.f32 %v424, %v1461
  %v1463 = vpop.f32.mrf.mxu0
  %v1464 = vadd.f32 %v428, %v1463
  %1465 = vdwg.mxu0
  %v1466 = vxor.u32 %v1391, 2147483648
  %v1467 = vmul.f32 %v1466, 1.442695
  %v1468 = vpow.pop %v1467
  %v1469 = vadd.f32 %v1468, 1.0
  %v1470 = vrcp.pop %v1469
  %v1471 = vmul.f32 1.0, %v1470
  %v1472 = vxor.u32 %v1393, 2147483648
  %v1473 = vmul.f32 %v1472, 1.442695
  %v1474 = vpow.pop %v1473
  %v1475 = vadd.f32 %v1474, 1.0
  %v1476 = vrcp.pop %v1475
  %v1477 = vmul.f32 1.0, %v1476
  %v1478 = vtanh.pop %v1462
  %v1479 = vxor.u32 %v1464, 2147483648
  %v1480 = vmul.f32 %v1479, 1.442695
  %v1481 = vpow.pop %v1480
  %v1482 = vadd.f32 %v1481, 1.0
  %v1483 = vrcp.pop %v1482
  %v1484 = vmul.f32 1.0, %v1483
  %v1485 = vmul.f32 %v1477, %v1128
  %v1486 = vmul.f32 %v1471, %v1478
  %v1487 = vadd.f32 %v1485, %v1486
  %v1488 = vtanh.pop %v1487
  %v1489 = vmul.f32 %v1484, %v1488
  %s1490 = scalar_lea.vmem %s9, 16
  %1491 = vst [vmem:[%s1490] sm:$0xff] %v1489
  %v1492 = vld [vmem:[%s6 + $0x2] sm:$0x1]
  %v1493 = vld [vmem:[%s7 + $0x2] sm:$0x1]
  %v1494 = vlaneseq
  %v1495 = vshrl.u32 %v1494, 7
  %v1496 = vsub.s32 0, %v1495
  %v1497 = vrot.slane %v1492, %v1496
  %v1498 = vmul.f32 %v1489, %v1497
  %1499 = vadd.xlane.f32.xlu0 %v1498
  %v1500 = vpop.xlane.xlu0 %1499
  %v1501 = vlaneseq
  %v1502 = vshrl.u32 %v1501, 7
  %v1503 = vsub.s32 0, %v1502
  %v1504 = vrot.slane %v1493, %v1503
  %v1505 = vadd.f32 %v1500, %v1504
  %s1506 = scalar_lea.vmem %s8, 16
  %1507 = vst.msk [vmem:[%s1506] sm:$0xff] %vm788, %v1505
  %s1508 = scalar_lea.vmem [#allocation2], 96
  %v1509 = vld [vmem:[%s1508] sm:$0xff]
  %v1510 = vld [vmem:[%s1508 + $0x8] sm:$0xff]
  %v1511 = vld [vmem:[%s1508 + $0x10] sm:$0xff]
  %v1512 = vld [vmem:[%s1508 + $0x18] sm:$0xff]
  %1513 = vmatprep.subr.mxu0 %v280
  %1514 = vmatpush1.msra.mxu0 %v279
  %1515 = vmatprep.subr.mxu0 %v276
  %1516 = vmatpush1.msra.mxu0 %v275
  %1517 = vmatprep.subr.mxu0 %v272
  %1518 = vmatpush1.msra.mxu0 %v271
  %1519 = vmatprep.subr.mxu0 %v268
  %1520 = vmatpush1.msra.mxu0 %v267
  %1521 = vmatprep.subr.mxu0 %v264
  %1522 = vmatpush1.msra.mxu0 %v263
  %1523 = vmatprep.subr.mxu0 %v260
  %1524 = vmatpush1.msra.mxu0 %v259
  %1525 = vmatprep.subr.mxu0 %v256
  %1526 = vmatpush1.msra.mxu0 %v255
  %1527 = vmatprep.subr.mxu0 %v252
  %1528 = vmatpush1.msra.mxu0 %v251
  %1529 = vmatprep.subr.mxu0 %v248
  %1530 = vmatpush1.msra.mxu0 %v247
  %1531 = vmatprep.subr.mxu0 %v244
  %1532 = vmatpush1.msra.mxu0 %v243
  %1533 = vmatprep.subr.mxu0 %v240
  %1534 = vmatpush1.msra.mxu0 %v239
  %1535 = vmatprep.subr.mxu0 %v236
  %1536 = vmatpush1.msra.mxu0 %v235
  %1537 = vmatprep.subr.mxu0 %v232
  %1538 = vmatpush1.msra.mxu0 %v231
  %1539 = vmatprep.subr.mxu0 %v228
  %1540 = vmatpush1.msra.mxu0 %v227
  %1541 = vmatprep.subr.mxu0 %v224
  %1542 = vmatpush1.msra.mxu0 %v223
  %1543 = vmatprep.subr.mxu0 %v220
  %1544 = vmatpush1.msra.mxu0 %v219
  %1545 = vmatprep.subr.mxu0 0.0
  %1546 = vmatpush2.msra.mxu0 0.0
  %1547 = vmatprep.subr.mxu0 0.0
  %1548 = vmatpush2.msra.mxu0 0.0
  %1549 = vmatprep.subr.mxu0 0.0
  %1550 = vmatpush2.msra.mxu0 0.0
  %1551 = vmatprep.subr.mxu0 0.0
  %1552 = vmatpush2.msra.mxu0 0.0
  %1553 = vmatprep.subr.mxu0 0.0
  %1554 = vmatpush2.msra.mxu0 0.0
  %1555 = vmatprep.subr.mxu0 0.0
  %1556 = vmatpush2.msra.mxu0 0.0
  %1557 = vmatprep.subr.mxu0 0.0
  %1558 = vmatpush2.msra.mxu0 0.0
  %1559 = vmatprep.subr.mxu0 0.0
  %1560 = vmatpush2.msra.mxu0 0.0
  %1561 = vmatprep.subr.mxu0 0.0
  %1562 = vmatpush2.msra.mxu0 0.0
  %1563 = vmatprep.subr.mxu0 0.0
  %1564 = vmatpush2.msra.mxu0 0.0
  %1565 = vmatprep.subr.mxu0 0.0
  %1566 = vmatpush2.msra.mxu0 0.0
  %1567 = vmatprep.subr.mxu0 0.0
  %1568 = vmatpush2.msra.mxu0 0.0
  %1569 = vmatprep.subr.mxu0 0.0
  %1570 = vmatpush2.msra.mxu0 0.0
  %1571 = vmatprep.subr.mxu0 0.0
  %1572 = vmatpush2.msra.mxu0 0.0
  %1573 = vmatprep.subr.mxu0 0.0
  %1574 = vmatpush2.msra.mxu0 0.0
  %1575 = vmatprep.subr.mxu0 0.0
  %1576 = vmatpush2.msra.mxu0 0.0
  %1577 = vmatprep.mubr.f32.mxu0 0.0
  %1578 = vmatmul.mubr.f32.gmra.mxu0 %v1323
  %v1579 = vpop.f32.mrf.mxu0
  %v1580 = vadd.f32 0.0, %v1579
  %v1581 = vpop.f32.mrf.mxu0
  %v1582 = vadd.f32 0.0, %v1581
  %1583 = vdwg.mxu0
  %1584 = vmatprep.subr.mxu0 %v282
  %1585 = vmatpush1.msra.mxu0 %v281
  %1586 = vmatprep.subr.mxu0 %v278
  %1587 = vmatpush1.msra.mxu0 %v277
  %1588 = vmatprep.subr.mxu0 %v274
  %1589 = vmatpush1.msra.mxu0 %v273
  %1590 = vmatprep.subr.mxu0 %v270
  %1591 = vmatpush1.msra.mxu0 %v269
  %1592 = vmatprep.subr.mxu0 %v266
  %1593 = vmatpush1.msra.mxu0 %v265
  %1594 = vmatprep.subr.mxu0 %v262
  %1595 = vmatpush1.msra.mxu0 %v261
  %1596 = vmatprep.subr.mxu0 %v258
  %1597 = vmatpush1.msra.mxu0 %v257
  %1598 = vmatprep.subr.mxu0 %v254
  %1599 = vmatpush1.msra.mxu0 %v253
  %1600 = vmatprep.subr.mxu0 %v250
  %1601 = vmatpush1.msra.mxu0 %v249
  %1602 = vmatprep.subr.mxu0 %v246
  %1603 = vmatpush1.msra.mxu0 %v245
  %1604 = vmatprep.subr.mxu0 %v242
  %1605 = vmatpush1.msra.mxu0 %v241
  %1606 = vmatprep.subr.mxu0 %v238
  %1607 = vmatpush1.msra.mxu0 %v237
  %1608 = vmatprep.subr.mxu0 %v234
  %1609 = vmatpush1.msra.mxu0 %v233
  %1610 = vmatprep.subr.mxu0 %v230
  %1611 = vmatpush1.msra.mxu0 %v229
  %1612 = vmatprep.subr.mxu0 %v226
  %1613 = vmatpush1.msra.mxu0 %v225
  %1614 = vmatprep.subr.mxu0 %v222
  %1615 = vmatpush1.msra.mxu0 %v221
  %1616 = vmatprep.subr.mxu0 0.0
  %1617 = vmatpush2.msra.mxu0 0.0
  %1618 = vmatprep.subr.mxu0 0.0
  %1619 = vmatpush2.msra.mxu0 0.0
  %1620 = vmatprep.subr.mxu0 0.0
  %1621 = vmatpush2.msra.mxu0 0.0
  %1622 = vmatprep.subr.mxu0 0.0
  %1623 = vmatpush2.msra.mxu0 0.0
  %1624 = vmatprep.subr.mxu0 0.0
  %1625 = vmatpush2.msra.mxu0 0.0
  %1626 = vmatprep.subr.mxu0 0.0
  %1627 = vmatpush2.msra.mxu0 0.0
  %1628 = vmatprep.subr.mxu0 0.0
  %1629 = vmatpush2.msra.mxu0 0.0
  %1630 = vmatprep.subr.mxu0 0.0
  %1631 = vmatpush2.msra.mxu0 0.0
  %1632 = vmatprep.subr.mxu0 0.0
  %1633 = vmatpush2.msra.mxu0 0.0
  %1634 = vmatprep.subr.mxu0 0.0
  %1635 = vmatpush2.msra.mxu0 0.0
  %1636 = vmatprep.subr.mxu0 0.0
  %1637 = vmatpush2.msra.mxu0 0.0
  %1638 = vmatprep.subr.mxu0 0.0
  %1639 = vmatpush2.msra.mxu0 0.0
  %1640 = vmatprep.subr.mxu0 0.0
  %1641 = vmatpush2.msra.mxu0 0.0
  %1642 = vmatprep.subr.mxu0 0.0
  %1643 = vmatpush2.msra.mxu0 0.0
  %1644 = vmatprep.subr.mxu0 0.0
  %1645 = vmatpush2.msra.mxu0 0.0
  %1646 = vmatprep.subr.mxu0 0.0
  %1647 = vmatpush2.msra.mxu0 0.0
  %1648 = vmatprep.mubr.f32.mxu0 0.0
  %1649 = vmatmul.mubr.f32.gmra.mxu0 %v1323
  %v1650 = vpop.f32.mrf.mxu0
  %v1651 = vadd.f32 0.0, %v1650
  %v1652 = vpop.f32.mrf.mxu0
  %v1653 = vadd.f32 0.0, %v1652
  %1654 = vdwg.mxu0
  %v1655 = vadd.f32 %v1509, %v1580
  %v1656 = vadd.f32 %v1510, %v1582
  %v1657 = vadd.f32 %v1511, %v1651
  %v1658 = vadd.f32 %v1512, %v1653
  %v1659 = vxor.u32 %v1655, 2147483648
  %v1660 = vmul.f32 %v1659, 1.442695
  %v1661 = vpow.pop %v1660
  %v1662 = vadd.f32 %v1661, 1.0
  %v1663 = vrcp.pop %v1662
  %v1664 = vmul.f32 1.0, %v1663
  %v1665 = vxor.u32 %v1656, 2147483648
  %v1666 = vmul.f32 %v1665, 1.442695
  %v1667 = vpow.pop %v1666
  %v1668 = vadd.f32 %v1667, 1.0
  %v1669 = vrcp.pop %v1668
  %v1670 = vmul.f32 1.0, %v1669
  %v1671 = vtanh.pop %v1657
  %v1672 = vxor.u32 %v1658, 2147483648
  %v1673 = vmul.f32 %v1672, 1.442695
  %v1674 = vpow.pop %v1673
  %v1675 = vadd.f32 %v1674, 1.0
  %v1676 = vrcp.pop %v1675
  %v1677 = vmul.f32 1.0, %v1676
  %v1678 = vmul.f32 %v1670, %v1321
  %v1679 = vmul.f32 %v1664, %v1671
  %v1680 = vadd.f32 %v1678, %v1679
  %v1681 = vtanh.pop %v1680
  %v1682 = vmul.f32 %v1677, %v1681
  %1683 = vmatprep.subr.mxu0 %v344
  %1684 = vmatpush1.msra.mxu0 %v343
  %1685 = vmatprep.subr.mxu0 %v340
  %1686 = vmatpush1.msra.mxu0 %v339
  %1687 = vmatprep.subr.mxu0 %v336
  %1688 = vmatpush1.msra.mxu0 %v335
  %1689 = vmatprep.subr.mxu0 %v332
  %1690 = vmatpush1.msra.mxu0 %v331
  %1691 = vmatprep.subr.mxu0 %v328
  %1692 = vmatpush1.msra.mxu0 %v327
  %1693 = vmatprep.subr.mxu0 %v324
  %1694 = vmatpush1.msra.mxu0 %v323
  %1695 = vmatprep.subr.mxu0 %v320
  %1696 = vmatpush1.msra.mxu0 %v319
  %1697 = vmatprep.subr.mxu0 %v316
  %1698 = vmatpush1.msra.mxu0 %v315
  %1699 = vmatprep.subr.mxu0 %v312
  %1700 = vmatpush1.msra.mxu0 %v311
  %1701 = vmatprep.subr.mxu0 %v308
  %1702 = vmatpush1.msra.mxu0 %v307
  %1703 = vmatprep.subr.mxu0 %v304
  %1704 = vmatpush1.msra.mxu0 %v303
  %1705 = vmatprep.subr.mxu0 %v300
  %1706 = vmatpush1.msra.mxu0 %v299
  %1707 = vmatprep.subr.mxu0 %v296
  %1708 = vmatpush1.msra.mxu0 %v295
  %1709 = vmatprep.subr.mxu0 %v292
  %1710 = vmatpush1.msra.mxu0 %v291
  %1711 = vmatprep.subr.mxu0 %v288
  %1712 = vmatpush1.msra.mxu0 %v287
  %1713 = vmatprep.subr.mxu0 %v284
  %1714 = vmatpush1.msra.mxu0 %v283
  %1715 = vmatprep.subr.mxu0 %v408
  %1716 = vmatpush2.msra.mxu0 %v407
  %1717 = vmatprep.subr.mxu0 %v404
  %1718 = vmatpush2.msra.mxu0 %v403
  %1719 = vmatprep.subr.mxu0 %v400
  %1720 = vmatpush2.msra.mxu0 %v399
  %1721 = vmatprep.subr.mxu0 %v396
  %1722 = vmatpush2.msra.mxu0 %v395
  %1723 = vmatprep.subr.mxu0 %v392
  %1724 = vmatpush2.msra.mxu0 %v391
  %1725 = vmatprep.subr.mxu0 %v388
  %1726 = vmatpush2.msra.mxu0 %v387
  %1727 = vmatprep.subr.mxu0 %v384
  %1728 = vmatpush2.msra.mxu0 %v383
  %1729 = vmatprep.subr.mxu0 %v380
  %1730 = vmatpush2.msra.mxu0 %v379
  %1731 = vmatprep.subr.mxu0 %v376
  %1732 = vmatpush2.msra.mxu0 %v375
  %1733 = vmatprep.subr.mxu0 %v372
  %1734 = vmatpush2.msra.mxu0 %v371
  %1735 = vmatprep.subr.mxu0 %v368
  %1736 = vmatpush2.msra.mxu0 %v367
  %1737 = vmatprep.subr.mxu0 %v364
  %1738 = vmatpush2.msra.mxu0 %v363
  %1739 = vmatprep.subr.mxu0 %v360
  %1740 = vmatpush2.msra.mxu0 %v359
  %1741 = vmatprep.subr.mxu0 %v356
  %1742 = vmatpush2.msra.mxu0 %v355
  %1743 = vmatprep.subr.mxu0 %v352
  %1744 = vmatpush2.msra.mxu0 %v351
  %1745 = vmatprep.subr.mxu0 %v348
  %1746 = vmatpush2.msra.mxu0 %v347
  %1747 = vmatprep.mubr.f32.mxu0 %v1489
  %1748 = vmatmul.mubr.f32.gmra.mxu0 %v1682
  %v1749 = vpop.f32.mrf.mxu0
  %v1750 = vadd.f32 %v416, %v1749
  %v1751 = vpop.f32.mrf.mxu0
  %v1752 = vadd.f32 %v420, %v1751
  %1753 = vdwg.mxu0
  %1754 = vmatprep.subr.mxu0 %v346
  %1755 = vmatpush1.msra.mxu0 %v345
  %1756 = vmatprep.subr.mxu0 %v342
  %1757 = vmatpush1.msra.mxu0 %v341
  %1758 = vmatprep.subr.mxu0 %v338
  %1759 = vmatpush1.msra.mxu0 %v337
  %1760 = vmatprep.subr.mxu0 %v334
  %1761 = vmatpush1.msra.mxu0 %v333
  %1762 = vmatprep.subr.mxu0 %v330
  %1763 = vmatpush1.msra.mxu0 %v329
  %1764 = vmatprep.subr.mxu0 %v326
  %1765 = vmatpush1.msra.mxu0 %v325
  %1766 = vmatprep.subr.mxu0 %v322
  %1767 = vmatpush1.msra.mxu0 %v321
  %1768 = vmatprep.subr.mxu0 %v318
  %1769 = vmatpush1.msra.mxu0 %v317
  %1770 = vmatprep.subr.mxu0 %v314
  %1771 = vmatpush1.msra.mxu0 %v313
  %1772 = vmatprep.subr.mxu0 %v310
  %1773 = vmatpush1.msra.mxu0 %v309
  %1774 = vmatprep.subr.mxu0 %v306
  %1775 = vmatpush1.msra.mxu0 %v305
  %1776 = vmatprep.subr.mxu0 %v302
  %1777 = vmatpush1.msra.mxu0 %v301
  %1778 = vmatprep.subr.mxu0 %v298
  %1779 = vmatpush1.msra.mxu0 %v297
  %1780 = vmatprep.subr.mxu0 %v294
  %1781 = vmatpush1.msra.mxu0 %v293
  %1782 = vmatprep.subr.mxu0 %v290
  %1783 = vmatpush1.msra.mxu0 %v289
  %1784 = vmatprep.subr.mxu0 %v286
  %1785 = vmatpush1.msra.mxu0 %v285
  %1786 = vmatprep.subr.mxu0 %v410
  %1787 = vmatpush2.msra.mxu0 %v409
  %1788 = vmatprep.subr.mxu0 %v406
  %1789 = vmatpush2.msra.mxu0 %v405
  %1790 = vmatprep.subr.mxu0 %v402
  %1791 = vmatpush2.msra.mxu0 %v401
  %1792 = vmatprep.subr.mxu0 %v398
  %1793 = vmatpush2.msra.mxu0 %v397
  %1794 = vmatprep.subr.mxu0 %v394
  %1795 = vmatpush2.msra.mxu0 %v393
  %1796 = vmatprep.subr.mxu0 %v390
  %1797 = vmatpush2.msra.mxu0 %v389
  %1798 = vmatprep.subr.mxu0 %v386
  %1799 = vmatpush2.msra.mxu0 %v385
  %1800 = vmatprep.subr.mxu0 %v382
  %1801 = vmatpush2.msra.mxu0 %v381
  %1802 = vmatprep.subr.mxu0 %v378
  %1803 = vmatpush2.msra.mxu0 %v377
  %1804 = vmatprep.subr.mxu0 %v374
  %1805 = vmatpush2.msra.mxu0 %v373
  %1806 = vmatprep.subr.mxu0 %v370
  %1807 = vmatpush2.msra.mxu0 %v369
  %1808 = vmatprep.subr.mxu0 %v366
  %1809 = vmatpush2.msra.mxu0 %v365
  %1810 = vmatprep.subr.mxu0 %v362
  %1811 = vmatpush2.msra.mxu0 %v361
  %1812 = vmatprep.subr.mxu0 %v358
  %1813 = vmatpush2.msra.mxu0 %v357
  %1814 = vmatprep.subr.mxu0 %v354
  %1815 = vmatpush2.msra.mxu0 %v353
  %1816 = vmatprep.subr.mxu0 %v350
  %1817 = vmatpush2.msra.mxu0 %v349
  %1818 = vmatprep.mubr.f32.mxu0 %v1489
  %1819 = vmatmul.mubr.f32.gmra.mxu0 %v1682
  %v1820 = vpop.f32.mrf.mxu0
  %v1821 = vadd.f32 %v424, %v1820
  %v1822 = vpop.f32.mrf.mxu0
  %v1823 = vadd.f32 %v428, %v1822
  %1824 = vdwg.mxu0
  %v1825 = vxor.u32 %v1750, 2147483648
  %v1826 = vmul.f32 %v1825, 1.442695
  %v1827 = vpow.pop %v1826
  %v1828 = vadd.f32 %v1827, 1.0
  %v1829 = vrcp.pop %v1828
  %v1830 = vmul.f32 1.0, %v1829
  %v1831 = vxor.u32 %v1752, 2147483648
  %v1832 = vmul.f32 %v1831, 1.442695
  %v1833 = vpow.pop %v1832
  %v1834 = vadd.f32 %v1833, 1.0
  %v1835 = vrcp.pop %v1834
  %v1836 = vmul.f32 1.0, %v1835
  %v1837 = vtanh.pop %v1821
  %v1838 = vxor.u32 %v1823, 2147483648
  %v1839 = vmul.f32 %v1838, 1.442695
  %v1840 = vpow.pop %v1839
  %v1841 = vadd.f32 %v1840, 1.0
  %v1842 = vrcp.pop %v1841
  %v1843 = vmul.f32 1.0, %v1842
  %v1844 = vmul.f32 %v1836, %v1487
  %v1845 = vmul.f32 %v1830, %v1837
  %v1846 = vadd.f32 %v1844, %v1845
  %v1847 = vtanh.pop %v1846
  %v1848 = vmul.f32 %v1843, %v1847
  %s1849 = scalar_lea.vmem %s9, 24
  %1850 = vst [vmem:[%s1849] sm:$0xff] %v1848
  %v1851 = vld [vmem:[%s6 + $0x3] sm:$0x1]
  %v1852 = vld [vmem:[%s7 + $0x3] sm:$0x1]
  %v1853 = vlaneseq
  %v1854 = vshrl.u32 %v1853, 7
  %v1855 = vsub.s32 0, %v1854
  %v1856 = vrot.slane %v1851, %v1855
  %v1857 = vmul.f32 %v1848, %v1856
  %1858 = vadd.xlane.f32.xlu0 %v1857
  %v1859 = vpop.xlane.xlu0 %1858
  %v1860 = vlaneseq
  %v1861 = vshrl.u32 %v1860, 7
  %v1862 = vsub.s32 0, %v1861
  %v1863 = vrot.slane %v1852, %v1862
  %v1864 = vadd.f32 %v1859, %v1863
  %s1865 = scalar_lea.vmem %s8, 24
  %1866 = vst.msk [vmem:[%s1865] sm:$0xff] %vm788, %v1864
  %s1867 = scalar_lea.vmem [#allocation2], 128
  %v1868 = vld [vmem:[%s1867] sm:$0xff]
  %v1869 = vld [vmem:[%s1867 + $0x8] sm:$0xff]
  %v1870 = vld [vmem:[%s1867 + $0x10] sm:$0xff]
  %v1871 = vld [vmem:[%s1867 + $0x18] sm:$0xff]
  %1872 = vmatprep.subr.mxu0 %v280
  %1873 = vmatpush1.msra.mxu0 %v279
  %1874 = vmatprep.subr.mxu0 %v276
  %1875 = vmatpush1.msra.mxu0 %v275
  %1876 = vmatprep.subr.mxu0 %v272
  %1877 = vmatpush1.msra.mxu0 %v271
  %1878 = vmatprep.subr.mxu0 %v268
  %1879 = vmatpush1.msra.mxu0 %v267
  %1880 = vmatprep.subr.mxu0 %v264
  %1881 = vmatpush1.msra.mxu0 %v263
  %1882 = vmatprep.subr.mxu0 %v260
  %1883 = vmatpush1.msra.mxu0 %v259
  %1884 = vmatprep.subr.mxu0 %v256
  %1885 = vmatpush1.msra.mxu0 %v255
  %1886 = vmatprep.subr.mxu0 %v252
  %1887 = vmatpush1.msra.mxu0 %v251
  %1888 = vmatprep.subr.mxu0 %v248
  %1889 = vmatpush1.msra.mxu0 %v247
  %1890 = vmatprep.subr.mxu0 %v244
  %1891 = vmatpush1.msra.mxu0 %v243
  %1892 = vmatprep.subr.mxu0 %v240
  %1893 = vmatpush1.msra.mxu0 %v239
  %1894 = vmatprep.subr.mxu0 %v236
  %1895 = vmatpush1.msra.mxu0 %v235
  %1896 = vmatprep.subr.mxu0 %v232
  %1897 = vmatpush1.msra.mxu0 %v231
  %1898 = vmatprep.subr.mxu0 %v228
  %1899 = vmatpush1.msra.mxu0 %v227
  %1900 = vmatprep.subr.mxu0 %v224
  %1901 = vmatpush1.msra.mxu0 %v223
  %1902 = vmatprep.subr.mxu0 %v220
  %1903 = vmatpush1.msra.mxu0 %v219
  %1904 = vmatprep.subr.mxu0 0.0
  %1905 = vmatpush2.msra.mxu0 0.0
  %1906 = vmatprep.subr.mxu0 0.0
  %1907 = vmatpush2.msra.mxu0 0.0
  %1908 = vmatprep.subr.mxu0 0.0
  %1909 = vmatpush2.msra.mxu0 0.0
  %1910 = vmatprep.subr.mxu0 0.0
  %1911 = vmatpush2.msra.mxu0 0.0
  %1912 = vmatprep.subr.mxu0 0.0
  %1913 = vmatpush2.msra.mxu0 0.0
  %1914 = vmatprep.subr.mxu0 0.0
  %1915 = vmatpush2.msra.mxu0 0.0
  %1916 = vmatprep.subr.mxu0 0.0
  %1917 = vmatpush2.msra.mxu0 0.0
  %1918 = vmatprep.subr.mxu0 0.0
  %1919 = vmatpush2.msra.mxu0 0.0
  %1920 = vmatprep.subr.mxu0 0.0
  %1921 = vmatpush2.msra.mxu0 0.0
  %1922 = vmatprep.subr.mxu0 0.0
  %1923 = vmatpush2.msra.mxu0 0.0
  %1924 = vmatprep.subr.mxu0 0.0
  %1925 = vmatpush2.msra.mxu0 0.0
  %1926 = vmatprep.subr.mxu0 0.0
  %1927 = vmatpush2.msra.mxu0 0.0
  %1928 = vmatprep.subr.mxu0 0.0
  %1929 = vmatpush2.msra.mxu0 0.0
  %1930 = vmatprep.subr.mxu0 0.0
  %1931 = vmatpush2.msra.mxu0 0.0
  %1932 = vmatprep.subr.mxu0 0.0
  %1933 = vmatpush2.msra.mxu0 0.0
  %1934 = vmatprep.subr.mxu0 0.0
  %1935 = vmatpush2.msra.mxu0 0.0
  %1936 = vmatprep.mubr.f32.mxu0 0.0
  %1937 = vmatmul.mubr.f32.gmra.mxu0 %v1682
  %v1938 = vpop.f32.mrf.mxu0
  %v1939 = vadd.f32 0.0, %v1938
  %v1940 = vpop.f32.mrf.mxu0
  %v1941 = vadd.f32 0.0, %v1940
  %1942 = vdwg.mxu0
  %1943 = vmatprep.subr.mxu0 %v282
  %1944 = vmatpush1.msra.mxu0 %v281
  %1945 = vmatprep.subr.mxu0 %v278
  %1946 = vmatpush1.msra.mxu0 %v277
  %1947 = vmatprep.subr.mxu0 %v274
  %1948 = vmatpush1.msra.mxu0 %v273
  %1949 = vmatprep.subr.mxu0 %v270
  %1950 = vmatpush1.msra.mxu0 %v269
  %1951 = vmatprep.subr.mxu0 %v266
  %1952 = vmatpush1.msra.mxu0 %v265
  %1953 = vmatprep.subr.mxu0 %v262
  %1954 = vmatpush1.msra.mxu0 %v261
  %1955 = vmatprep.subr.mxu0 %v258
  %1956 = vmatpush1.msra.mxu0 %v257
  %1957 = vmatprep.subr.mxu0 %v254
  %1958 = vmatpush1.msra.mxu0 %v253
  %1959 = vmatprep.subr.mxu0 %v250
  %1960 = vmatpush1.msra.mxu0 %v249
  %1961 = vmatprep.subr.mxu0 %v246
  %1962 = vmatpush1.msra.mxu0 %v245
  %1963 = vmatprep.subr.mxu0 %v242
  %1964 = vmatpush1.msra.mxu0 %v241
  %1965 = vmatprep.subr.mxu0 %v238
  %1966 = vmatpush1.msra.mxu0 %v237
  %1967 = vmatprep.subr.mxu0 %v234
  %1968 = vmatpush1.msra.mxu0 %v233
  %1969 = vmatprep.subr.mxu0 %v230
  %1970 = vmatpush1.msra.mxu0 %v229
  %1971 = vmatprep.subr.mxu0 %v226
  %1972 = vmatpush1.msra.mxu0 %v225
  %1973 = vmatprep.subr.mxu0 %v222
  %1974 = vmatpush1.msra.mxu0 %v221
  %1975 = vmatprep.subr.mxu0 0.0
  %1976 = vmatpush2.msra.mxu0 0.0
  %1977 = vmatprep.subr.mxu0 0.0
  %1978 = vmatpush2.msra.mxu0 0.0
  %1979 = vmatprep.subr.mxu0 0.0
  %1980 = vmatpush2.msra.mxu0 0.0
  %1981 = vmatprep.subr.mxu0 0.0
  %1982 = vmatpush2.msra.mxu0 0.0
  %1983 = vmatprep.subr.mxu0 0.0
  %1984 = vmatpush2.msra.mxu0 0.0
  %1985 = vmatprep.subr.mxu0 0.0
  %1986 = vmatpush2.msra.mxu0 0.0
  %1987 = vmatprep.subr.mxu0 0.0
  %1988 = vmatpush2.msra.mxu0 0.0
  %1989 = vmatprep.subr.mxu0 0.0
  %1990 = vmatpush2.msra.mxu0 0.0
  %1991 = vmatprep.subr.mxu0 0.0
  %1992 = vmatpush2.msra.mxu0 0.0
  %1993 = vmatprep.subr.mxu0 0.0
  %1994 = vmatpush2.msra.mxu0 0.0
  %1995 = vmatprep.subr.mxu0 0.0
  %1996 = vmatpush2.msra.mxu0 0.0
  %1997 = vmatprep.subr.mxu0 0.0
  %1998 = vmatpush2.msra.mxu0 0.0
  %1999 = vmatprep.subr.mxu0 0.0
  %2000 = vmatpush2.msra.mxu0 0.0
  %2001 = vmatprep.subr.mxu0 0.0
  %2002 = vmatpush2.msra.mxu0 0.0
  %2003 = vmatprep.subr.mxu0 0.0
  %2004 = vmatpush2.msra.mxu0 0.0
  %2005 = vmatprep.subr.mxu0 0.0
  %2006 = vmatpush2.msra.mxu0 0.0
  %2007 = vmatprep.mubr.f32.mxu0 0.0
  %2008 = vmatmul.mubr.f32.gmra.mxu0 %v1682
  %v2009 = vpop.f32.mrf.mxu0
  %v2010 = vadd.f32 0.0, %v2009
  %v2011 = vpop.f32.mrf.mxu0
  %v2012 = vadd.f32 0.0, %v2011
  %2013 = vdwg.mxu0
  %v2014 = vadd.f32 %v1868, %v1939
  %v2015 = vadd.f32 %v1869, %v1941
  %v2016 = vadd.f32 %v1870, %v2010
  %v2017 = vadd.f32 %v1871, %v2012
  %v2018 = vxor.u32 %v2014, 2147483648
  %v2019 = vmul.f32 %v2018, 1.442695
  %v2020 = vpow.pop %v2019
  %v2021 = vadd.f32 %v2020, 1.0
  %v2022 = vrcp.pop %v2021
  %v2023 = vmul.f32 1.0, %v2022
  %v2024 = vxor.u32 %v2015, 2147483648
  %v2025 = vmul.f32 %v2024, 1.442695
  %v2026 = vpow.pop %v2025
  %v2027 = vadd.f32 %v2026, 1.0
  %v2028 = vrcp.pop %v2027
  %v2029 = vmul.f32 1.0, %v2028
  %v2030 = vtanh.pop %v2016
  %v2031 = vxor.u32 %v2017, 2147483648
  %v2032 = vmul.f32 %v2031, 1.442695
  %v2033 = vpow.pop %v2032
  %v2034 = vadd.f32 %v2033, 1.0
  %v2035 = vrcp.pop %v2034
  %v2036 = vmul.f32 1.0, %v2035
  %v2037 = vmul.f32 %v2029, %v1680
  %v2038 = vmul.f32 %v2023, %v2030
  %v2039 = vadd.f32 %v2037, %v2038
  %v2040 = vtanh.pop %v2039
  %v2041 = vmul.f32 %v2036, %v2040
  %2042 = vmatprep.subr.mxu0 %v344
  %2043 = vmatpush1.msra.mxu0 %v343
  %2044 = vmatprep.subr.mxu0 %v340
  %2045 = vmatpush1.msra.mxu0 %v339
  %2046 = vmatprep.subr.mxu0 %v336
  %2047 = vmatpush1.msra.mxu0 %v335
  %2048 = vmatprep.subr.mxu0 %v332
  %2049 = vmatpush1.msra.mxu0 %v331
  %2050 = vmatprep.subr.mxu0 %v328
  %2051 = vmatpush1.msra.mxu0 %v327
  %2052 = vmatprep.subr.mxu0 %v324
  %2053 = vmatpush1.msra.mxu0 %v323
  %2054 = vmatprep.subr.mxu0 %v320
  %2055 = vmatpush1.msra.mxu0 %v319
  %2056 = vmatprep.subr.mxu0 %v316
  %2057 = vmatpush1.msra.mxu0 %v315
  %2058 = vmatprep.subr.mxu0 %v312
  %2059 = vmatpush1.msra.mxu0 %v311
  %2060 = vmatprep.subr.mxu0 %v308
  %2061 = vmatpush1.msra.mxu0 %v307
  %2062 = vmatprep.subr.mxu0 %v304
  %2063 = vmatpush1.msra.mxu0 %v303
  %2064 = vmatprep.subr.mxu0 %v300
  %2065 = vmatpush1.msra.mxu0 %v299
  %2066 = vmatprep.subr.mxu0 %v296
  %2067 = vmatpush1.msra.mxu0 %v295
  %2068 = vmatprep.subr.mxu0 %v292
  %2069 = vmatpush1.msra.mxu0 %v291
  %2070 = vmatprep.subr.mxu0 %v288
  %2071 = vmatpush1.msra.mxu0 %v287
  %2072 = vmatprep.subr.mxu0 %v284
  %2073 = vmatpush1.msra.mxu0 %v283
  %2074 = vmatprep.subr.mxu0 %v408
  %2075 = vmatpush2.msra.mxu0 %v407
  %2076 = vmatprep.subr.mxu0 %v404
  %2077 = vmatpush2.msra.mxu0 %v403
  %2078 = vmatprep.subr.mxu0 %v400
  %2079 = vmatpush2.msra.mxu0 %v399
  %2080 = vmatprep.subr.mxu0 %v396
  %2081 = vmatpush2.msra.mxu0 %v395
  %2082 = vmatprep.subr.mxu0 %v392
  %2083 = vmatpush2.msra.mxu0 %v391
  %2084 = vmatprep.subr.mxu0 %v388
  %2085 = vmatpush2.msra.mxu0 %v387
  %2086 = vmatprep.subr.mxu0 %v384
  %2087 = vmatpush2.msra.mxu0 %v383
  %2088 = vmatprep.subr.mxu0 %v380
  %2089 = vmatpush2.msra.mxu0 %v379
  %2090 = vmatprep.subr.mxu0 %v376
  %2091 = vmatpush2.msra.mxu0 %v375
  %2092 = vmatprep.subr.mxu0 %v372
  %2093 = vmatpush2.msra.mxu0 %v371
  %2094 = vmatprep.subr.mxu0 %v368
  %2095 = vmatpush2.msra.mxu0 %v367
  %2096 = vmatprep.subr.mxu0 %v364
  %2097 = vmatpush2.msra.mxu0 %v363
  %2098 = vmatprep.subr.mxu0 %v360
  %2099 = vmatpush2.msra.mxu0 %v359
  %2100 = vmatprep.subr.mxu0 %v356
  %2101 = vmatpush2.msra.mxu0 %v355
  %2102 = vmatprep.subr.mxu0 %v352
  %2103 = vmatpush2.msra.mxu0 %v351
  %2104 = vmatprep.subr.mxu0 %v348
  %2105 = vmatpush2.msra.mxu0 %v347
  %2106 = vmatprep.mubr.f32.mxu0 %v1848
  %2107 = vmatmul.mubr.f32.gmra.mxu0 %v2041
  %v2108 = vpop.f32.mrf.mxu0
  %v2109 = vadd.f32 %v416, %v2108
  %v2110 = vpop.f32.mrf.mxu0
  %v2111 = vadd.f32 %v420, %v2110
  %2112 = vdwg.mxu0
  %2113 = vmatprep.subr.mxu0 %v346
  %2114 = vmatpush1.msra.mxu0 %v345
  %2115 = vmatprep.subr.mxu0 %v342
  %2116 = vmatpush1.msra.mxu0 %v341
  %2117 = vmatprep.subr.mxu0 %v338
  %2118 = vmatpush1.msra.mxu0 %v337
  %2119 = vmatprep.subr.mxu0 %v334
  %2120 = vmatpush1.msra.mxu0 %v333
  %2121 = vmatprep.subr.mxu0 %v330
  %2122 = vmatpush1.msra.mxu0 %v329
  %2123 = vmatprep.subr.mxu0 %v326
  %2124 = vmatpush1.msra.mxu0 %v325
  %2125 = vmatprep.subr.mxu0 %v322
  %2126 = vmatpush1.msra.mxu0 %v321
  %2127 = vmatprep.subr.mxu0 %v318
  %2128 = vmatpush1.msra.mxu0 %v317
  %2129 = vmatprep.subr.mxu0 %v314
  %2130 = vmatpush1.msra.mxu0 %v313
  %2131 = vmatprep.subr.mxu0 %v310
  %2132 = vmatpush1.msra.mxu0 %v309
  %2133 = vmatprep.subr.mxu0 %v306
  %2134 = vmatpush1.msra.mxu0 %v305
  %2135 = vmatprep.subr.mxu0 %v302
  %2136 = vmatpush1.msra.mxu0 %v301
  %2137 = vmatprep.subr.mxu0 %v298
  %2138 = vmatpush1.msra.mxu0 %v297
  %2139 = vmatprep.subr.mxu0 %v294
  %2140 = vmatpush1.msra.mxu0 %v293
  %2141 = vmatprep.subr.mxu0 %v290
  %2142 = vmatpush1.msra.mxu0 %v289
  %2143 = vmatprep.subr.mxu0 %v286
  %2144 = vmatpush1.msra.mxu0 %v285
  %2145 = vmatprep.subr.mxu0 %v410
  %2146 = vmatpush2.msra.mxu0 %v409
  %2147 = vmatprep.subr.mxu0 %v406
  %2148 = vmatpush2.msra.mxu0 %v405
  %2149 = vmatprep.subr.mxu0 %v402
  %2150 = vmatpush2.msra.mxu0 %v401
  %2151 = vmatprep.subr.mxu0 %v398
  %2152 = vmatpush2.msra.mxu0 %v397
  %2153 = vmatprep.subr.mxu0 %v394
  %2154 = vmatpush2.msra.mxu0 %v393
  %2155 = vmatprep.subr.mxu0 %v390
  %2156 = vmatpush2.msra.mxu0 %v389
  %2157 = vmatprep.subr.mxu0 %v386
  %2158 = vmatpush2.msra.mxu0 %v385
  %2159 = vmatprep.subr.mxu0 %v382
  %2160 = vmatpush2.msra.mxu0 %v381
  %2161 = vmatprep.subr.mxu0 %v378
  %2162 = vmatpush2.msra.mxu0 %v377
  %2163 = vmatprep.subr.mxu0 %v374
  %2164 = vmatpush2.msra.mxu0 %v373
  %2165 = vmatprep.subr.mxu0 %v370
  %2166 = vmatpush2.msra.mxu0 %v369
  %2167 = vmatprep.subr.mxu0 %v366
  %2168 = vmatpush2.msra.mxu0 %v365
  %2169 = vmatprep.subr.mxu0 %v362
  %2170 = vmatpush2.msra.mxu0 %v361
  %2171 = vmatprep.subr.mxu0 %v358
  %2172 = vmatpush2.msra.mxu0 %v357
  %2173 = vmatprep.subr.mxu0 %v354
  %2174 = vmatpush2.msra.mxu0 %v353
  %2175 = vmatprep.subr.mxu0 %v350
  %2176 = vmatpush2.msra.mxu0 %v349
  %2177 = vmatprep.mubr.f32.mxu0 %v1848
  %2178 = vmatmul.mubr.f32.gmra.mxu0 %v2041
  %v2179 = vpop.f32.mrf.mxu0
  %v2180 = vadd.f32 %v424, %v2179
  %v2181 = vpop.f32.mrf.mxu0
  %v2182 = vadd.f32 %v428, %v2181
  %2183 = vdwg.mxu0
  %v2184 = vxor.u32 %v2109, 2147483648
  %v2185 = vmul.f32 %v2184, 1.442695
  %v2186 = vpow.pop %v2185
  %v2187 = vadd.f32 %v2186, 1.0
  %v2188 = vrcp.pop %v2187
  %v2189 = vmul.f32 1.0, %v2188
  %v2190 = vxor.u32 %v2111, 2147483648
  %v2191 = vmul.f32 %v2190, 1.442695
  %v2192 = vpow.pop %v2191
  %v2193 = vadd.f32 %v2192, 1.0
  %v2194 = vrcp.pop %v2193
  %v2195 = vmul.f32 1.0, %v2194
  %v2196 = vtanh.pop %v2180
  %v2197 = vxor.u32 %v2182, 2147483648
  %v2198 = vmul.f32 %v2197, 1.442695
  %v2199 = vpow.pop %v2198
  %v2200 = vadd.f32 %v2199, 1.0
  %v2201 = vrcp.pop %v2200
  %v2202 = vmul.f32 1.0, %v2201
  %v2203 = vmul.f32 %v2195, %v1846
  %v2204 = vmul.f32 %v2189, %v2196
  %v2205 = vadd.f32 %v2203, %v2204
  %v2206 = vtanh.pop %v2205
  %v2207 = vmul.f32 %v2202, %v2206
  %s2208 = scalar_lea.vmem %s9, 32
  %2209 = vst [vmem:[%s2208] sm:$0xff] %v2207
  %v2210 = vld [vmem:[%s6 + $0x4] sm:$0x1]
  %v2211 = vld [vmem:[%s7 + $0x4] sm:$0x1]
  %v2212 = vlaneseq
  %v2213 = vshrl.u32 %v2212, 7
  %v2214 = vsub.s32 0, %v2213
  %v2215 = vrot.slane %v2210, %v2214
  %v2216 = vmul.f32 %v2207, %v2215
  %2217 = vadd.xlane.f32.xlu0 %v2216
  %v2218 = vpop.xlane.xlu0 %2217
  %v2219 = vlaneseq
  %v2220 = vshrl.u32 %v2219, 7
  %v2221 = vsub.s32 0, %v2220
  %v2222 = vrot.slane %v2211, %v2221
  %v2223 = vadd.f32 %v2218, %v2222
  %s2224 = scalar_lea.vmem %s8, 32
  %2225 = vst.msk [vmem:[%s2224] sm:$0xff] %vm788, %v2223
  %s2226 = scalar_lea.vmem [#allocation2], 160
  %v2227 = vld [vmem:[%s2226] sm:$0xff]
  %v2228 = vld [vmem:[%s2226 + $0x8] sm:$0xff]
  %v2229 = vld [vmem:[%s2226 + $0x10] sm:$0xff]
  %v2230 = vld [vmem:[%s2226 + $0x18] sm:$0xff]
  %2231 = vmatprep.subr.mxu0 %v280
  %2232 = vmatpush1.msra.mxu0 %v279
  %2233 = vmatprep.subr.mxu0 %v276
  %2234 = vmatpush1.msra.mxu0 %v275
  %2235 = vmatprep.subr.mxu0 %v272
  %2236 = vmatpush1.msra.mxu0 %v271
  %2237 = vmatprep.subr.mxu0 %v268
  %2238 = vmatpush1.msra.mxu0 %v267
  %2239 = vmatprep.subr.mxu0 %v264
  %2240 = vmatpush1.msra.mxu0 %v263
  %2241 = vmatprep.subr.mxu0 %v260
  %2242 = vmatpush1.msra.mxu0 %v259
  %2243 = vmatprep.subr.mxu0 %v256
  %2244 = vmatpush1.msra.mxu0 %v255
  %2245 = vmatprep.subr.mxu0 %v252
  %2246 = vmatpush1.msra.mxu0 %v251
  %2247 = vmatprep.subr.mxu0 %v248
  %2248 = vmatpush1.msra.mxu0 %v247
  %2249 = vmatprep.subr.mxu0 %v244
  %2250 = vmatpush1.msra.mxu0 %v243
  %2251 = vmatprep.subr.mxu0 %v240
  %2252 = vmatpush1.msra.mxu0 %v239
  %2253 = vmatprep.subr.mxu0 %v236
  %2254 = vmatpush1.msra.mxu0 %v235
  %2255 = vmatprep.subr.mxu0 %v232
  %2256 = vmatpush1.msra.mxu0 %v231
  %2257 = vmatprep.subr.mxu0 %v228
  %2258 = vmatpush1.msra.mxu0 %v227
  %2259 = vmatprep.subr.mxu0 %v224
  %2260 = vmatpush1.msra.mxu0 %v223
  %2261 = vmatprep.subr.mxu0 %v220
  %2262 = vmatpush1.msra.mxu0 %v219
  %2263 = vmatprep.subr.mxu0 0.0
  %2264 = vmatpush2.msra.mxu0 0.0
  %2265 = vmatprep.subr.mxu0 0.0
  %2266 = vmatpush2.msra.mxu0 0.0
  %2267 = vmatprep.subr.mxu0 0.0
  %2268 = vmatpush2.msra.mxu0 0.0
  %2269 = vmatprep.subr.mxu0 0.0
  %2270 = vmatpush2.msra.mxu0 0.0
  %2271 = vmatprep.subr.mxu0 0.0
  %2272 = vmatpush2.msra.mxu0 0.0
  %2273 = vmatprep.subr.mxu0 0.0
  %2274 = vmatpush2.msra.mxu0 0.0
  %2275 = vmatprep.subr.mxu0 0.0
  %2276 = vmatpush2.msra.mxu0 0.0
  %2277 = vmatprep.subr.mxu0 0.0
  %2278 = vmatpush2.msra.mxu0 0.0
  %2279 = vmatprep.subr.mxu0 0.0
  %2280 = vmatpush2.msra.mxu0 0.0
  %2281 = vmatprep.subr.mxu0 0.0
  %2282 = vmatpush2.msra.mxu0 0.0
  %2283 = vmatprep.subr.mxu0 0.0
  %2284 = vmatpush2.msra.mxu0 0.0
  %2285 = vmatprep.subr.mxu0 0.0
  %2286 = vmatpush2.msra.mxu0 0.0
  %2287 = vmatprep.subr.mxu0 0.0
  %2288 = vmatpush2.msra.mxu0 0.0
  %2289 = vmatprep.subr.mxu0 0.0
  %2290 = vmatpush2.msra.mxu0 0.0
  %2291 = vmatprep.subr.mxu0 0.0
  %2292 = vmatpush2.msra.mxu0 0.0
  %2293 = vmatprep.subr.mxu0 0.0
  %2294 = vmatpush2.msra.mxu0 0.0
  %2295 = vmatprep.mubr.f32.mxu0 0.0
  %2296 = vmatmul.mubr.f32.gmra.mxu0 %v2041
  %v2297 = vpop.f32.mrf.mxu0
  %v2298 = vadd.f32 0.0, %v2297
  %v2299 = vpop.f32.mrf.mxu0
  %v2300 = vadd.f32 0.0, %v2299
  %2301 = vdwg.mxu0
  %2302 = vmatprep.subr.mxu0 %v282
  %2303 = vmatpush1.msra.mxu0 %v281
  %2304 = vmatprep.subr.mxu0 %v278
  %2305 = vmatpush1.msra.mxu0 %v277
  %2306 = vmatprep.subr.mxu0 %v274
  %2307 = vmatpush1.msra.mxu0 %v273
  %2308 = vmatprep.subr.mxu0 %v270
  %2309 = vmatpush1.msra.mxu0 %v269
  %2310 = vmatprep.subr.mxu0 %v266
  %2311 = vmatpush1.msra.mxu0 %v265
  %2312 = vmatprep.subr.mxu0 %v262
  %2313 = vmatpush1.msra.mxu0 %v261
  %2314 = vmatprep.subr.mxu0 %v258
  %2315 = vmatpush1.msra.mxu0 %v257
  %2316 = vmatprep.subr.mxu0 %v254
  %2317 = vmatpush1.msra.mxu0 %v253
  %2318 = vmatprep.subr.mxu0 %v250
  %2319 = vmatpush1.msra.mxu0 %v249
  %2320 = vmatprep.subr.mxu0 %v246
  %2321 = vmatpush1.msra.mxu0 %v245
  %2322 = vmatprep.subr.mxu0 %v242
  %2323 = vmatpush1.msra.mxu0 %v241
  %2324 = vmatprep.subr.mxu0 %v238
  %2325 = vmatpush1.msra.mxu0 %v237
  %2326 = vmatprep.subr.mxu0 %v234
  %2327 = vmatpush1.msra.mxu0 %v233
  %2328 = vmatprep.subr.mxu0 %v230
  %2329 = vmatpush1.msra.mxu0 %v229
  %2330 = vmatprep.subr.mxu0 %v226
  %2331 = vmatpush1.msra.mxu0 %v225
  %2332 = vmatprep.subr.mxu0 %v222
  %2333 = vmatpush1.msra.mxu0 %v221
  %2334 = vmatprep.subr.mxu0 0.0
  %2335 = vmatpush2.msra.mxu0 0.0
  %2336 = vmatprep.subr.mxu0 0.0
  %2337 = vmatpush2.msra.mxu0 0.0
  %2338 = vmatprep.subr.mxu0 0.0
  %2339 = vmatpush2.msra.mxu0 0.0
  %2340 = vmatprep.subr.mxu0 0.0
  %2341 = vmatpush2.msra.mxu0 0.0
  %2342 = vmatprep.subr.mxu0 0.0
  %2343 = vmatpush2.msra.mxu0 0.0
  %2344 = vmatprep.subr.mxu0 0.0
  %2345 = vmatpush2.msra.mxu0 0.0
  %2346 = vmatprep.subr.mxu0 0.0
  %2347 = vmatpush2.msra.mxu0 0.0
  %2348 = vmatprep.subr.mxu0 0.0
  %2349 = vmatpush2.msra.mxu0 0.0
  %2350 = vmatprep.subr.mxu0 0.0
  %2351 = vmatpush2.msra.mxu0 0.0
  %2352 = vmatprep.subr.mxu0 0.0
  %2353 = vmatpush2.msra.mxu0 0.0
  %2354 = vmatprep.subr.mxu0 0.0
  %2355 = vmatpush2.msra.mxu0 0.0
  %2356 = vmatprep.subr.mxu0 0.0
  %2357 = vmatpush2.msra.mxu0 0.0
  %2358 = vmatprep.subr.mxu0 0.0
  %2359 = vmatpush2.msra.mxu0 0.0
  %2360 = vmatprep.subr.mxu0 0.0
  %2361 = vmatpush2.msra.mxu0 0.0
  %2362 = vmatprep.subr.mxu0 0.0
  %2363 = vmatpush2.msra.mxu0 0.0
  %2364 = vmatprep.subr.mxu0 0.0
  %2365 = vmatpush2.msra.mxu0 0.0
  %2366 = vmatprep.mubr.f32.mxu0 0.0
  %2367 = vmatmul.mubr.f32.gmra.mxu0 %v2041
  %v2368 = vpop.f32.mrf.mxu0
  %v2369 = vadd.f32 0.0, %v2368
  %v2370 = vpop.f32.mrf.mxu0
  %v2371 = vadd.f32 0.0, %v2370
  %2372 = vdwg.mxu0
  %v2373 = vadd.f32 %v2227, %v2298
  %v2374 = vadd.f32 %v2228, %v2300
  %v2375 = vadd.f32 %v2229, %v2369
  %v2376 = vadd.f32 %v2230, %v2371
  %v2377 = vxor.u32 %v2373, 2147483648
  %v2378 = vmul.f32 %v2377, 1.442695
  %v2379 = vpow.pop %v2378
  %v2380 = vadd.f32 %v2379, 1.0
  %v2381 = vrcp.pop %v2380
  %v2382 = vmul.f32 1.0, %v2381
  %v2383 = vxor.u32 %v2374, 2147483648
  %v2384 = vmul.f32 %v2383, 1.442695
  %v2385 = vpow.pop %v2384
  %v2386 = vadd.f32 %v2385, 1.0
  %v2387 = vrcp.pop %v2386
  %v2388 = vmul.f32 1.0, %v2387
  %v2389 = vtanh.pop %v2375
  %v2390 = vxor.u32 %v2376, 2147483648
  %v2391 = vmul.f32 %v2390, 1.442695
  %v2392 = vpow.pop %v2391
  %v2393 = vadd.f32 %v2392, 1.0
  %v2394 = vrcp.pop %v2393
  %v2395 = vmul.f32 1.0, %v2394
  %v2396 = vmul.f32 %v2388, %v2039
  %v2397 = vmul.f32 %v2382, %v2389
  %v2398 = vadd.f32 %v2396, %v2397
  %v2399 = vtanh.pop %v2398
  %v2400 = vmul.f32 %v2395, %v2399
  %2401 = vmatprep.subr.mxu0 %v344
  %2402 = vmatpush1.msra.mxu0 %v343
  %2403 = vmatprep.subr.mxu0 %v340
  %2404 = vmatpush1.msra.mxu0 %v339
  %2405 = vmatprep.subr.mxu0 %v336
  %2406 = vmatpush1.msra.mxu0 %v335
  %2407 = vmatprep.subr.mxu0 %v332
  %2408 = vmatpush1.msra.mxu0 %v331
  %2409 = vmatprep.subr.mxu0 %v328
  %2410 = vmatpush1.msra.mxu0 %v327
  %2411 = vmatprep.subr.mxu0 %v324
  %2412 = vmatpush1.msra.mxu0 %v323
  %2413 = vmatprep.subr.mxu0 %v320
  %2414 = vmatpush1.msra.mxu0 %v319
  %2415 = vmatprep.subr.mxu0 %v316
  %2416 = vmatpush1.msra.mxu0 %v315
  %2417 = vmatprep.subr.mxu0 %v312
  %2418 = vmatpush1.msra.mxu0 %v311
  %2419 = vmatprep.subr.mxu0 %v308
  %2420 = vmatpush1.msra.mxu0 %v307
  %2421 = vmatprep.subr.mxu0 %v304
  %2422 = vmatpush1.msra.mxu0 %v303
  %2423 = vmatprep.subr.mxu0 %v300
  %2424 = vmatpush1.msra.mxu0 %v299
  %2425 = vmatprep.subr.mxu0 %v296
  %2426 = vmatpush1.msra.mxu0 %v295
  %2427 = vmatprep.subr.mxu0 %v292
  %2428 = vmatpush1.msra.mxu0 %v291
  %2429 = vmatprep.subr.mxu0 %v288
  %2430 = vmatpush1.msra.mxu0 %v287
  %2431 = vmatprep.subr.mxu0 %v284
  %2432 = vmatpush1.msra.mxu0 %v283
  %2433 = vmatprep.subr.mxu0 %v408
  %2434 = vmatpush2.msra.mxu0 %v407
  %2435 = vmatprep.subr.mxu0 %v404
  %2436 = vmatpush2.msra.mxu0 %v403
  %2437 = vmatprep.subr.mxu0 %v400
  %2438 = vmatpush2.msra.mxu0 %v399
  %2439 = vmatprep.subr.mxu0 %v396
  %2440 = vmatpush2.msra.mxu0 %v395
  %2441 = vmatprep.subr.mxu0 %v392
  %2442 = vmatpush2.msra.mxu0 %v391
  %2443 = vmatprep.subr.mxu0 %v388
  %2444 = vmatpush2.msra.mxu0 %v387
  %2445 = vmatprep.subr.mxu0 %v384
  %2446 = vmatpush2.msra.mxu0 %v383
  %2447 = vmatprep.subr.mxu0 %v380
  %2448 = vmatpush2.msra.mxu0 %v379
  %2449 = vmatprep.subr.mxu0 %v376
  %2450 = vmatpush2.msra.mxu0 %v375
  %2451 = vmatprep.subr.mxu0 %v372
  %2452 = vmatpush2.msra.mxu0 %v371
  %2453 = vmatprep.subr.mxu0 %v368
  %2454 = vmatpush2.msra.mxu0 %v367
  %2455 = vmatprep.subr.mxu0 %v364
  %2456 = vmatpush2.msra.mxu0 %v363
  %2457 = vmatprep.subr.mxu0 %v360
  %2458 = vmatpush2.msra.mxu0 %v359
  %2459 = vmatprep.subr.mxu0 %v356
  %2460 = vmatpush2.msra.mxu0 %v355
  %2461 = vmatprep.subr.mxu0 %v352
  %2462 = vmatpush2.msra.mxu0 %v351
  %2463 = vmatprep.subr.mxu0 %v348
  %2464 = vmatpush2.msra.mxu0 %v347
  %2465 = vmatprep.mubr.f32.mxu0 %v2207
  %2466 = vmatmul.mubr.f32.gmra.mxu0 %v2400
  %v2467 = vpop.f32.mrf.mxu0
  %v2468 = vadd.f32 %v416, %v2467
  %v2469 = vpop.f32.mrf.mxu0
  %v2470 = vadd.f32 %v420, %v2469
  %2471 = vdwg.mxu0
  %2472 = vmatprep.subr.mxu0 %v346
  %2473 = vmatpush1.msra.mxu0 %v345
  %2474 = vmatprep.subr.mxu0 %v342
  %2475 = vmatpush1.msra.mxu0 %v341
  %2476 = vmatprep.subr.mxu0 %v338
  %2477 = vmatpush1.msra.mxu0 %v337
  %2478 = vmatprep.subr.mxu0 %v334
  %2479 = vmatpush1.msra.mxu0 %v333
  %2480 = vmatprep.subr.mxu0 %v330
  %2481 = vmatpush1.msra.mxu0 %v329
  %2482 = vmatprep.subr.mxu0 %v326
  %2483 = vmatpush1.msra.mxu0 %v325
  %2484 = vmatprep.subr.mxu0 %v322
  %2485 = vmatpush1.msra.mxu0 %v321
  %2486 = vmatprep.subr.mxu0 %v318
  %2487 = vmatpush1.msra.mxu0 %v317
  %2488 = vmatprep.subr.mxu0 %v314
  %2489 = vmatpush1.msra.mxu0 %v313
  %2490 = vmatprep.subr.mxu0 %v310
  %2491 = vmatpush1.msra.mxu0 %v309
  %2492 = vmatprep.subr.mxu0 %v306
  %2493 = vmatpush1.msra.mxu0 %v305
  %2494 = vmatprep.subr.mxu0 %v302
  %2495 = vmatpush1.msra.mxu0 %v301
  %2496 = vmatprep.subr.mxu0 %v298
  %2497 = vmatpush1.msra.mxu0 %v297
  %2498 = vmatprep.subr.mxu0 %v294
  %2499 = vmatpush1.msra.mxu0 %v293
  %2500 = vmatprep.subr.mxu0 %v290
  %2501 = vmatpush1.msra.mxu0 %v289
  %2502 = vmatprep.subr.mxu0 %v286
  %2503 = vmatpush1.msra.mxu0 %v285
  %2504 = vmatprep.subr.mxu0 %v410
  %2505 = vmatpush2.msra.mxu0 %v409
  %2506 = vmatprep.subr.mxu0 %v406
  %2507 = vmatpush2.msra.mxu0 %v405
  %2508 = vmatprep.subr.mxu0 %v402
  %2509 = vmatpush2.msra.mxu0 %v401
  %2510 = vmatprep.subr.mxu0 %v398
  %2511 = vmatpush2.msra.mxu0 %v397
  %2512 = vmatprep.subr.mxu0 %v394
  %2513 = vmatpush2.msra.mxu0 %v393
  %2514 = vmatprep.subr.mxu0 %v390
  %2515 = vmatpush2.msra.mxu0 %v389
  %2516 = vmatprep.subr.mxu0 %v386
  %2517 = vmatpush2.msra.mxu0 %v385
  %2518 = vmatprep.subr.mxu0 %v382
  %2519 = vmatpush2.msra.mxu0 %v381
  %2520 = vmatprep.subr.mxu0 %v378
  %2521 = vmatpush2.msra.mxu0 %v377
  %2522 = vmatprep.subr.mxu0 %v374
  %2523 = vmatpush2.msra.mxu0 %v373
  %2524 = vmatprep.subr.mxu0 %v370
  %2525 = vmatpush2.msra.mxu0 %v369
  %2526 = vmatprep.subr.mxu0 %v366
  %2527 = vmatpush2.msra.mxu0 %v365
  %2528 = vmatprep.subr.mxu0 %v362
  %2529 = vmatpush2.msra.mxu0 %v361
  %2530 = vmatprep.subr.mxu0 %v358
  %2531 = vmatpush2.msra.mxu0 %v357
  %2532 = vmatprep.subr.mxu0 %v354
  %2533 = vmatpush2.msra.mxu0 %v353
  %2534 = vmatprep.subr.mxu0 %v350
  %2535 = vmatpush2.msra.mxu0 %v349
  %2536 = vmatprep.mubr.f32.mxu0 %v2207
  %2537 = vmatmul.mubr.f32.gmra.mxu0 %v2400
  %v2538 = vpop.f32.mrf.mxu0
  %v2539 = vadd.f32 %v424, %v2538
  %v2540 = vpop.f32.mrf.mxu0
  %v2541 = vadd.f32 %v428, %v2540
  %2542 = vdwg.mxu0
  %v2543 = vxor.u32 %v2468, 2147483648
  %v2544 = vmul.f32 %v2543, 1.442695
  %v2545 = vpow.pop %v2544
  %v2546 = vadd.f32 %v2545, 1.0
  %v2547 = vrcp.pop %v2546
  %v2548 = vmul.f32 1.0, %v2547
  %v2549 = vxor.u32 %v2470, 2147483648
  %v2550 = vmul.f32 %v2549, 1.442695
  %v2551 = vpow.pop %v2550
  %v2552 = vadd.f32 %v2551, 1.0
  %v2553 = vrcp.pop %v2552
  %v2554 = vmul.f32 1.0, %v2553
  %v2555 = vtanh.pop %v2539
  %v2556 = vxor.u32 %v2541, 2147483648
  %v2557 = vmul.f32 %v2556, 1.442695
  %v2558 = vpow.pop %v2557
  %v2559 = vadd.f32 %v2558, 1.0
  %v2560 = vrcp.pop %v2559
  %v2561 = vmul.f32 1.0, %v2560
  %v2562 = vmul.f32 %v2554, %v2205
  %v2563 = vmul.f32 %v2548, %v2555
  %v2564 = vadd.f32 %v2562, %v2563
  %v2565 = vtanh.pop %v2564
  %v2566 = vmul.f32 %v2561, %v2565
  %s2567 = scalar_lea.vmem %s9, 40
  %2568 = vst [vmem:[%s2567] sm:$0xff] %v2566
  %v2569 = vld [vmem:[%s6 + $0x5] sm:$0x1]
  %v2570 = vld [vmem:[%s7 + $0x5] sm:$0x1]
  %v2571 = vlaneseq
  %v2572 = vshrl.u32 %v2571, 7
  %v2573 = vsub.s32 0, %v2572
  %v2574 = vrot.slane %v2569, %v2573
  %v2575 = vmul.f32 %v2566, %v2574
  %2576 = vadd.xlane.f32.xlu0 %v2575
  %v2577 = vpop.xlane.xlu0 %2576
  %v2578 = vlaneseq
  %v2579 = vshrl.u32 %v2578, 7
  %v2580 = vsub.s32 0, %v2579
  %v2581 = vrot.slane %v2570, %v2580
  %v2582 = vadd.f32 %v2577, %v2581
  %s2583 = scalar_lea.vmem %s8, 40
  %2584 = vst.msk [vmem:[%s2583] sm:$0xff] %vm788, %v2582
  %s2585 = scalar_lea.vmem [#allocation2], 192
  %v2586 = vld [vmem:[%s2585] sm:$0xff]
  %v2587 = vld [vmem:[%s2585 + $0x8] sm:$0xff]
  %v2588 = vld [vmem:[%s2585 + $0x10] sm:$0xff]
  %v2589 = vld [vmem:[%s2585 + $0x18] sm:$0xff]
  %2590 = vmatprep.subr.mxu0 %v280
  %2591 = vmatpush1.msra.mxu0 %v279
  %2592 = vmatprep.subr.mxu0 %v276
  %2593 = vmatpush1.msra.mxu0 %v275
  %2594 = vmatprep.subr.mxu0 %v272
  %2595 = vmatpush1.msra.mxu0 %v271
  %2596 = vmatprep.subr.mxu0 %v268
  %2597 = vmatpush1.msra.mxu0 %v267
  %2598 = vmatprep.subr.mxu0 %v264
  %2599 = vmatpush1.msra.mxu0 %v263
  %2600 = vmatprep.subr.mxu0 %v260
  %2601 = vmatpush1.msra.mxu0 %v259
  %2602 = vmatprep.subr.mxu0 %v256
  %2603 = vmatpush1.msra.mxu0 %v255
  %2604 = vmatprep.subr.mxu0 %v252
  %2605 = vmatpush1.msra.mxu0 %v251
  %2606 = vmatprep.subr.mxu0 %v248
  %2607 = vmatpush1.msra.mxu0 %v247
  %2608 = vmatprep.subr.mxu0 %v244
  %2609 = vmatpush1.msra.mxu0 %v243
  %2610 = vmatprep.subr.mxu0 %v240
  %2611 = vmatpush1.msra.mxu0 %v239
  %2612 = vmatprep.subr.mxu0 %v236
  %2613 = vmatpush1.msra.mxu0 %v235
  %2614 = vmatprep.subr.mxu0 %v232
  %2615 = vmatpush1.msra.mxu0 %v231
  %2616 = vmatprep.subr.mxu0 %v228
  %2617 = vmatpush1.msra.mxu0 %v227
  %2618 = vmatprep.subr.mxu0 %v224
  %2619 = vmatpush1.msra.mxu0 %v223
  %2620 = vmatprep.subr.mxu0 %v220
  %2621 = vmatpush1.msra.mxu0 %v219
  %2622 = vmatprep.subr.mxu0 0.0
  %2623 = vmatpush2.msra.mxu0 0.0
  %2624 = vmatprep.subr.mxu0 0.0
  %2625 = vmatpush2.msra.mxu0 0.0
  %2626 = vmatprep.subr.mxu0 0.0
  %2627 = vmatpush2.msra.mxu0 0.0
  %2628 = vmatprep.subr.mxu0 0.0
  %2629 = vmatpush2.msra.mxu0 0.0
  %2630 = vmatprep.subr.mxu0 0.0
  %2631 = vmatpush2.msra.mxu0 0.0
  %2632 = vmatprep.subr.mxu0 0.0
  %2633 = vmatpush2.msra.mxu0 0.0
  %2634 = vmatprep.subr.mxu0 0.0
  %2635 = vmatpush2.msra.mxu0 0.0
  %2636 = vmatprep.subr.mxu0 0.0
  %2637 = vmatpush2.msra.mxu0 0.0
  %2638 = vmatprep.subr.mxu0 0.0
  %2639 = vmatpush2.msra.mxu0 0.0
  %2640 = vmatprep.subr.mxu0 0.0
  %2641 = vmatpush2.msra.mxu0 0.0
  %2642 = vmatprep.subr.mxu0 0.0
  %2643 = vmatpush2.msra.mxu0 0.0
  %2644 = vmatprep.subr.mxu0 0.0
  %2645 = vmatpush2.msra.mxu0 0.0
  %2646 = vmatprep.subr.mxu0 0.0
  %2647 = vmatpush2.msra.mxu0 0.0
  %2648 = vmatprep.subr.mxu0 0.0
  %2649 = vmatpush2.msra.mxu0 0.0
  %2650 = vmatprep.subr.mxu0 0.0
  %2651 = vmatpush2.msra.mxu0 0.0
  %2652 = vmatprep.subr.mxu0 0.0
  %2653 = vmatpush2.msra.mxu0 0.0
  %2654 = vmatprep.mubr.f32.mxu0 0.0
  %2655 = vmatmul.mubr.f32.gmra.mxu0 %v2400
  %v2656 = vpop.f32.mrf.mxu0
  %v2657 = vadd.f32 0.0, %v2656
  %v2658 = vpop.f32.mrf.mxu0
  %v2659 = vadd.f32 0.0, %v2658
  %2660 = vdwg.mxu0
  %2661 = vmatprep.subr.mxu0 %v282
  %2662 = vmatpush1.msra.mxu0 %v281
  %2663 = vmatprep.subr.mxu0 %v278
  %2664 = vmatpush1.msra.mxu0 %v277
  %2665 = vmatprep.subr.mxu0 %v274
  %2666 = vmatpush1.msra.mxu0 %v273
  %2667 = vmatprep.subr.mxu0 %v270
  %2668 = vmatpush1.msra.mxu0 %v269
  %2669 = vmatprep.subr.mxu0 %v266
  %2670 = vmatpush1.msra.mxu0 %v265
  %2671 = vmatprep.subr.mxu0 %v262
  %2672 = vmatpush1.msra.mxu0 %v261
  %2673 = vmatprep.subr.mxu0 %v258
  %2674 = vmatpush1.msra.mxu0 %v257
  %2675 = vmatprep.subr.mxu0 %v254
  %2676 = vmatpush1.msra.mxu0 %v253
  %2677 = vmatprep.subr.mxu0 %v250
  %2678 = vmatpush1.msra.mxu0 %v249
  %2679 = vmatprep.subr.mxu0 %v246
  %2680 = vmatpush1.msra.mxu0 %v245
  %2681 = vmatprep.subr.mxu0 %v242
  %2682 = vmatpush1.msra.mxu0 %v241
  %2683 = vmatprep.subr.mxu0 %v238
  %2684 = vmatpush1.msra.mxu0 %v237
  %2685 = vmatprep.subr.mxu0 %v234
  %2686 = vmatpush1.msra.mxu0 %v233
  %2687 = vmatprep.subr.mxu0 %v230
  %2688 = vmatpush1.msra.mxu0 %v229
  %2689 = vmatprep.subr.mxu0 %v226
  %2690 = vmatpush1.msra.mxu0 %v225
  %2691 = vmatprep.subr.mxu0 %v222
  %2692 = vmatpush1.msra.mxu0 %v221
  %2693 = vmatprep.subr.mxu0 0.0
  %2694 = vmatpush2.msra.mxu0 0.0
  %2695 = vmatprep.subr.mxu0 0.0
  %2696 = vmatpush2.msra.mxu0 0.0
  %2697 = vmatprep.subr.mxu0 0.0
  %2698 = vmatpush2.msra.mxu0 0.0
  %2699 = vmatprep.subr.mxu0 0.0
  %2700 = vmatpush2.msra.mxu0 0.0
  %2701 = vmatprep.subr.mxu0 0.0
  %2702 = vmatpush2.msra.mxu0 0.0
  %2703 = vmatprep.subr.mxu0 0.0
  %2704 = vmatpush2.msra.mxu0 0.0
  %2705 = vmatprep.subr.mxu0 0.0
  %2706 = vmatpush2.msra.mxu0 0.0
  %2707 = vmatprep.subr.mxu0 0.0
  %2708 = vmatpush2.msra.mxu0 0.0
  %2709 = vmatprep.subr.mxu0 0.0
  %2710 = vmatpush2.msra.mxu0 0.0
  %2711 = vmatprep.subr.mxu0 0.0
  %2712 = vmatpush2.msra.mxu0 0.0
  %2713 = vmatprep.subr.mxu0 0.0
  %2714 = vmatpush2.msra.mxu0 0.0
  %2715 = vmatprep.subr.mxu0 0.0
  %2716 = vmatpush2.msra.mxu0 0.0
  %2717 = vmatprep.subr.mxu0 0.0
  %2718 = vmatpush2.msra.mxu0 0.0
  %2719 = vmatprep.subr.mxu0 0.0
  %2720 = vmatpush2.msra.mxu0 0.0
  %2721 = vmatprep.subr.mxu0 0.0
  %2722 = vmatpush2.msra.mxu0 0.0
  %2723 = vmatprep.subr.mxu0 0.0
  %2724 = vmatpush2.msra.mxu0 0.0
  %2725 = vmatprep.mubr.f32.mxu0 0.0
  %2726 = vmatmul.mubr.f32.gmra.mxu0 %v2400
  %v2727 = vpop.f32.mrf.mxu0
  %v2728 = vadd.f32 0.0, %v2727
  %v2729 = vpop.f32.mrf.mxu0
  %v2730 = vadd.f32 0.0, %v2729
  %2731 = vdwg.mxu0
  %v2732 = vadd.f32 %v2586, %v2657
  %v2733 = vadd.f32 %v2587, %v2659
  %v2734 = vadd.f32 %v2588, %v2728
  %v2735 = vadd.f32 %v2589, %v2730
  %v2736 = vxor.u32 %v2732, 2147483648
  %v2737 = vmul.f32 %v2736, 1.442695
  %v2738 = vpow.pop %v2737
  %v2739 = vadd.f32 %v2738, 1.0
  %v2740 = vrcp.pop %v2739
  %v2741 = vmul.f32 1.0, %v2740
  %v2742 = vxor.u32 %v2733, 2147483648
  %v2743 = vmul.f32 %v2742, 1.442695
  %v2744 = vpow.pop %v2743
  %v2745 = vadd.f32 %v2744, 1.0
  %v2746 = vrcp.pop %v2745
  %v2747 = vmul.f32 1.0, %v2746
  %v2748 = vtanh.pop %v2734
  %v2749 = vxor.u32 %v2735, 2147483648
  %v2750 = vmul.f32 %v2749, 1.442695
  %v2751 = vpow.pop %v2750
  %v2752 = vadd.f32 %v2751, 1.0
  %v2753 = vrcp.pop %v2752
  %v2754 = vmul.f32 1.0, %v2753
  %v2755 = vmul.f32 %v2747, %v2398
  %v2756 = vmul.f32 %v2741, %v2748
  %v2757 = vadd.f32 %v2755, %v2756
  %v2758 = vtanh.pop %v2757
  %v2759 = vmul.f32 %v2754, %v2758
  %2760 = vmatprep.subr.mxu0 %v344
  %2761 = vmatpush1.msra.mxu0 %v343
  %2762 = vmatprep.subr.mxu0 %v340
  %2763 = vmatpush1.msra.mxu0 %v339
  %2764 = vmatprep.subr.mxu0 %v336
  %2765 = vmatpush1.msra.mxu0 %v335
  %2766 = vmatprep.subr.mxu0 %v332
  %2767 = vmatpush1.msra.mxu0 %v331
  %2768 = vmatprep.subr.mxu0 %v328
  %2769 = vmatpush1.msra.mxu0 %v327
  %2770 = vmatprep.subr.mxu0 %v324
  %2771 = vmatpush1.msra.mxu0 %v323
  %2772 = vmatprep.subr.mxu0 %v320
  %2773 = vmatpush1.msra.mxu0 %v319
  %2774 = vmatprep.subr.mxu0 %v316
  %2775 = vmatpush1.msra.mxu0 %v315
  %2776 = vmatprep.subr.mxu0 %v312
  %2777 = vmatpush1.msra.mxu0 %v311
  %2778 = vmatprep.subr.mxu0 %v308
  %2779 = vmatpush1.msra.mxu0 %v307
  %2780 = vmatprep.subr.mxu0 %v304
  %2781 = vmatpush1.msra.mxu0 %v303
  %2782 = vmatprep.subr.mxu0 %v300
  %2783 = vmatpush1.msra.mxu0 %v299
  %2784 = vmatprep.subr.mxu0 %v296
  %2785 = vmatpush1.msra.mxu0 %v295
  %2786 = vmatprep.subr.mxu0 %v292
  %2787 = vmatpush1.msra.mxu0 %v291
  %2788 = vmatprep.subr.mxu0 %v288
  %2789 = vmatpush1.msra.mxu0 %v287
  %2790 = vmatprep.subr.mxu0 %v284
  %2791 = vmatpush1.msra.mxu0 %v283
  %2792 = vmatprep.subr.mxu0 %v408
  %2793 = vmatpush2.msra.mxu0 %v407
  %2794 = vmatprep.subr.mxu0 %v404
  %2795 = vmatpush2.msra.mxu0 %v403
  %2796 = vmatprep.subr.mxu0 %v400
  %2797 = vmatpush2.msra.mxu0 %v399
  %2798 = vmatprep.subr.mxu0 %v396
  %2799 = vmatpush2.msra.mxu0 %v395
  %2800 = vmatprep.subr.mxu0 %v392
  %2801 = vmatpush2.msra.mxu0 %v391
  %2802 = vmatprep.subr.mxu0 %v388
  %2803 = vmatpush2.msra.mxu0 %v387
  %2804 = vmatprep.subr.mxu0 %v384
  %2805 = vmatpush2.msra.mxu0 %v383
  %2806 = vmatprep.subr.mxu0 %v380
  %2807 = vmatpush2.msra.mxu0 %v379
  %2808 = vmatprep.subr.mxu0 %v376
  %2809 = vmatpush2.msra.mxu0 %v375
  %2810 = vmatprep.subr.mxu0 %v372
  %2811 = vmatpush2.msra.mxu0 %v371
  %2812 = vmatprep.subr.mxu0 %v368
  %2813 = vmatpush2.msra.mxu0 %v367
  %2814 = vmatprep.subr.mxu0 %v364
  %2815 = vmatpush2.msra.mxu0 %v363
  %2816 = vmatprep.subr.mxu0 %v360
  %2817 = vmatpush2.msra.mxu0 %v359
  %2818 = vmatprep.subr.mxu0 %v356
  %2819 = vmatpush2.msra.mxu0 %v355
  %2820 = vmatprep.subr.mxu0 %v352
  %2821 = vmatpush2.msra.mxu0 %v351
  %2822 = vmatprep.subr.mxu0 %v348
  %2823 = vmatpush2.msra.mxu0 %v347
  %2824 = vmatprep.mubr.f32.mxu0 %v2566
  %2825 = vmatmul.mubr.f32.gmra.mxu0 %v2759
  %v2826 = vpop.f32.mrf.mxu0
  %v2827 = vadd.f32 %v416, %v2826
  %v2828 = vpop.f32.mrf.mxu0
  %v2829 = vadd.f32 %v420, %v2828
  %2830 = vdwg.mxu0
  %2831 = vmatprep.subr.mxu0 %v346
  %2832 = vmatpush1.msra.mxu0 %v345
  %2833 = vmatprep.subr.mxu0 %v342
  %2834 = vmatpush1.msra.mxu0 %v341
  %2835 = vmatprep.subr.mxu0 %v338
  %2836 = vmatpush1.msra.mxu0 %v337
  %2837 = vmatprep.subr.mxu0 %v334
  %2838 = vmatpush1.msra.mxu0 %v333
  %2839 = vmatprep.subr.mxu0 %v330
  %2840 = vmatpush1.msra.mxu0 %v329
  %2841 = vmatprep.subr.mxu0 %v326
  %2842 = vmatpush1.msra.mxu0 %v325
  %2843 = vmatprep.subr.mxu0 %v322
  %2844 = vmatpush1.msra.mxu0 %v321
  %2845 = vmatprep.subr.mxu0 %v318
  %2846 = vmatpush1.msra.mxu0 %v317
  %2847 = vmatprep.subr.mxu0 %v314
  %2848 = vmatpush1.msra.mxu0 %v313
  %2849 = vmatprep.subr.mxu0 %v310
  %2850 = vmatpush1.msra.mxu0 %v309
  %2851 = vmatprep.subr.mxu0 %v306
  %2852 = vmatpush1.msra.mxu0 %v305
  %2853 = vmatprep.subr.mxu0 %v302
  %2854 = vmatpush1.msra.mxu0 %v301
  %2855 = vmatprep.subr.mxu0 %v298
  %2856 = vmatpush1.msra.mxu0 %v297
  %2857 = vmatprep.subr.mxu0 %v294
  %2858 = vmatpush1.msra.mxu0 %v293
  %2859 = vmatprep.subr.mxu0 %v290
  %2860 = vmatpush1.msra.mxu0 %v289
  %2861 = vmatprep.subr.mxu0 %v286
  %2862 = vmatpush1.msra.mxu0 %v285
  %2863 = vmatprep.subr.mxu0 %v410
  %2864 = vmatpush2.msra.mxu0 %v409
  %2865 = vmatprep.subr.mxu0 %v406
  %2866 = vmatpush2.msra.mxu0 %v405
  %2867 = vmatprep.subr.mxu0 %v402
  %2868 = vmatpush2.msra.mxu0 %v401
  %2869 = vmatprep.subr.mxu0 %v398
  %2870 = vmatpush2.msra.mxu0 %v397
  %2871 = vmatprep.subr.mxu0 %v394
  %2872 = vmatpush2.msra.mxu0 %v393
  %2873 = vmatprep.subr.mxu0 %v390
  %2874 = vmatpush2.msra.mxu0 %v389
  %2875 = vmatprep.subr.mxu0 %v386
  %2876 = vmatpush2.msra.mxu0 %v385
  %2877 = vmatprep.subr.mxu0 %v382
  %2878 = vmatpush2.msra.mxu0 %v381
  %2879 = vmatprep.subr.mxu0 %v378
  %2880 = vmatpush2.msra.mxu0 %v377
  %2881 = vmatprep.subr.mxu0 %v374
  %2882 = vmatpush2.msra.mxu0 %v373
  %2883 = vmatprep.subr.mxu0 %v370
  %2884 = vmatpush2.msra.mxu0 %v369
  %2885 = vmatprep.subr.mxu0 %v366
  %2886 = vmatpush2.msra.mxu0 %v365
  %2887 = vmatprep.subr.mxu0 %v362
  %2888 = vmatpush2.msra.mxu0 %v361
  %2889 = vmatprep.subr.mxu0 %v358
  %2890 = vmatpush2.msra.mxu0 %v357
  %2891 = vmatprep.subr.mxu0 %v354
  %2892 = vmatpush2.msra.mxu0 %v353
  %2893 = vmatprep.subr.mxu0 %v350
  %2894 = vmatpush2.msra.mxu0 %v349
  %2895 = vmatprep.mubr.f32.mxu0 %v2566
  %2896 = vmatmul.mubr.f32.gmra.mxu0 %v2759
  %v2897 = vpop.f32.mrf.mxu0
  %v2898 = vadd.f32 %v424, %v2897
  %v2899 = vpop.f32.mrf.mxu0
  %v2900 = vadd.f32 %v428, %v2899
  %2901 = vdwg.mxu0
  %v2902 = vxor.u32 %v2827, 2147483648
  %v2903 = vmul.f32 %v2902, 1.442695
  %v2904 = vpow.pop %v2903
  %v2905 = vadd.f32 %v2904, 1.0
  %v2906 = vrcp.pop %v2905
  %v2907 = vmul.f32 1.0, %v2906
  %v2908 = vxor.u32 %v2829, 2147483648
  %v2909 = vmul.f32 %v2908, 1.442695
  %v2910 = vpow.pop %v2909
  %v2911 = vadd.f32 %v2910, 1.0
  %v2912 = vrcp.pop %v2911
  %v2913 = vmul.f32 1.0, %v2912
  %v2914 = vtanh.pop %v2898
  %v2915 = vxor.u32 %v2900, 2147483648
  %v2916 = vmul.f32 %v2915, 1.442695
  %v2917 = vpow.pop %v2916
  %v2918 = vadd.f32 %v2917, 1.0
  %v2919 = vrcp.pop %v2918
  %v2920 = vmul.f32 1.0, %v2919
  %v2921 = vmul.f32 %v2913, %v2564
  %v2922 = vmul.f32 %v2907, %v2914
  %v2923 = vadd.f32 %v2921, %v2922
  %v2924 = vtanh.pop %v2923
  %v2925 = vmul.f32 %v2920, %v2924
  %s2926 = scalar_lea.vmem %s9, 48
  %2927 = vst [vmem:[%s2926] sm:$0xff] %v2925
  %v2928 = vld [vmem:[%s6 + $0x6] sm:$0x1]
  %v2929 = vld [vmem:[%s7 + $0x6] sm:$0x1]
  %v2930 = vlaneseq
  %v2931 = vshrl.u32 %v2930, 7
  %v2932 = vsub.s32 0, %v2931
  %v2933 = vrot.slane %v2928, %v2932
  %v2934 = vmul.f32 %v2925, %v2933
  %2935 = vadd.xlane.f32.xlu0 %v2934
  %v2936 = vpop.xlane.xlu0 %2935
  %v2937 = vlaneseq
  %v2938 = vshrl.u32 %v2937, 7
  %v2939 = vsub.s32 0, %v2938
  %v2940 = vrot.slane %v2929, %v2939
  %v2941 = vadd.f32 %v2936, %v2940
  %s2942 = scalar_lea.vmem %s8, 48
  %2943 = vst.msk [vmem:[%s2942] sm:$0xff] %vm788, %v2941
  %s2944 = scalar_lea.vmem [#allocation2], 224
  %v2945 = vld [vmem:[%s2944] sm:$0xff]
  %v2946 = vld [vmem:[%s2944 + $0x8] sm:$0xff]
  %v2947 = vld [vmem:[%s2944 + $0x10] sm:$0xff]
  %v2948 = vld [vmem:[%s2944 + $0x18] sm:$0xff]
  %2949 = vmatprep.subr.mxu0 %v280
  %2950 = vmatpush1.msra.mxu0 %v279
  %2951 = vmatprep.subr.mxu0 %v276
  %2952 = vmatpush1.msra.mxu0 %v275
  %2953 = vmatprep.subr.mxu0 %v272
  %2954 = vmatpush1.msra.mxu0 %v271
  %2955 = vmatprep.subr.mxu0 %v268
  %2956 = vmatpush1.msra.mxu0 %v267
  %2957 = vmatprep.subr.mxu0 %v264
  %2958 = vmatpush1.msra.mxu0 %v263
  %2959 = vmatprep.subr.mxu0 %v260
  %2960 = vmatpush1.msra.mxu0 %v259
  %2961 = vmatprep.subr.mxu0 %v256
  %2962 = vmatpush1.msra.mxu0 %v255
  %2963 = vmatprep.subr.mxu0 %v252
  %2964 = vmatpush1.msra.mxu0 %v251
  %2965 = vmatprep.subr.mxu0 %v248
  %2966 = vmatpush1.msra.mxu0 %v247
  %2967 = vmatprep.subr.mxu0 %v244
  %2968 = vmatpush1.msra.mxu0 %v243
  %2969 = vmatprep.subr.mxu0 %v240
  %2970 = vmatpush1.msra.mxu0 %v239
  %2971 = vmatprep.subr.mxu0 %v236
  %2972 = vmatpush1.msra.mxu0 %v235
  %2973 = vmatprep.subr.mxu0 %v232
  %2974 = vmatpush1.msra.mxu0 %v231
  %2975 = vmatprep.subr.mxu0 %v228
  %2976 = vmatpush1.msra.mxu0 %v227
  %2977 = vmatprep.subr.mxu0 %v224
  %2978 = vmatpush1.msra.mxu0 %v223
  %2979 = vmatprep.subr.mxu0 %v220
  %2980 = vmatpush1.msra.mxu0 %v219
  %2981 = vmatprep.subr.mxu0 0.0
  %2982 = vmatpush2.msra.mxu0 0.0
  %2983 = vmatprep.subr.mxu0 0.0
  %2984 = vmatpush2.msra.mxu0 0.0
  %2985 = vmatprep.subr.mxu0 0.0
  %2986 = vmatpush2.msra.mxu0 0.0
  %2987 = vmatprep.subr.mxu0 0.0
  %2988 = vmatpush2.msra.mxu0 0.0
  %2989 = vmatprep.subr.mxu0 0.0
  %2990 = vmatpush2.msra.mxu0 0.0
  %2991 = vmatprep.subr.mxu0 0.0
  %2992 = vmatpush2.msra.mxu0 0.0
  %2993 = vmatprep.subr.mxu0 0.0
  %2994 = vmatpush2.msra.mxu0 0.0
  %2995 = vmatprep.subr.mxu0 0.0
  %2996 = vmatpush2.msra.mxu0 0.0
  %2997 = vmatprep.subr.mxu0 0.0
  %2998 = vmatpush2.msra.mxu0 0.0
  %2999 = vmatprep.subr.mxu0 0.0
  %3000 = vmatpush2.msra.mxu0 0.0
  %3001 = vmatprep.subr.mxu0 0.0
  %3002 = vmatpush2.msra.mxu0 0.0
  %3003 = vmatprep.subr.mxu0 0.0
  %3004 = vmatpush2.msra.mxu0 0.0
  %3005 = vmatprep.subr.mxu0 0.0
  %3006 = vmatpush2.msra.mxu0 0.0
  %3007 = vmatprep.subr.mxu0 0.0
  %3008 = vmatpush2.msra.mxu0 0.0
  %3009 = vmatprep.subr.mxu0 0.0
  %3010 = vmatpush2.msra.mxu0 0.0
  %3011 = vmatprep.subr.mxu0 0.0
  %3012 = vmatpush2.msra.mxu0 0.0
  %3013 = vmatprep.mubr.f32.mxu0 0.0
  %3014 = vmatmul.mubr.f32.gmra.mxu0 %v2759
  %v3015 = vpop.f32.mrf.mxu0
  %v3016 = vadd.f32 0.0, %v3015
  %v3017 = vpop.f32.mrf.mxu0
  %v3018 = vadd.f32 0.0, %v3017
  %3019 = vdwg.mxu0
  %3020 = vmatprep.subr.mxu0 %v282
  %3021 = vmatpush1.msra.mxu0 %v281
  %3022 = vmatprep.subr.mxu0 %v278
  %3023 = vmatpush1.msra.mxu0 %v277
  %3024 = vmatprep.subr.mxu0 %v274
  %3025 = vmatpush1.msra.mxu0 %v273
  %3026 = vmatprep.subr.mxu0 %v270
  %3027 = vmatpush1.msra.mxu0 %v269
  %3028 = vmatprep.subr.mxu0 %v266
  %3029 = vmatpush1.msra.mxu0 %v265
  %3030 = vmatprep.subr.mxu0 %v262
  %3031 = vmatpush1.msra.mxu0 %v261
  %3032 = vmatprep.subr.mxu0 %v258
  %3033 = vmatpush1.msra.mxu0 %v257
  %3034 = vmatprep.subr.mxu0 %v254
  %3035 = vmatpush1.msra.mxu0 %v253
  %3036 = vmatprep.subr.mxu0 %v250
  %3037 = vmatpush1.msra.mxu0 %v249
  %3038 = vmatprep.subr.mxu0 %v246
  %3039 = vmatpush1.msra.mxu0 %v245
  %3040 = vmatprep.subr.mxu0 %v242
  %3041 = vmatpush1.msra.mxu0 %v241
  %3042 = vmatprep.subr.mxu0 %v238
  %3043 = vmatpush1.msra.mxu0 %v237
  %3044 = vmatprep.subr.mxu0 %v234
  %3045 = vmatpush1.msra.mxu0 %v233
  %3046 = vmatprep.subr.mxu0 %v230
  %3047 = vmatpush1.msra.mxu0 %v229
  %3048 = vmatprep.subr.mxu0 %v226
  %3049 = vmatpush1.msra.mxu0 %v225
  %3050 = vmatprep.subr.mxu0 %v222
  %3051 = vmatpush1.msra.mxu0 %v221
  %3052 = vmatprep.subr.mxu0 0.0
  %3053 = vmatpush2.msra.mxu0 0.0
  %3054 = vmatprep.subr.mxu0 0.0
  %3055 = vmatpush2.msra.mxu0 0.0
  %3056 = vmatprep.subr.mxu0 0.0
  %3057 = vmatpush2.msra.mxu0 0.0
  %3058 = vmatprep.subr.mxu0 0.0
  %3059 = vmatpush2.msra.mxu0 0.0
  %3060 = vmatprep.subr.mxu0 0.0
  %3061 = vmatpush2.msra.mxu0 0.0
  %3062 = vmatprep.subr.mxu0 0.0
  %3063 = vmatpush2.msra.mxu0 0.0
  %3064 = vmatprep.subr.mxu0 0.0
  %3065 = vmatpush2.msra.mxu0 0.0
  %3066 = vmatprep.subr.mxu0 0.0
  %3067 = vmatpush2.msra.mxu0 0.0
  %3068 = vmatprep.subr.mxu0 0.0
  %3069 = vmatpush2.msra.mxu0 0.0
  %3070 = vmatprep.subr.mxu0 0.0
  %3071 = vmatpush2.msra.mxu0 0.0
  %3072 = vmatprep.subr.mxu0 0.0
  %3073 = vmatpush2.msra.mxu0 0.0
  %3074 = vmatprep.subr.mxu0 0.0
  %3075 = vmatpush2.msra.mxu0 0.0
  %3076 = vmatprep.subr.mxu0 0.0
  %3077 = vmatpush2.msra.mxu0 0.0
  %3078 = vmatprep.subr.mxu0 0.0
  %3079 = vmatpush2.msra.mxu0 0.0
  %3080 = vmatprep.subr.mxu0 0.0
  %3081 = vmatpush2.msra.mxu0 0.0
  %3082 = vmatprep.subr.mxu0 0.0
  %3083 = vmatpush2.msra.mxu0 0.0
  %3084 = vmatprep.mubr.f32.mxu0 0.0
  %3085 = vmatmul.mubr.f32.gmra.mxu0 %v2759
  %v3086 = vpop.f32.mrf.mxu0
  %v3087 = vadd.f32 0.0, %v3086
  %v3088 = vpop.f32.mrf.mxu0
  %v3089 = vadd.f32 0.0, %v3088
  %3090 = vdwg.mxu0
  %v3091 = vadd.f32 %v2945, %v3016
  %v3092 = vadd.f32 %v2946, %v3018
  %v3093 = vadd.f32 %v2947, %v3087
  %v3094 = vadd.f32 %v2948, %v3089
  %v3095 = vxor.u32 %v3091, 2147483648
  %v3096 = vmul.f32 %v3095, 1.442695
  %v3097 = vpow.pop %v3096
  %v3098 = vadd.f32 %v3097, 1.0
  %v3099 = vrcp.pop %v3098
  %v3100 = vmul.f32 1.0, %v3099
  %v3101 = vxor.u32 %v3092, 2147483648
  %v3102 = vmul.f32 %v3101, 1.442695
  %v3103 = vpow.pop %v3102
  %v3104 = vadd.f32 %v3103, 1.0
  %v3105 = vrcp.pop %v3104
  %v3106 = vmul.f32 1.0, %v3105
  %v3107 = vtanh.pop %v3093
  %v3108 = vxor.u32 %v3094, 2147483648
  %v3109 = vmul.f32 %v3108, 1.442695
  %v3110 = vpow.pop %v3109
  %v3111 = vadd.f32 %v3110, 1.0
  %v3112 = vrcp.pop %v3111
  %v3113 = vmul.f32 1.0, %v3112
  %v3114 = vmul.f32 %v3106, %v2757
  %v3115 = vmul.f32 %v3100, %v3107
  %v3116 = vadd.f32 %v3114, %v3115
  %v3117 = vtanh.pop %v3116
  %v3118 = vmul.f32 %v3113, %v3117
  %3119 = vmatprep.subr.mxu0 %v344
  %3120 = vmatpush1.msra.mxu0 %v343
  %3121 = vmatprep.subr.mxu0 %v340
  %3122 = vmatpush1.msra.mxu0 %v339
  %3123 = vmatprep.subr.mxu0 %v336
  %3124 = vmatpush1.msra.mxu0 %v335
  %3125 = vmatprep.subr.mxu0 %v332
  %3126 = vmatpush1.msra.mxu0 %v331
  %3127 = vmatprep.subr.mxu0 %v328
  %3128 = vmatpush1.msra.mxu0 %v327
  %3129 = vmatprep.subr.mxu0 %v324
  %3130 = vmatpush1.msra.mxu0 %v323
  %3131 = vmatprep.subr.mxu0 %v320
  %3132 = vmatpush1.msra.mxu0 %v319
  %3133 = vmatprep.subr.mxu0 %v316
  %3134 = vmatpush1.msra.mxu0 %v315
  %3135 = vmatprep.subr.mxu0 %v312
  %3136 = vmatpush1.msra.mxu0 %v311
  %3137 = vmatprep.subr.mxu0 %v308
  %3138 = vmatpush1.msra.mxu0 %v307
  %3139 = vmatprep.subr.mxu0 %v304
  %3140 = vmatpush1.msra.mxu0 %v303
  %3141 = vmatprep.subr.mxu0 %v300
  %3142 = vmatpush1.msra.mxu0 %v299
  %3143 = vmatprep.subr.mxu0 %v296
  %3144 = vmatpush1.msra.mxu0 %v295
  %3145 = vmatprep.subr.mxu0 %v292
  %3146 = vmatpush1.msra.mxu0 %v291
  %3147 = vmatprep.subr.mxu0 %v288
  %3148 = vmatpush1.msra.mxu0 %v287
  %3149 = vmatprep.subr.mxu0 %v284
  %3150 = vmatpush1.msra.mxu0 %v283
  %3151 = vmatprep.subr.mxu0 %v408
  %3152 = vmatpush2.msra.mxu0 %v407
  %3153 = vmatprep.subr.mxu0 %v404
  %3154 = vmatpush2.msra.mxu0 %v403
  %3155 = vmatprep.subr.mxu0 %v400
  %3156 = vmatpush2.msra.mxu0 %v399
  %3157 = vmatprep.subr.mxu0 %v396
  %3158 = vmatpush2.msra.mxu0 %v395
  %3159 = vmatprep.subr.mxu0 %v392
  %3160 = vmatpush2.msra.mxu0 %v391
  %3161 = vmatprep.subr.mxu0 %v388
  %3162 = vmatpush2.msra.mxu0 %v387
  %3163 = vmatprep.subr.mxu0 %v384
  %3164 = vmatpush2.msra.mxu0 %v383
  %3165 = vmatprep.subr.mxu0 %v380
  %3166 = vmatpush2.msra.mxu0 %v379
  %3167 = vmatprep.subr.mxu0 %v376
  %3168 = vmatpush2.msra.mxu0 %v375
  %3169 = vmatprep.subr.mxu0 %v372
  %3170 = vmatpush2.msra.mxu0 %v371
  %3171 = vmatprep.subr.mxu0 %v368
  %3172 = vmatpush2.msra.mxu0 %v367
  %3173 = vmatprep.subr.mxu0 %v364
  %3174 = vmatpush2.msra.mxu0 %v363
  %3175 = vmatprep.subr.mxu0 %v360
  %3176 = vmatpush2.msra.mxu0 %v359
  %3177 = vmatprep.subr.mxu0 %v356
  %3178 = vmatpush2.msra.mxu0 %v355
  %3179 = vmatprep.subr.mxu0 %v352
  %3180 = vmatpush2.msra.mxu0 %v351
  %3181 = vmatprep.subr.mxu0 %v348
  %3182 = vmatpush2.msra.mxu0 %v347
  %3183 = vmatprep.mubr.f32.mxu0 %v2925
  %3184 = vmatmul.mubr.f32.gmra.mxu0 %v3118
  %v3185 = vpop.f32.mrf.mxu0
  %v3186 = vadd.f32 %v416, %v3185
  %v3187 = vpop.f32.mrf.mxu0
  %v3188 = vadd.f32 %v420, %v3187
  %3189 = vdwg.mxu0
  %3190 = vmatprep.subr.mxu0 %v346
  %3191 = vmatpush1.msra.mxu0 %v345
  %3192 = vmatprep.subr.mxu0 %v342
  %3193 = vmatpush1.msra.mxu0 %v341
  %3194 = vmatprep.subr.mxu0 %v338
  %3195 = vmatpush1.msra.mxu0 %v337
  %3196 = vmatprep.subr.mxu0 %v334
  %3197 = vmatpush1.msra.mxu0 %v333
  %3198 = vmatprep.subr.mxu0 %v330
  %3199 = vmatpush1.msra.mxu0 %v329
  %3200 = vmatprep.subr.mxu0 %v326
  %3201 = vmatpush1.msra.mxu0 %v325
  %3202 = vmatprep.subr.mxu0 %v322
  %3203 = vmatpush1.msra.mxu0 %v321
  %3204 = vmatprep.subr.mxu0 %v318
  %3205 = vmatpush1.msra.mxu0 %v317
  %3206 = vmatprep.subr.mxu0 %v314
  %3207 = vmatpush1.msra.mxu0 %v313
  %3208 = vmatprep.subr.mxu0 %v310
  %3209 = vmatpush1.msra.mxu0 %v309
  %3210 = vmatprep.subr.mxu0 %v306
  %3211 = vmatpush1.msra.mxu0 %v305
  %3212 = vmatprep.subr.mxu0 %v302
  %3213 = vmatpush1.msra.mxu0 %v301
  %3214 = vmatprep.subr.mxu0 %v298
  %3215 = vmatpush1.msra.mxu0 %v297
  %3216 = vmatprep.subr.mxu0 %v294
  %3217 = vmatpush1.msra.mxu0 %v293
  %3218 = vmatprep.subr.mxu0 %v290
  %3219 = vmatpush1.msra.mxu0 %v289
  %3220 = vmatprep.subr.mxu0 %v286
  %3221 = vmatpush1.msra.mxu0 %v285
  %3222 = vmatprep.subr.mxu0 %v410
  %3223 = vmatpush2.msra.mxu0 %v409
  %3224 = vmatprep.subr.mxu0 %v406
  %3225 = vmatpush2.msra.mxu0 %v405
  %3226 = vmatprep.subr.mxu0 %v402
  %3227 = vmatpush2.msra.mxu0 %v401
  %3228 = vmatprep.subr.mxu0 %v398
  %3229 = vmatpush2.msra.mxu0 %v397
  %3230 = vmatprep.subr.mxu0 %v394
  %3231 = vmatpush2.msra.mxu0 %v393
  %3232 = vmatprep.subr.mxu0 %v390
  %3233 = vmatpush2.msra.mxu0 %v389
  %3234 = vmatprep.subr.mxu0 %v386
  %3235 = vmatpush2.msra.mxu0 %v385
  %3236 = vmatprep.subr.mxu0 %v382
  %3237 = vmatpush2.msra.mxu0 %v381
  %3238 = vmatprep.subr.mxu0 %v378
  %3239 = vmatpush2.msra.mxu0 %v377
  %3240 = vmatprep.subr.mxu0 %v374
  %3241 = vmatpush2.msra.mxu0 %v373
  %3242 = vmatprep.subr.mxu0 %v370
  %3243 = vmatpush2.msra.mxu0 %v369
  %3244 = vmatprep.subr.mxu0 %v366
  %3245 = vmatpush2.msra.mxu0 %v365
  %3246 = vmatprep.subr.mxu0 %v362
  %3247 = vmatpush2.msra.mxu0 %v361
  %3248 = vmatprep.subr.mxu0 %v358
  %3249 = vmatpush2.msra.mxu0 %v357
  %3250 = vmatprep.subr.mxu0 %v354
  %3251 = vmatpush2.msra.mxu0 %v353
  %3252 = vmatprep.subr.mxu0 %v350
  %3253 = vmatpush2.msra.mxu0 %v349
  %3254 = vmatprep.mubr.f32.mxu0 %v2925
  %3255 = vmatmul.mubr.f32.gmra.mxu0 %v3118
  %v3256 = vpop.f32.mrf.mxu0
  %v3257 = vadd.f32 %v424, %v3256
  %v3258 = vpop.f32.mrf.mxu0
  %v3259 = vadd.f32 %v428, %v3258
  %3260 = vdwg.mxu0
  %v3261 = vxor.u32 %v3186, 2147483648
  %v3262 = vmul.f32 %v3261, 1.442695
  %v3263 = vpow.pop %v3262
  %v3264 = vadd.f32 %v3263, 1.0
  %v3265 = vrcp.pop %v3264
  %v3266 = vmul.f32 1.0, %v3265
  %v3267 = vxor.u32 %v3188, 2147483648
  %v3268 = vmul.f32 %v3267, 1.442695
  %v3269 = vpow.pop %v3268
  %v3270 = vadd.f32 %v3269, 1.0
  %v3271 = vrcp.pop %v3270
  %v3272 = vmul.f32 1.0, %v3271
  %v3273 = vtanh.pop %v3257
  %v3274 = vxor.u32 %v3259, 2147483648
  %v3275 = vmul.f32 %v3274, 1.442695
  %v3276 = vpow.pop %v3275
  %v3277 = vadd.f32 %v3276, 1.0
  %v3278 = vrcp.pop %v3277
  %v3279 = vmul.f32 1.0, %v3278
  %v3280 = vmul.f32 %v3272, %v2923
  %v3281 = vmul.f32 %v3266, %v3273
  %v3282 = vadd.f32 %v3280, %v3281
  %v3283 = vtanh.pop %v3282
  %v3284 = vmul.f32 %v3279, %v3283
  %s3285 = scalar_lea.vmem %s9, 56
  %3286 = vst [vmem:[%s3285] sm:$0xff] %v3284
  %v3287 = vld [vmem:[%s6 + $0x7] sm:$0x1]
  %v3288 = vld [vmem:[%s7 + $0x7] sm:$0x1]
  %v3289 = vlaneseq
  %v3290 = vshrl.u32 %v3289, 7
  %v3291 = vsub.s32 0, %v3290
  %v3292 = vrot.slane %v3287, %v3291
  %v3293 = vmul.f32 %v3284, %v3292
  %3294 = vadd.xlane.f32.xlu0 %v3293
  %v3295 = vpop.xlane.xlu0 %3294
  %v3296 = vlaneseq
  %v3297 = vshrl.u32 %v3296, 7
  %v3298 = vsub.s32 0, %v3297
  %v3299 = vrot.slane %v3288, %v3298
  %v3300 = vadd.f32 %v3295, %v3299
  %s3301 = scalar_lea.vmem %s8, 56
  %3302 = vst.msk [vmem:[%s3301] sm:$0xff] %vm788, %v3300
  // Predicated region
  $region34: #{wgan_discriminator_forward.1} parent=0 // pred_check
    _
  $region35: #{wgan_discriminator_forward.1} parent=0 // pred_check_branch
    %3304 = sbr.rel (0) target = $region37
  $region36: #{wgan_discriminator_forward.1} parent=0 // pred_region
    _
  $region37: #{wgan_discriminator_forward.1} parent=0 // pred_fallthru
    _
  // Predicated region
  $region38: #{wgan_discriminator_forward.1} parent=0 // pred_check
    _
  $region39: #{wgan_discriminator_forward.1} parent=0 // pred_check_branch
    %3306 = sbr.rel (0) target = $region41
  $region40: #{wgan_discriminator_forward.1} parent=0 // pred_region
    _
  $region41: #{wgan_discriminator_forward.1} parent=0 // pred_fallthru
    _
  // Predicated region
  $region42: #{wgan_discriminator_forward.1} parent=0 // pred_check
    _
  $region43: #{wgan_discriminator_forward.1} parent=0 // pred_check_branch
    %3308 = sbr.rel (0) target = $region45
  $region44: #{wgan_discriminator_forward.1} parent=0 // pred_region
    _
  $region45: #{wgan_discriminator_forward.1} parent=0 // pred_fallthru
    _
  // Predicated region
  $region46: #{wgan_discriminator_forward.1} parent=0 // pred_check
    _
  $region47: #{wgan_discriminator_forward.1} parent=0 // pred_check_branch
    %3310 = sbr.rel (0) target = $region49
  $region48: #{wgan_discriminator_forward.1} parent=0 // pred_region
    _
  $region49: #{wgan_discriminator_forward.1} parent=0 // pred_fallthru
    _

</llo_original>
